<compile_context>
chip_gen: v6e
topology: v6e:2x2x1
jax: 0.10.0
libtpu: 0.0.40
codegen_flags: <defaults>
</compile_context>

<pallas_src>
import functools

import jax
import jax.numpy as jnp
from jax import lax
from jax.experimental import pallas as pl
from jax.experimental.pallas import tpu as pltpu


_PARAM_ORDER = (
    "ln1_w", "ln1_b",
    "wq", "bq", "wk", "bk", "wv", "bv",
    "wo", "bo",
    "ln2_w", "ln2_b",
    "w1", "b1", "w2", "b2",
)


def _layernorm(v, w, b, eps=1e-12):
    # TF-style LayerNorm (biased variance, eps inside the sqrt), matching the
    # reference LayerNorm module.
    u = jnp.mean(v, axis=-1, keepdims=True)
    c = v - u
    s = jnp.mean(c * c, axis=-1, keepdims=True)
    return w * (c * lax.rsqrt(s + eps)) + b


def fused_transformer_kernel(
    x_ref,                                   # (Bb, L, E) f32
    ln1w_ref, ln1b_ref,                      # (1, 1, E) f32
    wq_ref, bq_ref,                          # (1, E, E) bf16, (1, 1, E) f32
    wk_ref, bk_ref,
    wv_ref, bv_ref,
    wo_ref, bo_ref,                          # (1, E, E) bf16 (= W_o.T), (1, 1, E)
    ln2w_ref, ln2b_ref,
    w1_ref, b1_ref,                          # (1, E, 4E) bf16, (1, 1, 4E) f32
    w2_ref, b2_ref,                          # (1, 4E, E) bf16, (1, 1, E) f32
    o_ref,                                   # (Bb, L, E) f32 -- residual carry
    ctx_ref,                                 # (Bb*L, E) bf16 scratch (head ctx)
    *, n_head: int, mlp_chunk_rows: int,
):
    # Output block = residual-stream carry across the layer grid axis;
    # initialize from the input at the first layer of each batch block.
    @pl.when(pl.program_id(1) == 0)
    def _():
        o_ref[...] = x_ref[...]

    Bb, L, E = o_ref.shape
    hd = E // n_head
    M = Bb * L

    x = o_ref[...].reshape(M, E)                        # f32, lane dim unchanged

    # ---------------- self-attention branch ----------------
    ln1 = _layernorm(x, ln1w_ref[0], ln1b_ref[0]).astype(jnp.bfloat16)
    # wq / bq already carry the 1/sqrt(head_dim) scale (folded on the host).
    # Cast q/k/v to bf16 ONCE right after the bias add; scores accumulate f32.
    q = (jnp.dot(ln1, wq_ref[0], preferred_element_type=jnp.float32)
         + bq_ref[0]).astype(jnp.bfloat16)
    k = (jnp.dot(ln1, wk_ref[0], preferred_element_type=jnp.float32)
         + bk_ref[0]).astype(jnp.bfloat16)
    v = (jnp.dot(ln1, wv_ref[0], preferred_element_type=jnp.float32)
         + bv_ref[0]).astype(jnp.bfloat16)

    # Per-head scores / softmax / context; each head's context is written at
    # its lane offset into the bf16 scratch so the output projection below is
    # a single full-depth (M,E)x(E,E) matmul (no K=head_dim matmuls, no
    # n_head f32 accumulator passes, no jnp.concatenate).
    for h in range(n_head):                             # static unroll
        sl = slice(h * hd, (h + 1) * hd)
        qh = q[:, sl].reshape(Bb, L, hd)
        kh = k[:, sl].reshape(Bb, L, hd)
        vh = v[:, sl].reshape(Bb, L, hd)
        s = jnp.einsum("bld,bmd->blm", qh, kh,
                       preferred_element_type=jnp.float32)       # (Bb, L, L)
        s = s - jnp.max(s, axis=-1, keepdims=True)
        p = jnp.exp(s)
        p = p * pl.reciprocal(jnp.sum(p, axis=-1, keepdims=True), approx=True)
        ctx = jnp.einsum("blm,bmd->bld", p.astype(jnp.bfloat16), vh,
                         preferred_element_type=jnp.float32)     # (Bb, L, hd)
        ctx_ref[:, sl] = ctx.reshape(M, hd).astype(jnp.bfloat16)

    attn = jnp.dot(ctx_ref[...], wo_ref[0],
                   preferred_element_type=jnp.float32) + bo_ref[0]
    x = x + attn                                        # residual (f32)

    # ---------------- MLP branch (row-chunked) ----------------
    def mlp_rows(xr):                                   # xr: (rows, E) f32
        ln2 = _layernorm(xr, ln2w_ref[0], ln2b_ref[0])
        h1 = jnp.dot(ln2.astype(jnp.bfloat16), w1_ref[0],
                     preferred_element_type=jnp.float32) + b1_ref[0]
        h1 = h1 * jax.nn.sigmoid(1.702 * h1)            # QuickGELU (f32)
        h2 = jnp.dot(h1.astype(jnp.bfloat16), w2_ref[0],
                     preferred_element_type=jnp.float32) + b2_ref[0]
        return xr + h2                                  # residual (f32)

    # Largest divisor of Bb keeping <= mlp_chunk_rows rows per chunk, so the
    # (rows, 4E) hidden activation stays small even when Bb*L is large.
    cb = 1
    for d in range(Bb, 0, -1):
        if Bb % d == 0 and d * L <= max(mlp_chunk_rows, L):
            cb = d
            break
    n_chunks = Bb // cb

    if n_chunks == 1:
        o_ref[...] = mlp_rows(x).reshape(Bb, L, E)
    else:
        o_ref[...] = x.reshape(Bb, L, E)                # post-attention residual

        def body(c, carry):
            start = pl.multiple_of(c * cb, cb)
            xb = o_ref[pl.ds(start, cb)].reshape(cb * L, E)
            o_ref[pl.ds(start, cb)] = mlp_rows(xb).reshape(cb, L, E)
            return carry

        lax.fori_loop(0, n_chunks, body, 0)


def _choose_batch_block(N, L, target_rows):
    """Rows per grid step (Bb*L) close to target_rows for weight-streaming
    arithmetic intensity.  N is padded up to n_blocks*Bb on the host (no tiny
    fallback blocks), and we prefer >= 2 batch-parallel grid steps (v7x
    megacore) when the halved block still amortizes the per-layer weights."""
    bb = max(1, min(N, target_rows // max(L, 1)))
    n_blocks = -(-N // bb)
    if n_blocks == 1 and N > 1 and (-(-N // 2)) * L >= max(1, target_rows // 2):
        n_blocks = 2
        bb = -(-N // 2)
    return bb, n_blocks


def _vmem_limit_bytes(Bb, L, E, chunk_rows):
    mb = 1 << 20
    M = Bb * L
    est = 0
    est += 2 * 12 * E * E * 2             # per-layer bf16 weights, double-buffered
    est += 2 * 16 * 4 * E * 4             # LN params / biases (f32), double-buffered
    est += 2 * 2 * M * E * 4              # x-in / residual-out f32 blocks, dbl-buffered
    est += M * E * (4 + 4 + 3 * 2 + 2)    # x, attn (f32) + q/k/v (bf16) + ctx scratch
    est += 2 * Bb * L * L * 4             # per-head scores / probs (f32)
    est += chunk_rows * 4 * E * (4 + 2)   # one MLP chunk: h1 f32 + bf16 copy
    est += 8 * mb                         # headroom
    cap = 64 * mb                         # conservative default (v7x physical)
    try:
        cap = pltpu.get_tpu_info().vmem_capacity_bytes
    except Exception:
        pass
    return int(min(max(est, 32 * mb), int(cap * 0.85)))


def _layer_spec(arr, n_buffers=2):
    nd = arr.ndim
    shape = (1,) + tuple(arr.shape[1:])
    idx = lambda b, l, _nd=nd: (l,) + (0,) * (_nd - 1)
    if n_buffers == 2:
        return pl.BlockSpec(shape, idx)
    return pl.BlockSpec(shape, idx, pipeline_mode=pl.Buffered(n_buffers))


def temporal_transformer(x_lne, params, n_head, *, target_rows=1024,
                         mlp_chunk_rows=512):
    """x_lne: (L, N, E) -- PyTorch nn.MultiheadAttention default layout."""
    L, N, E = x_lne.shape
    assert E % n_head == 0
    layers = params["wq"].shape[0]

    Bb, n_blocks = _choose_batch_block(N, L, target_rows)
    N_pad = Bb * n_blocks

    # One transpose in / out for the whole fused forward; inside the kernel
    # every reshape keeps the lane (E) dimension minor.
    x_nle = jnp.transpose(x_lne, (1, 0, 2)).astype(jnp.float32)
    if N_pad != N:
        # Pad the batch on the host rather than degrading to tiny batch blocks;
        # padded rows are independent and dropped below.
        x_nle = jnp.pad(x_nle, ((0, N_pad - N), (0, 0), (0, 0)))

    act_spec = pl.BlockSpec((Bb, L, E), lambda b, l: (b, 0, 0))

    # v7x (64 MiB VMEM): single-buffer the big MLP weights when the default
    # double-buffered per-layer weight footprint would crowd out activations.
    single_buf_mlp = 48 * E * E > 36 * (1 << 20)
    in_specs = [act_spec]
    for name in _PARAM_ORDER:
        nb = 1 if (single_buf_mlp and name in ("w1", "w2")) else 2
        in_specs.append(_layer_spec(params[name], nb))

    flat_params = [params[name] for name in _PARAM_ORDER]

    out = pl.pallas_call(
        functools.partial(fused_transformer_kernel, n_head=n_head,
                          mlp_chunk_rows=mlp_chunk_rows),
        out_shape=jax.ShapeDtypeStruct((N_pad, L, E), jnp.float32),
        grid=(n_blocks, layers),
        in_specs=in_specs,
        out_specs=act_spec,
        scratch_shapes=[pltpu.VMEM((Bb * L, E), jnp.bfloat16)],
        compiler_params=pltpu.CompilerParams(
            dimension_semantics=("parallel", "arbitrary"),
            vmem_limit_bytes=_vmem_limit_bytes(
                Bb, L, E, min(mlp_chunk_rows, Bb * L)),
        ),
    )(x_nle, *flat_params)

    if N_pad != N:
        out = out[:N]
    return jnp.transpose(out, (1, 0, 2))


# -------------------- parameters (PyTorch layout -> kernel layout) --------------------

def make_torch_style_params(key, width, layers):
    """Deterministic synthetic parameters in the PyTorch module's native layout."""
    E = width
    out = []
    for l in range(layers):
        ks = jax.random.split(jax.random.fold_in(key, l), 4)
        out.append(dict(
            ln1_w=jnp.ones((E,), jnp.float32),
            ln1_b=jnp.zeros((E,), jnp.float32),
            in_proj_w=0.02 * jax.random.normal(ks[0], (3 * E, E), jnp.float32),
            in_proj_b=jnp.zeros((3 * E,), jnp.float32),
            out_proj_w=0.02 * jax.random.normal(ks[1], (E, E), jnp.float32),
            out_proj_b=jnp.zeros((E,), jnp.float32),
            ln2_w=jnp.ones((E,), jnp.float32),
            ln2_b=jnp.zeros((E,), jnp.float32),
            c_fc_w=0.02 * jax.random.normal(ks[2], (4 * E, E), jnp.float32),
            c_fc_b=jnp.zeros((4 * E,), jnp.float32),
            c_proj_w=0.02 * jax.random.normal(ks[3], (E, 4 * E), jnp.float32),
            c_proj_b=jnp.zeros((E,), jnp.float32),
        ))
    return out


def prepare_params(torch_layers, n_head):
    """Host-side conversion: stack over layers, pre-transpose for
    right-multiplication, pre-split QKV, fold the 1/sqrt(head_dim) scale into
    wq/bq, and cast matmul operands to bf16 (biases / LN params stay f32)."""
    E = torch_layers[0]["out_proj_w"].shape[0]
    hd = E // n_head
    scale = 1.0 / float(hd) ** 0.5

    def stack(fn):
        return jnp.stack([fn(p) for p in torch_layers], axis=0)

    return {
        "ln1_w": stack(lambda p: p["ln1_w"].reshape(1, E)),
        "ln1_b": stack(lambda p: p["ln1_b"].reshape(1, E)),
        "wq": stack(lambda p: (p["in_proj_w"][:E].T * scale).astype(jnp.bfloat16)),
        "bq": stack(lambda p: (p["in_proj_b"][:E] * scale).reshape(1, E)),
        "wk": stack(lambda p: p["in_proj_w"][E:2 * E].T.astype(jnp.bfloat16)),
        "bk": stack(lambda p: p["in_proj_b"][E:2 * E].reshape(1, E)),
        "wv": stack(lambda p: p["in_proj_w"][2 * E:].T.astype(jnp.bfloat16)),
        "bv": stack(lambda p: p["in_proj_b"][2 * E:].reshape(1, E)),
        "wo": stack(lambda p: p["out_proj_w"].T.astype(jnp.bfloat16)),
        "bo": stack(lambda p: p["out_proj_b"].reshape(1, E)),
        "ln2_w": stack(lambda p: p["ln2_w"].reshape(1, E)),
        "ln2_b": stack(lambda p: p["ln2_b"].reshape(1, E)),
        "w1": stack(lambda p: p["c_fc_w"].T.astype(jnp.bfloat16)),
        "b1": stack(lambda p: p["c_fc_b"].reshape(1, 4 * E)),
        "w2": stack(lambda p: p["c_proj_w"].T.astype(jnp.bfloat16)),
        "b2": stack(lambda p: p["c_proj_b"].reshape(1, E)),
    }


# -------------------- pure-JAX f32 reference (matches the PyTorch module) --------------------

def reference_forward(x_lne, torch_layers, n_head):
    def ln(v, w, b, eps=1e-12):
        u = v.mean(-1, keepdims=True)
        s = ((v - u) ** 2).mean(-1, keepdims=True)
        return w * (v - u) / jnp.sqrt(s + eps) + b

    L, N, E = x_lne.shape
    hd = E // n_head
    x = x_lne
    for p in torch_layers:
        h = ln(x, p["ln1_w"], p["ln1_b"])
        qkv = h @ p["in_proj_w"].T + p["in_proj_b"]
        q, k, v = qkv[..., :E], qkv[..., E:2 * E], qkv[..., 2 * E:]
        q = q / jnp.sqrt(float(hd))

        def split(t):  # (L, N, E) -> (N, H, L, hd)
            return t.reshape(L, N, n_head, hd).transpose(1, 2, 0, 3)

        qh, kh, vh = split(q), split(k), split(v)
        a = jax.nn.softmax(qh @ kh.transpose(0, 1, 3, 2), axis=-1)
        ctx = (a @ vh).transpose(2, 0, 1, 3).reshape(L, N, E)
        x = x + (ctx @ p["out_proj_w"].T + p["out_proj_b"])

        h2 = ln(x, p["ln2_w"], p["ln2_b"])
        m = h2 @ p["c_fc_w"].T + p["c_fc_b"]
        m = m * jax.nn.sigmoid(1.702 * m)
        x = x + (m @ p["c_proj_w"].T + p["c_proj_b"])
    return x


if __name__ == "__main__":
    L, N, E = 8, 4, 32          # seq, batch, width
    HEADS, LAYERS = 4, 2

    key = jax.random.PRNGKey(0)
    kx, kp = jax.random.split(key)
    x = jax.random.normal(kx, (L, N, E), jnp.float32)

    torch_layers = make_torch_style_params(kp, E, LAYERS)
    params = prepare_params(torch_layers, HEADS)
    ref = reference_forward(x, torch_layers, HEADS)

    # Default blocking.
    out = jax.block_until_ready(temporal_transformer(x, params, HEADS))
    assert out.shape == (L, N, E)
    assert bool(jnp.all(jnp.isfinite(out)))
    err = float(jnp.max(jnp.abs(out - ref)))
    assert err < 3e-2, f"default blocking: max abs error vs f32 reference: {err}"

    # Stress the multi-batch-block + chunked-MLP (fori_loop) paths.
    out2 = jax.block_until_ready(
        temporal_transformer(x, params, HEADS, target_rows=16, mlp_chunk_rows=8))
    err2 = float(jnp.max(jnp.abs(out2 - ref)))
    assert err2 < 3e-2, f"chunked path: max abs error vs f32 reference: {err2}"

    # Stress the host-side batch-padding path (N not divisible by the block).
    x3 = x[:, :3]
    ref3 = reference_forward(x3, torch_layers, HEADS)
    out3 = jax.block_until_ready(
        temporal_transformer(x3, params, HEADS, target_rows=16))
    err3 = float(jnp.max(jnp.abs(out3 - ref3)))
    assert err3 < 3e-2, f"padded path: max abs error vs f32 reference: {err3}"

    print("KERNEL_OK")
</pallas_src>

<mosaic_0001>
module attributes {stable_mosaic.version = 11 : i64} {
  func.func @fused_transformer_kernel(%arg0: i32, %arg1: i32, %arg2: memref<4x8x32xf32, #tpu.memory_space<vmem>>, %arg3: memref<1x1x32xf32, #tpu.memory_space<vmem>>, %arg4: memref<1x1x32xf32, #tpu.memory_space<vmem>>, %arg5: memref<1x32x32xbf16, #tpu.memory_space<vmem>>, %arg6: memref<1x1x32xf32, #tpu.memory_space<vmem>>, %arg7: memref<1x32x32xbf16, #tpu.memory_space<vmem>>, %arg8: memref<1x1x32xf32, #tpu.memory_space<vmem>>, %arg9: memref<1x32x32xbf16, #tpu.memory_space<vmem>>, %arg10: memref<1x1x32xf32, #tpu.memory_space<vmem>>, %arg11: memref<1x32x32xbf16, #tpu.memory_space<vmem>>, %arg12: memref<1x1x32xf32, #tpu.memory_space<vmem>>, %arg13: memref<1x1x32xf32, #tpu.memory_space<vmem>>, %arg14: memref<1x1x32xf32, #tpu.memory_space<vmem>>, %arg15: memref<1x32x128xbf16, #tpu.memory_space<vmem>>, %arg16: memref<1x1x128xf32, #tpu.memory_space<vmem>>, %arg17: memref<1x128x32xbf16, #tpu.memory_space<vmem>>, %arg18: memref<1x1x32xf32, #tpu.memory_space<vmem>>, %arg19: memref<4x8x32xf32, #tpu.memory_space<vmem>>, %arg20: memref<32x32xbf16, #tpu.memory_space<vmem>>) attributes {dimension_semantics = [#tpu.dimension_semantics<parallel>, #tpu.dimension_semantics<arbitrary>], iteration_bounds = array<i64: 1, 2>, scalar_prefetch = 0 : i64, scratch_operands = 1 : i64, tpu.core_type = #tpu.core_type<tc>, window_params = [{transform_indices = @transform_0, window_bounds = array<i64: 4, 8, 32>}, {transform_indices = @transform_1, window_bounds = array<i64: 1, 1, 32>}, {transform_indices = @transform_2, window_bounds = array<i64: 1, 1, 32>}, {transform_indices = @transform_3, window_bounds = array<i64: 1, 32, 32>}, {transform_indices = @transform_4, window_bounds = array<i64: 1, 1, 32>}, {transform_indices = @transform_5, window_bounds = array<i64: 1, 32, 32>}, {transform_indices = @transform_6, window_bounds = array<i64: 1, 1, 32>}, {transform_indices = @transform_7, window_bounds = array<i64: 1, 32, 32>}, {transform_indices = @transform_8, window_bounds = array<i64: 1, 1, 32>}, {transform_indices = @transform_9, window_bounds = array<i64: 1, 32, 32>}, {transform_indices = @transform_10, window_bounds = array<i64: 1, 1, 32>}, {transform_indices = @transform_11, window_bounds = array<i64: 1, 1, 32>}, {transform_indices = @transform_12, window_bounds = array<i64: 1, 1, 32>}, {transform_indices = @transform_13, window_bounds = array<i64: 1, 32, 128>}, {transform_indices = @transform_14, window_bounds = array<i64: 1, 1, 128>}, {transform_indices = @transform_15, window_bounds = array<i64: 1, 128, 32>}, {transform_indices = @transform_16, window_bounds = array<i64: 1, 1, 32>}, {transform_indices = @transform_17, window_bounds = array<i64: 4, 8, 32>}]} {
    %c0_i32 = arith.constant 0 : i32
    %0 = arith.cmpi eq, %arg1, %c0_i32 : i32
    %1 = arith.extui %0 : i1 to i32
    %c0_i32_0 = arith.constant 0 : i32
    %2 = arith.cmpi ne, %1, %c0_i32_0 : i32
    scf.if %2 {
      %c0_94 = arith.constant 0 : index
      %c0_95 = arith.constant 0 : index
      %c0_96 = arith.constant 0 : index
      %202 = vector.load %arg2[%c0_94, %c0_95, %c0_96] : memref<4x8x32xf32, #tpu.memory_space<vmem>>, vector<4x8x32xf32>
      %c0_97 = arith.constant 0 : index
      %c0_98 = arith.constant 0 : index
      %c0_99 = arith.constant 0 : index
      %203 = vector.load %arg19[%c0_97, %c0_98, %c0_99] : memref<4x8x32xf32, #tpu.memory_space<vmem>>, vector<4x8x32xf32>
      tpu.vector_store %arg19[%c0_97, %c0_98, %c0_99], %202 {strides = array<i32>} : memref<4x8x32xf32, #tpu.memory_space<vmem>>, vector<4x8x32xf32>,
    } else {
    }
    %c0 = arith.constant 0 : index
    %c0_1 = arith.constant 0 : index
    %c0_2 = arith.constant 0 : index
    %3 = vector.load %arg19[%c0, %c0_1, %c0_2] : memref<4x8x32xf32, #tpu.memory_space<vmem>>, vector<4x8x32xf32>
    %4 = vector.shape_cast %3 : vector<4x8x32xf32> to vector<32x32xf32>
    %c0_3 = arith.constant 0 : index
    %c0_4 = arith.constant 0 : index
    %c0_5 = arith.constant 0 : index
    %5 = vector.load %arg3[%c0_3, %c0_4, %c0_5] : memref<1x1x32xf32, #tpu.memory_space<vmem>>, vector<1x1x32xf32>
    %6 = vector.shape_cast %5 : vector<1x1x32xf32> to vector<1x32xf32>
    %c0_6 = arith.constant 0 : index
    %c0_7 = arith.constant 0 : index
    %c0_8 = arith.constant 0 : index
    %7 = vector.load %arg4[%c0_6, %c0_7, %c0_8] : memref<1x1x32xf32, #tpu.memory_space<vmem>>, vector<1x1x32xf32>
    %8 = vector.shape_cast %7 : vector<1x1x32xf32> to vector<1x32xf32>
    %cst = arith.constant dense<0.000000e+00> : vector<32xf32>
    %9 = vector.multi_reduction <add>, %4, %cst [1] : vector<32x32xf32> to vector<32xf32>
    %10 = vector.shape_cast %9 : vector<32xf32> to vector<32x1xf32>
    %cst_9 = arith.constant 3.200000e+01 : f32
    %11 = vector.broadcast %cst_9 : f32 to vector<32x1xf32>
    %12 = arith.divf %10, %11 : vector<32x1xf32>
    %13 = vector.broadcast %12 : vector<32x1xf32> to vector<32x32xf32>
    %14 = arith.subf %4, %13 : vector<32x32xf32>
    %15 = arith.mulf %14, %14 : vector<32x32xf32>
    %cst_10 = arith.constant dense<0.000000e+00> : vector<32xf32>
    %16 = vector.multi_reduction <add>, %15, %cst_10 [1] : vector<32x32xf32> to vector<32xf32>
    %17 = vector.shape_cast %16 : vector<32xf32> to vector<32x1xf32>
    %cst_11 = arith.constant 3.200000e+01 : f32
    %18 = vector.broadcast %cst_11 : f32 to vector<32x1xf32>
    %19 = arith.divf %17, %18 : vector<32x1xf32>
    %cst_12 = arith.constant 9.99999996E-13 : f32
    %20 = vector.broadcast %cst_12 : f32 to vector<32x1xf32>
    %21 = arith.addf %19, %20 : vector<32x1xf32>
    %22 = math.rsqrt %21 : vector<32x1xf32>
    %23 = vector.broadcast %22 : vector<32x1xf32> to vector<32x32xf32>
    %24 = arith.mulf %14, %23 : vector<32x32xf32>
    %25 = vector.broadcast %6 : vector<1x32xf32> to vector<32x32xf32>
    %26 = arith.mulf %25, %24 : vector<32x32xf32>
    %27 = vector.broadcast %8 : vector<1x32xf32> to vector<32x32xf32>
    %28 = arith.addf %26, %27 : vector<32x32xf32>
    %29 = arith.truncf %28 : vector<32x32xf32> to vector<32x32xbf16>
    %c0_13 = arith.constant 0 : index
    %c0_14 = arith.constant 0 : index
    %c0_15 = arith.constant 0 : index
    %30 = vector.load %arg5[%c0_13, %c0_14, %c0_15] : memref<1x32x32xbf16, #tpu.memory_space<vmem>>, vector<1x32x32xbf16>
    %31 = vector.shape_cast %30 : vector<1x32x32xbf16> to vector<32x32xbf16>
    %cst_16 = arith.constant dense<0.000000e+00> : vector<32x32xf32>
    %32 = tpu.matmul %29, %31, %cst_16 {dimension_numbers = #tpu.dot_dimension_numbers<[1], [0], [0], [1], [0, 0, 1, 1], [], []>} : vector<32x32xbf16>, vector<32x32xbf16>, vector<32x32xf32> -> vector<32x32xf32>
    %c0_17 = arith.constant 0 : index
    %c0_18 = arith.constant 0 : index
    %c0_19 = arith.constant 0 : index
    %33 = vector.load %arg6[%c0_17, %c0_18, %c0_19] : memref<1x1x32xf32, #tpu.memory_space<vmem>>, vector<1x1x32xf32>
    %34 = vector.shape_cast %33 : vector<1x1x32xf32> to vector<1x32xf32>
    %35 = vector.broadcast %34 : vector<1x32xf32> to vector<32x32xf32>
    %36 = arith.addf %32, %35 : vector<32x32xf32>
    %37 = arith.truncf %36 : vector<32x32xf32> to vector<32x32xbf16>
    %c0_20 = arith.constant 0 : index
    %c0_21 = arith.constant 0 : index
    %c0_22 = arith.constant 0 : index
    %38 = vector.load %arg7[%c0_20, %c0_21, %c0_22] : memref<1x32x32xbf16, #tpu.memory_space<vmem>>, vector<1x32x32xbf16>
    %39 = vector.shape_cast %38 : vector<1x32x32xbf16> to vector<32x32xbf16>
    %cst_23 = arith.constant dense<0.000000e+00> : vector<32x32xf32>
    %40 = tpu.matmul %29, %39, %cst_23 {dimension_numbers = #tpu.dot_dimension_numbers<[1], [0], [0], [1], [0, 0, 1, 1], [], []>} : vector<32x32xbf16>, vector<32x32xbf16>, vector<32x32xf32> -> vector<32x32xf32>
    %c0_24 = arith.constant 0 : index
    %c0_25 = arith.constant 0 : index
    %c0_26 = arith.constant 0 : index
    %41 = vector.load %arg8[%c0_24, %c0_25, %c0_26] : memref<1x1x32xf32, #tpu.memory_space<vmem>>, vector<1x1x32xf32>
    %42 = vector.shape_cast %41 : vector<1x1x32xf32> to vector<1x32xf32>
    %43 = vector.broadcast %42 : vector<1x32xf32> to vector<32x32xf32>
    %44 = arith.addf %40, %43 : vector<32x32xf32>
    %45 = arith.truncf %44 : vector<32x32xf32> to vector<32x32xbf16>
    %c0_27 = arith.constant 0 : index
    %c0_28 = arith.constant 0 : index
    %c0_29 = arith.constant 0 : index
    %46 = vector.load %arg9[%c0_27, %c0_28, %c0_29] : memref<1x32x32xbf16, #tpu.memory_space<vmem>>, vector<1x32x32xbf16>
    %47 = vector.shape_cast %46 : vector<1x32x32xbf16> to vector<32x32xbf16>
    %cst_30 = arith.constant dense<0.000000e+00> : vector<32x32xf32>
    %48 = tpu.matmul %29, %47, %cst_30 {dimension_numbers = #tpu.dot_dimension_numbers<[1], [0], [0], [1], [0, 0, 1, 1], [], []>} : vector<32x32xbf16>, vector<32x32xbf16>, vector<32x32xf32> -> vector<32x32xf32>
    %c0_31 = arith.constant 0 : index
    %c0_32 = arith.constant 0 : index
    %c0_33 = arith.constant 0 : index
    %49 = vector.load %arg10[%c0_31, %c0_32, %c0_33] : memref<1x1x32xf32, #tpu.memory_space<vmem>>, vector<1x1x32xf32>
    %50 = vector.shape_cast %49 : vector<1x1x32xf32> to vector<1x32xf32>
    %51 = vector.broadcast %50 : vector<1x32xf32> to vector<32x32xf32>
    %52 = arith.addf %48, %51 : vector<32x32xf32>
    %53 = arith.truncf %52 : vector<32x32xf32> to vector<32x32xbf16>
    %54 = vector.extract_strided_slice %37 {offsets = [0, 0], sizes = [32, 8], strides = [1, 1]} : vector<32x32xbf16> to vector<32x8xbf16>
    %55 = vector.shape_cast %54 : vector<32x8xbf16> to vector<4x8x8xbf16>
    %56 = vector.extract_strided_slice %45 {offsets = [0, 0], sizes = [32, 8], strides = [1, 1]} : vector<32x32xbf16> to vector<32x8xbf16>
    %57 = vector.shape_cast %56 : vector<32x8xbf16> to vector<4x8x8xbf16>
    %58 = vector.extract_strided_slice %53 {offsets = [0, 0], sizes = [32, 8], strides = [1, 1]} : vector<32x32xbf16> to vector<32x8xbf16>
    %59 = vector.shape_cast %58 : vector<32x8xbf16> to vector<4x8x8xbf16>
    "tpu.trace_start"() <{level = 10 : i32, message = "bld,bmd->blm"}> : () -> ()
    %cst_34 = arith.constant dense<0.000000e+00> : vector<4x8x8xf32>
    %60 = tpu.matmul %55, %57, %cst_34 {dimension_numbers = #tpu.dot_dimension_numbers<[2], [2], [1], [1], [0, 0, 0, 1, 1, 1], [0], [0]>} : vector<4x8x8xbf16>, vector<4x8x8xbf16>, vector<4x8x8xf32> -> vector<4x8x8xf32>
    "tpu.trace_stop"() : () -> ()
    %cst_35 = arith.constant dense<0xFF800000> : vector<4x8xf32>
    %61 = vector.multi_reduction <maximumf>, %60, %cst_35 [2] : vector<4x8x8xf32> to vector<4x8xf32>
    %62 = vector.shape_cast %61 : vector<4x8xf32> to vector<4x8x1xf32>
    %63 = vector.broadcast %62 : vector<4x8x1xf32> to vector<4x8x8xf32>
    %64 = arith.subf %60, %63 : vector<4x8x8xf32>
    %65 = math.exp %64 : vector<4x8x8xf32>
    %cst_36 = arith.constant dense<0.000000e+00> : vector<4x8xf32>
    %66 = vector.multi_reduction <add>, %65, %cst_36 [2] : vector<4x8x8xf32> to vector<4x8xf32>
    %67 = vector.shape_cast %66 : vector<4x8xf32> to vector<4x8x1xf32>
    %68 = tpu.reciprocal %67 {approx = true} : vector<4x8x1xf32> -> vector<4x8x1xf32>
    %69 = vector.broadcast %68 : vector<4x8x1xf32> to vector<4x8x8xf32>
    %70 = arith.mulf %65, %69 : vector<4x8x8xf32>
    %71 = arith.truncf %70 : vector<4x8x8xf32> to vector<4x8x8xbf16>
    "tpu.trace_start"() <{level = 10 : i32, message = "blm,bmd->bld"}> : () -> ()
    %cst_37 = arith.constant dense<0.000000e+00> : vector<4x8x8xf32>
    %72 = tpu.matmul %71, %59, %cst_37 {dimension_numbers = #tpu.dot_dimension_numbers<[2], [1], [1], [2], [0, 0, 0, 1, 1, 2], [0], [0]>} : vector<4x8x8xbf16>, vector<4x8x8xbf16>, vector<4x8x8xf32> -> vector<4x8x8xf32>
    "tpu.trace_stop"() : () -> ()
    %73 = vector.shape_cast %72 : vector<4x8x8xf32> to vector<32x8xf32>
    %74 = arith.truncf %73 : vector<32x8xf32> to vector<32x8xbf16>
    %c0_38 = arith.constant 0 : index
    %c0_39 = arith.constant 0 : index
    %75 = vector.load %arg20[%c0_38, %c0_39] : memref<32x32xbf16, #tpu.memory_space<vmem>>, vector<32x8xbf16>
    tpu.vector_store %arg20[%c0_38, %c0_39], %74 {strides = array<i32>} : memref<32x32xbf16, #tpu.memory_space<vmem>>, vector<32x8xbf16>,
    %76 = vector.extract_strided_slice %37 {offsets = [0, 8], sizes = [32, 8], strides = [1, 1]} : vector<32x32xbf16> to vector<32x8xbf16>
    %77 = vector.shape_cast %76 : vector<32x8xbf16> to vector<4x8x8xbf16>
    %78 = vector.extract_strided_slice %45 {offsets = [0, 8], sizes = [32, 8], strides = [1, 1]} : vector<32x32xbf16> to vector<32x8xbf16>
    %79 = vector.shape_cast %78 : vector<32x8xbf16> to vector<4x8x8xbf16>
    %80 = vector.extract_strided_slice %53 {offsets = [0, 8], sizes = [32, 8], strides = [1, 1]} : vector<32x32xbf16> to vector<32x8xbf16>
    %81 = vector.shape_cast %80 : vector<32x8xbf16> to vector<4x8x8xbf16>
    "tpu.trace_start"() <{level = 10 : i32, message = "bld,bmd->blm"}> : () -> ()
    %cst_40 = arith.constant dense<0.000000e+00> : vector<4x8x8xf32>
    %82 = tpu.matmul %77, %79, %cst_40 {dimension_numbers = #tpu.dot_dimension_numbers<[2], [2], [1], [1], [0, 0, 0, 1, 1, 1], [0], [0]>} : vector<4x8x8xbf16>, vector<4x8x8xbf16>, vector<4x8x8xf32> -> vector<4x8x8xf32>
    "tpu.trace_stop"() : () -> ()
    %cst_41 = arith.constant dense<0xFF800000> : vector<4x8xf32>
    %83 = vector.multi_reduction <maximumf>, %82, %cst_41 [2] : vector<4x8x8xf32> to vector<4x8xf32>
    %84 = vector.shape_cast %83 : vector<4x8xf32> to vector<4x8x1xf32>
    %85 = vector.broadcast %84 : vector<4x8x1xf32> to vector<4x8x8xf32>
    %86 = arith.subf %82, %85 : vector<4x8x8xf32>
    %87 = math.exp %86 : vector<4x8x8xf32>
    %cst_42 = arith.constant dense<0.000000e+00> : vector<4x8xf32>
    %88 = vector.multi_reduction <add>, %87, %cst_42 [2] : vector<4x8x8xf32> to vector<4x8xf32>
    %89 = vector.shape_cast %88 : vector<4x8xf32> to vector<4x8x1xf32>
    %90 = tpu.reciprocal %89 {approx = true} : vector<4x8x1xf32> -> vector<4x8x1xf32>
    %91 = vector.broadcast %90 : vector<4x8x1xf32> to vector<4x8x8xf32>
    %92 = arith.mulf %87, %91 : vector<4x8x8xf32>
    %93 = arith.truncf %92 : vector<4x8x8xf32> to vector<4x8x8xbf16>
    "tpu.trace_start"() <{level = 10 : i32, message = "blm,bmd->bld"}> : () -> ()
    %cst_43 = arith.constant dense<0.000000e+00> : vector<4x8x8xf32>
    %94 = tpu.matmul %93, %81, %cst_43 {dimension_numbers = #tpu.dot_dimension_numbers<[2], [1], [1], [2], [0, 0, 0, 1, 1, 2], [0], [0]>} : vector<4x8x8xbf16>, vector<4x8x8xbf16>, vector<4x8x8xf32> -> vector<4x8x8xf32>
    "tpu.trace_stop"() : () -> ()
    %95 = vector.shape_cast %94 : vector<4x8x8xf32> to vector<32x8xf32>
    %96 = arith.truncf %95 : vector<32x8xf32> to vector<32x8xbf16>
    %c0_44 = arith.constant 0 : index
    %c8 = arith.constant 8 : index
    %97 = vector.load %arg20[%c0_44, %c8] : memref<32x32xbf16, #tpu.memory_space<vmem>>, vector<32x8xbf16>
    tpu.vector_store %arg20[%c0_44, %c8], %96 {strides = array<i32>} : memref<32x32xbf16, #tpu.memory_space<vmem>>, vector<32x8xbf16>,
    %98 = vector.extract_strided_slice %37 {offsets = [0, 16], sizes = [32, 8], strides = [1, 1]} : vector<32x32xbf16> to vector<32x8xbf16>
    %99 = vector.shape_cast %98 : vector<32x8xbf16> to vector<4x8x8xbf16>
    %100 = vector.extract_strided_slice %45 {offsets = [0, 16], sizes = [32, 8], strides = [1, 1]} : vector<32x32xbf16> to vector<32x8xbf16>
    %101 = vector.shape_cast %100 : vector<32x8xbf16> to vector<4x8x8xbf16>
    %102 = vector.extract_strided_slice %53 {offsets = [0, 16], sizes = [32, 8], strides = [1, 1]} : vector<32x32xbf16> to vector<32x8xbf16>
    %103 = vector.shape_cast %102 : vector<32x8xbf16> to vector<4x8x8xbf16>
    "tpu.trace_start"() <{level = 10 : i32, message = "bld,bmd->blm"}> : () -> ()
    %cst_45 = arith.constant dense<0.000000e+00> : vector<4x8x8xf32>
    %104 = tpu.matmul %99, %101, %cst_45 {dimension_numbers = #tpu.dot_dimension_numbers<[2], [2], [1], [1], [0, 0, 0, 1, 1, 1], [0], [0]>} : vector<4x8x8xbf16>, vector<4x8x8xbf16>, vector<4x8x8xf32> -> vector<4x8x8xf32>
    "tpu.trace_stop"() : () -> ()
    %cst_46 = arith.constant dense<0xFF800000> : vector<4x8xf32>
    %105 = vector.multi_reduction <maximumf>, %104, %cst_46 [2] : vector<4x8x8xf32> to vector<4x8xf32>
    %106 = vector.shape_cast %105 : vector<4x8xf32> to vector<4x8x1xf32>
    %107 = vector.broadcast %106 : vector<4x8x1xf32> to vector<4x8x8xf32>
    %108 = arith.subf %104, %107 : vector<4x8x8xf32>
    %109 = math.exp %108 : vector<4x8x8xf32>
    %cst_47 = arith.constant dense<0.000000e+00> : vector<4x8xf32>
    %110 = vector.multi_reduction <add>, %109, %cst_47 [2] : vector<4x8x8xf32> to vector<4x8xf32>
    %111 = vector.shape_cast %110 : vector<4x8xf32> to vector<4x8x1xf32>
    %112 = tpu.reciprocal %111 {approx = true} : vector<4x8x1xf32> -> vector<4x8x1xf32>
    %113 = vector.broadcast %112 : vector<4x8x1xf32> to vector<4x8x8xf32>
    %114 = arith.mulf %109, %113 : vector<4x8x8xf32>
    %115 = arith.truncf %114 : vector<4x8x8xf32> to vector<4x8x8xbf16>
    "tpu.trace_start"() <{level = 10 : i32, message = "blm,bmd->bld"}> : () -> ()
    %cst_48 = arith.constant dense<0.000000e+00> : vector<4x8x8xf32>
    %116 = tpu.matmul %115, %103, %cst_48 {dimension_numbers = #tpu.dot_dimension_numbers<[2], [1], [1], [2], [0, 0, 0, 1, 1, 2], [0], [0]>} : vector<4x8x8xbf16>, vector<4x8x8xbf16>, vector<4x8x8xf32> -> vector<4x8x8xf32>
    "tpu.trace_stop"() : () -> ()
    %117 = vector.shape_cast %116 : vector<4x8x8xf32> to vector<32x8xf32>
    %118 = arith.truncf %117 : vector<32x8xf32> to vector<32x8xbf16>
    %c0_49 = arith.constant 0 : index
    %c16 = arith.constant 16 : index
    %119 = vector.load %arg20[%c0_49, %c16] : memref<32x32xbf16, #tpu.memory_space<vmem>>, vector<32x8xbf16>
    tpu.vector_store %arg20[%c0_49, %c16], %118 {strides = array<i32>} : memref<32x32xbf16, #tpu.memory_space<vmem>>, vector<32x8xbf16>,
    %120 = vector.extract_strided_slice %37 {offsets = [0, 24], sizes = [32, 8], strides = [1, 1]} : vector<32x32xbf16> to vector<32x8xbf16>
    %121 = vector.shape_cast %120 : vector<32x8xbf16> to vector<4x8x8xbf16>
    %122 = vector.extract_strided_slice %45 {offsets = [0, 24], sizes = [32, 8], strides = [1, 1]} : vector<32x32xbf16> to vector<32x8xbf16>
    %123 = vector.shape_cast %122 : vector<32x8xbf16> to vector<4x8x8xbf16>
    %124 = vector.extract_strided_slice %53 {offsets = [0, 24], sizes = [32, 8], strides = [1, 1]} : vector<32x32xbf16> to vector<32x8xbf16>
    %125 = vector.shape_cast %124 : vector<32x8xbf16> to vector<4x8x8xbf16>
    "tpu.trace_start"() <{level = 10 : i32, message = "bld,bmd->blm"}> : () -> ()
    %cst_50 = arith.constant dense<0.000000e+00> : vector<4x8x8xf32>
    %126 = tpu.matmul %121, %123, %cst_50 {dimension_numbers = #tpu.dot_dimension_numbers<[2], [2], [1], [1], [0, 0, 0, 1, 1, 1], [0], [0]>} : vector<4x8x8xbf16>, vector<4x8x8xbf16>, vector<4x8x8xf32> -> vector<4x8x8xf32>
    "tpu.trace_stop"() : () -> ()
    %cst_51 = arith.constant dense<0xFF800000> : vector<4x8xf32>
    %127 = vector.multi_reduction <maximumf>, %126, %cst_51 [2] : vector<4x8x8xf32> to vector<4x8xf32>
    %128 = vector.shape_cast %127 : vector<4x8xf32> to vector<4x8x1xf32>
    %129 = vector.broadcast %128 : vector<4x8x1xf32> to vector<4x8x8xf32>
    %130 = arith.subf %126, %129 : vector<4x8x8xf32>
    %131 = math.exp %130 : vector<4x8x8xf32>
    %cst_52 = arith.constant dense<0.000000e+00> : vector<4x8xf32>
    %132 = vector.multi_reduction <add>, %131, %cst_52 [2] : vector<4x8x8xf32> to vector<4x8xf32>
    %133 = vector.shape_cast %132 : vector<4x8xf32> to vector<4x8x1xf32>
    %134 = tpu.reciprocal %133 {approx = true} : vector<4x8x1xf32> -> vector<4x8x1xf32>
    %135 = vector.broadcast %134 : vector<4x8x1xf32> to vector<4x8x8xf32>
    %136 = arith.mulf %131, %135 : vector<4x8x8xf32>
    %137 = arith.truncf %136 : vector<4x8x8xf32> to vector<4x8x8xbf16>
    "tpu.trace_start"() <{level = 10 : i32, message = "blm,bmd->bld"}> : () -> ()
    %cst_53 = arith.constant dense<0.000000e+00> : vector<4x8x8xf32>
    %138 = tpu.matmul %137, %125, %cst_53 {dimension_numbers = #tpu.dot_dimension_numbers<[2], [1], [1], [2], [0, 0, 0, 1, 1, 2], [0], [0]>} : vector<4x8x8xbf16>, vector<4x8x8xbf16>, vector<4x8x8xf32> -> vector<4x8x8xf32>
    "tpu.trace_stop"() : () -> ()
    %139 = vector.shape_cast %138 : vector<4x8x8xf32> to vector<32x8xf32>
    %140 = arith.truncf %139 : vector<32x8xf32> to vector<32x8xbf16>
    %c0_54 = arith.constant 0 : index
    %c24 = arith.constant 24 : index
    %141 = vector.load %arg20[%c0_54, %c24] : memref<32x32xbf16, #tpu.memory_space<vmem>>, vector<32x8xbf16>
    tpu.vector_store %arg20[%c0_54, %c24], %140 {strides = array<i32>} : memref<32x32xbf16, #tpu.memory_space<vmem>>, vector<32x8xbf16>,
    %c0_55 = arith.constant 0 : index
    %c0_56 = arith.constant 0 : index
    %142 = vector.load %arg20[%c0_55, %c0_56] : memref<32x32xbf16, #tpu.memory_space<vmem>>, vector<32x32xbf16>
    %c0_57 = arith.constant 0 : index
    %c0_58 = arith.constant 0 : index
    %c0_59 = arith.constant 0 : index
    %143 = vector.load %arg11[%c0_57, %c0_58, %c0_59] : memref<1x32x32xbf16, #tpu.memory_space<vmem>>, vector<1x32x32xbf16>
    %144 = vector.shape_cast %143 : vector<1x32x32xbf16> to vector<32x32xbf16>
    %cst_60 = arith.constant dense<0.000000e+00> : vector<32x32xf32>
    %145 = tpu.matmul %142, %144, %cst_60 {dimension_numbers = #tpu.dot_dimension_numbers<[1], [0], [0], [1], [0, 0, 1, 1], [], []>} : vector<32x32xbf16>, vector<32x32xbf16>, vector<32x32xf32> -> vector<32x32xf32>
    %c0_61 = arith.constant 0 : index
    %c0_62 = arith.constant 0 : index
    %c0_63 = arith.constant 0 : index
    %146 = vector.load %arg12[%c0_61, %c0_62, %c0_63] : memref<1x1x32xf32, #tpu.memory_space<vmem>>, vector<1x1x32xf32>
    %147 = vector.shape_cast %146 : vector<1x1x32xf32> to vector<1x32xf32>
    %148 = vector.broadcast %147 : vector<1x32xf32> to vector<32x32xf32>
    %149 = arith.addf %145, %148 : vector<32x32xf32>
    %150 = arith.addf %4, %149 : vector<32x32xf32>
    %c0_64 = arith.constant 0 : index
    %c0_65 = arith.constant 0 : index
    %c0_66 = arith.constant 0 : index
    %151 = vector.load %arg13[%c0_64, %c0_65, %c0_66] : memref<1x1x32xf32, #tpu.memory_space<vmem>>, vector<1x1x32xf32>
    %152 = vector.shape_cast %151 : vector<1x1x32xf32> to vector<1x32xf32>
    %c0_67 = arith.constant 0 : index
    %c0_68 = arith.constant 0 : index
    %c0_69 = arith.constant 0 : index
    %153 = vector.load %arg14[%c0_67, %c0_68, %c0_69] : memref<1x1x32xf32, #tpu.memory_space<vmem>>, vector<1x1x32xf32>
    %154 = vector.shape_cast %153 : vector<1x1x32xf32> to vector<1x32xf32>
    %cst_70 = arith.constant dense<0.000000e+00> : vector<32xf32>
    %155 = vector.multi_reduction <add>, %150, %cst_70 [1] : vector<32x32xf32> to vector<32xf32>
    %156 = vector.shape_cast %155 : vector<32xf32> to vector<32x1xf32>
    %cst_71 = arith.constant 3.200000e+01 : f32
    %157 = vector.broadcast %cst_71 : f32 to vector<32x1xf32>
    %158 = arith.divf %156, %157 : vector<32x1xf32>
    %159 = vector.broadcast %158 : vector<32x1xf32> to vector<32x32xf32>
    %160 = arith.subf %150, %159 : vector<32x32xf32>
    %161 = arith.mulf %160, %160 : vector<32x32xf32>
    %cst_72 = arith.constant dense<0.000000e+00> : vector<32xf32>
    %162 = vector.multi_reduction <add>, %161, %cst_72 [1] : vector<32x32xf32> to vector<32xf32>
    %163 = vector.shape_cast %162 : vector<32xf32> to vector<32x1xf32>
    %cst_73 = arith.constant 3.200000e+01 : f32
    %164 = vector.broadcast %cst_73 : f32 to vector<32x1xf32>
    %165 = arith.divf %163, %164 : vector<32x1xf32>
    %cst_74 = arith.constant 9.99999996E-13 : f32
    %166 = vector.broadcast %cst_74 : f32 to vector<32x1xf32>
    %167 = arith.addf %165, %166 : vector<32x1xf32>
    %168 = math.rsqrt %167 : vector<32x1xf32>
    %169 = vector.broadcast %168 : vector<32x1xf32> to vector<32x32xf32>
    %170 = arith.mulf %160, %169 : vector<32x32xf32>
    %171 = vector.broadcast %152 : vector<1x32xf32> to vector<32x32xf32>
    %172 = arith.mulf %171, %170 : vector<32x32xf32>
    %173 = vector.broadcast %154 : vector<1x32xf32> to vector<32x32xf32>
    %174 = arith.addf %172, %173 : vector<32x32xf32>
    %175 = arith.truncf %174 : vector<32x32xf32> to vector<32x32xbf16>
    %c0_75 = arith.constant 0 : index
    %c0_76 = arith.constant 0 : index
    %c0_77 = arith.constant 0 : index
    %176 = vector.load %arg15[%c0_75, %c0_76, %c0_77] : memref<1x32x128xbf16, #tpu.memory_space<vmem>>, vector<1x32x128xbf16>
    %177 = vector.shape_cast %176 : vector<1x32x128xbf16> to vector<32x128xbf16>
    %cst_78 = arith.constant dense<0.000000e+00> : vector<32x128xf32>
    %178 = tpu.matmul %175, %177, %cst_78 {dimension_numbers = #tpu.dot_dimension_numbers<[1], [0], [0], [1], [0, 0, 1, 1], [], []>} : vector<32x32xbf16>, vector<32x128xbf16>, vector<32x128xf32> -> vector<32x128xf32>
    %c0_79 = arith.constant 0 : index
    %c0_80 = arith.constant 0 : index
    %c0_81 = arith.constant 0 : index
    %179 = vector.load %arg16[%c0_79, %c0_80, %c0_81] : memref<1x1x128xf32, #tpu.memory_space<vmem>>, vector<1x1x128xf32>
    %180 = vector.shape_cast %179 : vector<1x1x128xf32> to vector<1x128xf32>
    %181 = vector.broadcast %180 : vector<1x128xf32> to vector<32x128xf32>
    %182 = arith.addf %178, %181 : vector<32x128xf32>
    %cst_82 = arith.constant 1.702000e+00 : f32
    %183 = vector.broadcast %cst_82 : f32 to vector<32x128xf32>
    %184 = arith.mulf %183, %182 : vector<32x128xf32>
    %185 = arith.negf %184 : vector<32x128xf32>
    %186 = math.exp %185 : vector<32x128xf32>
    %cst_83 = arith.constant 1.000000e+00 : f32
    %187 = vector.broadcast %cst_83 : f32 to vector<32x128xf32>
    %188 = arith.addf %187, %186 : vector<32x128xf32>
    %189 = arith.divf %187, %188 : vector<32x128xf32>
    %190 = arith.mulf %182, %189 : vector<32x128xf32>
    %191 = arith.truncf %190 : vector<32x128xf32> to vector<32x128xbf16>
    %c0_84 = arith.constant 0 : index
    %c0_85 = arith.constant 0 : index
    %c0_86 = arith.constant 0 : index
    %192 = vector.load %arg17[%c0_84, %c0_85, %c0_86] : memref<1x128x32xbf16, #tpu.memory_space<vmem>>, vector<1x128x32xbf16>
    %193 = vector.shape_cast %192 : vector<1x128x32xbf16> to vector<128x32xbf16>
    %cst_87 = arith.constant dense<0.000000e+00> : vector<32x32xf32>
    %194 = tpu.matmul %191, %193, %cst_87 {dimension_numbers = #tpu.dot_dimension_numbers<[1], [0], [0], [1], [0, 0, 1, 1], [], []>} : vector<32x128xbf16>, vector<128x32xbf16>, vector<32x32xf32> -> vector<32x32xf32>
    %c0_88 = arith.constant 0 : index
    %c0_89 = arith.constant 0 : index
    %c0_90 = arith.constant 0 : index
    %195 = vector.load %arg18[%c0_88, %c0_89, %c0_90] : memref<1x1x32xf32, #tpu.memory_space<vmem>>, vector<1x1x32xf32>
    %196 = vector.shape_cast %195 : vector<1x1x32xf32> to vector<1x32xf32>
    %197 = vector.broadcast %196 : vector<1x32xf32> to vector<32x32xf32>
    %198 = arith.addf %194, %197 : vector<32x32xf32>
    %199 = arith.addf %150, %198 : vector<32x32xf32>
    %200 = vector.shape_cast %199 : vector<32x32xf32> to vector<4x8x32xf32>
    %c0_91 = arith.constant 0 : index
    %c0_92 = arith.constant 0 : index
    %c0_93 = arith.constant 0 : index
    %201 = vector.load %arg19[%c0_91, %c0_92, %c0_93] : memref<4x8x32xf32, #tpu.memory_space<vmem>>, vector<4x8x32xf32>
    tpu.vector_store %arg19[%c0_91, %c0_92, %c0_93], %200 {strides = array<i32>} : memref<4x8x32xf32, #tpu.memory_space<vmem>>, vector<4x8x32xf32>,
    return
  }
  func.func @transform_0(%arg0: i32, %arg1: i32) -> (i32, i32, i32) {
    %c0_i32 = arith.constant 0 : i32
    %c0_i32_0 = arith.constant 0 : i32
    %c0_i32_1 = arith.constant 0 : i32
    return %arg0, %c0_i32, %c0_i32_0 : i32, i32, i32
  }
  func.func @transform_1(%arg0: i32, %arg1: i32) -> (i32, i32, i32) {
    %c0_i32 = arith.constant 0 : i32
    %c0_i32_0 = arith.constant 0 : i32
    %c0_i32_1 = arith.constant 0 : i32
    return %arg1, %c0_i32, %c0_i32_0 : i32, i32, i32
  }
  func.func @transform_2(%arg0: i32, %arg1: i32) -> (i32, i32, i32) {
    %c0_i32 = arith.constant 0 : i32
    %c0_i32_0 = arith.constant 0 : i32
    %c0_i32_1 = arith.constant 0 : i32
    return %arg1, %c0_i32, %c0_i32_0 : i32, i32, i32
  }
  func.func @transform_3(%arg0: i32, %arg1: i32) -> (i32, i32, i32) {
    %c0_i32 = arith.constant 0 : i32
    %c0_i32_0 = arith.constant 0 : i32
    %c0_i32_1 = arith.constant 0 : i32
    return %arg1, %c0_i32, %c0_i32_0 : i32, i32, i32
  }
  func.func @transform_4(%arg0: i32, %arg1: i32) -> (i32, i32, i32) {
    %c0_i32 = arith.constant 0 : i32
    %c0_i32_0 = arith.constant 0 : i32
    %c0_i32_1 = arith.constant 0 : i32
    return %arg1, %c0_i32, %c0_i32_0 : i32, i32, i32
  }
  func.func @transform_5(%arg0: i32, %arg1: i32) -> (i32, i32, i32) {
    %c0_i32 = arith.constant 0 : i32
    %c0_i32_0 = arith.constant 0 : i32
    %c0_i32_1 = arith.constant 0 : i32
    return %arg1, %c0_i32, %c0_i32_0 : i32, i32, i32
  }
  func.func @transform_6(%arg0: i32, %arg1: i32) -> (i32, i32, i32) {
    %c0_i32 = arith.constant 0 : i32
    %c0_i32_0 = arith.constant 0 : i32
    %c0_i32_1 = arith.constant 0 : i32
    return %arg1, %c0_i32, %c0_i32_0 : i32, i32, i32
  }
  func.func @transform_7(%arg0: i32, %arg1: i32) -> (i32, i32, i32) {
    %c0_i32 = arith.constant 0 : i32
    %c0_i32_0 = arith.constant 0 : i32
    %c0_i32_1 = arith.constant 0 : i32
    return %arg1, %c0_i32, %c0_i32_0 : i32, i32, i32
  }
  func.func @transform_8(%arg0: i32, %arg1: i32) -> (i32, i32, i32) {
    %c0_i32 = arith.constant 0 : i32
    %c0_i32_0 = arith.constant 0 : i32
    %c0_i32_1 = arith.constant 0 : i32
    return %arg1, %c0_i32, %c0_i32_0 : i32, i32, i32
  }
  func.func @transform_9(%arg0: i32, %arg1: i32) -> (i32, i32, i32) {
    %c0_i32 = arith.constant 0 : i32
    %c0_i32_0 = arith.constant 0 : i32
    %c0_i32_1 = arith.constant 0 : i32
    return %arg1, %c0_i32, %c0_i32_0 : i32, i32, i32
  }
  func.func @transform_10(%arg0: i32, %arg1: i32) -> (i32, i32, i32) {
    %c0_i32 = arith.constant 0 : i32
    %c0_i32_0 = arith.constant 0 : i32
    %c0_i32_1 = arith.constant 0 : i32
    return %arg1, %c0_i32, %c0_i32_0 : i32, i32, i32
  }
  func.func @transform_11(%arg0: i32, %arg1: i32) -> (i32, i32, i32) {
    %c0_i32 = arith.constant 0 : i32
    %c0_i32_0 = arith.constant 0 : i32
    %c0_i32_1 = arith.constant 0 : i32
    return %arg1, %c0_i32, %c0_i32_0 : i32, i32, i32
  }
  func.func @transform_12(%arg0: i32, %arg1: i32) -> (i32, i32, i32) {
    %c0_i32 = arith.constant 0 : i32
    %c0_i32_0 = arith.constant 0 : i32
    %c0_i32_1 = arith.constant 0 : i32
    return %arg1, %c0_i32, %c0_i32_0 : i32, i32, i32
  }
  func.func @transform_13(%arg0: i32, %arg1: i32) -> (i32, i32, i32) {
    %c0_i32 = arith.constant 0 : i32
    %c0_i32_0 = arith.constant 0 : i32
    %c0_i32_1 = arith.constant 0 : i32
    return %arg1, %c0_i32, %c0_i32_0 : i32, i32, i32
  }
  func.func @transform_14(%arg0: i32, %arg1: i32) -> (i32, i32, i32) {
    %c0_i32 = arith.constant 0 : i32
    %c0_i32_0 = arith.constant 0 : i32
    %c0_i32_1 = arith.constant 0 : i32
    return %arg1, %c0_i32, %c0_i32_0 : i32, i32, i32
  }
  func.func @transform_15(%arg0: i32, %arg1: i32) -> (i32, i32, i32) {
    %c0_i32 = arith.constant 0 : i32
    %c0_i32_0 = arith.constant 0 : i32
    %c0_i32_1 = arith.constant 0 : i32
    return %arg1, %c0_i32, %c0_i32_0 : i32, i32, i32
  }
  func.func @transform_16(%arg0: i32, %arg1: i32) -> (i32, i32, i32) {
    %c0_i32 = arith.constant 0 : i32
    %c0_i32_0 = arith.constant 0 : i32
    %c0_i32_1 = arith.constant 0 : i32
    return %arg1, %c0_i32, %c0_i32_0 : i32, i32, i32
  }
  func.func @transform_17(%arg0: i32, %arg1: i32) -> (i32, i32, i32) {
    %c0_i32 = arith.constant 0 : i32
    %c0_i32_0 = arith.constant 0 : i32
    %c0_i32_1 = arith.constant 0 : i32
    return %arg0, %c0_i32, %c0_i32_0 : i32, i32, i32
  }
}

</mosaic_0001>

<llo_original>
// kernel: tpu_custom_call.1
$region0: #{tpu_custom_call.1}
  #allocation0 [shape = 'u32[]', space=smem, size = 0x4, offset = 0x4, fixed_abs, tag = 'smem constant byte address 0x4 - core index']
  #allocation1 [shape = 'u32[144,128]{1,0:T(1,128)}', space=vmem, size = 0x12000, scoped, tag = 'internal scratch']
  #allocation2 [shape = 'bf16[32,32]{1,0:T(8,128)(2,1)}', space=vmem, size = 0x2000, scoped, tag = 'scratch operand']
  %s0 = inlined_call_operand.vmem [shape: f32[4,8,32], index: 0, kind: input, shape index: {}]
  %s1 = inlined_call_operand.hbm [shape: f32[2,1,32], index: 1, kind: input, shape index: {}]
  %s2 = inlined_call_operand.vmem [shape: f32[2,1,32], index: 2, kind: input, shape index: {}]
  %s3 = inlined_call_operand.vmem [shape: bf16[2,32,32], index: 3, kind: input, shape index: {}]
  %s4 = inlined_call_operand.vmem [shape: f32[2,1,32], index: 4, kind: input, shape index: {}]
  %s5 = inlined_call_operand.vmem [shape: bf16[2,32,32], index: 5, kind: input, shape index: {}]
  %s6 = inlined_call_operand.vmem [shape: f32[2,1,32], index: 6, kind: input, shape index: {}]
  %s7 = inlined_call_operand.vmem [shape: bf16[2,32,32], index: 7, kind: input, shape index: {}]
  %s8 = inlined_call_operand.vmem [shape: f32[2,1,32], index: 8, kind: input, shape index: {}]
  %s9 = inlined_call_operand.vmem [shape: bf16[2,32,32], index: 9, kind: input, shape index: {}]
  %s10 = inlined_call_operand.vmem [shape: f32[2,1,32], index: 10, kind: input, shape index: {}]
  %s11 = inlined_call_operand.vmem [shape: f32[2,1,32], index: 11, kind: input, shape index: {}]
  %s12 = inlined_call_operand.vmem [shape: f32[2,1,32], index: 12, kind: input, shape index: {}]
  %s13 = inlined_call_operand.hbm [shape: bf16[2,32,128], index: 13, kind: input, shape index: {}]
  %s14 = inlined_call_operand.vmem [shape: f32[2,1,128], index: 14, kind: input, shape index: {}]
  %s15 = inlined_call_operand.vmem [shape: bf16[2,128,32], index: 15, kind: input, shape index: {}]
  %s16 = inlined_call_operand.vmem [shape: f32[2,1,32], index: 16, kind: input, shape index: {}]
  %s17 = inlined_call_operand.hbm [shape: f32[4,8,32], index: 17, kind: output, shape index: {}]
  %s18 = sld [smem:[#allocation0]]
  $region113: #{tpu_custom_call.1} parent=0
    _
  %s20 = ssub.s32 1, %s18
  %s21 = scalar_select 0, %s20, %s18
  $region1: #{tpu_custom_call.1} parent=0
    #allocation3 [shape = 'u8[1024]{0}', space=vmem, size = 0x400, scoped, tag = 'input window, operand 1']
    #allocation4 [shape = 's32[2]{0}', space=sflag, size = 0x8, scoped, tag = 'scoped memory for tpu_custom_call.1']
    #allocation5 [shape = 's32[2]{0}', space=sflag, size = 0x8, scoped, tag = 'scoped memory for tpu_custom_call.1']
    #allocation6 [shape = 'u8[16384]{0}', space=vmem, size = 0x4000, scoped, tag = 'input window, operand 13']
    #allocation7 [shape = 's32[2]{0}', space=sflag, size = 0x8, scoped, tag = 'scoped memory for tpu_custom_call.1']
    #allocation8 [shape = 'u8[16384]{0}', space=vmem, size = 0x4000, scoped, tag = 'output window, operand 0, single buffered']
    %22 = vsyncpa [#allocation4], 0
    %s23 = scalar_lea.sflag [#allocation4], 1
    %24 = vsyncpa %s23, 0
    %25 = vsyncpa [#allocation7], 0
    %s26 = scalar_lea.sflag [#allocation7], 1
    %27 = vsyncpa %s26, 0
    %28 = vsyncpa [#allocation5], 0
    loop: start=0, step=1, limit=4
    $region2: #{tpu_custom_call.1} parent=1 // loop_pre_header
      _
    $region3: #{tpu_custom_call.1} parent=1 // loop_header
      %s30 = sphi 0, %s34
      %p31 = scmp.ge.s32.totalorder %s30, 4
      %s37 = sphi 0, %s49
      %s38 = sphi 0, %s45
      %s39 = sphi 0, %s37
      %s40 = sphi 0, %s38
      %s41 = sphi 0, %s39
      %s42 = sphi 0, %s40
      %s52 = sphi 0, %s54
      %s55 = sphi 0, %s52
      %s56 = sphi 0, %s55
      %s72 = sphi 0, %s56
      %s78 = sphi 0, %s80
      %s81 = sphi 0, %s78
      %s82 = sphi 0, %s81
      %s98 = sphi 0, %s82
      %s104 = sphi 0, %s106
      %s107 = sphi 0, %s104
      %s108 = sphi 0, %s107
      %s124 = sphi 0, %s108
      %s130 = sphi 0, %s132
      %s133 = sphi 0, %s130
      %s134 = sphi 0, %s133
      %s150 = sphi 0, %s134
      %s156 = sphi 0, %s158
      %s159 = sphi 0, %s156
      %s160 = sphi 0, %s159
      %s176 = sphi 0, %s160
      %s182 = sphi 0, %s184
      %s185 = sphi 0, %s182
      %s186 = sphi 0, %s185
      %s202 = sphi 0, %s186
      %s208 = sphi 0, %s210
      %s211 = sphi 0, %s208
      %s212 = sphi 0, %s211
      %s228 = sphi 0, %s212
      %s234 = sphi 0, %s236
      %s237 = sphi 0, %s234
      %s238 = sphi 0, %s237
      %s254 = sphi 0, %s238
      %s260 = sphi 0, %s262
      %s263 = sphi 0, %s260
      %s264 = sphi 0, %s263
      %s280 = sphi 0, %s264
      %s286 = sphi 0, %s288
      %s289 = sphi 0, %s286
      %s290 = sphi 0, %s289
      %s306 = sphi 0, %s290
      %s312 = sphi 0, %s314
      %s315 = sphi 0, %s312
      %s316 = sphi 0, %s315
      %s332 = sphi 0, %s316
      %s338 = sphi 0, %s340
      %s341 = sphi 0, %s338
      %s342 = sphi 0, %s341
      %s358 = sphi 0, %s342
      %s364 = sphi 0, %s366
      %s367 = sphi 0, %s364
      %s368 = sphi 0, %s367
      %s384 = sphi 0, %s368
      %s390 = sphi 0, %s392
      %s393 = sphi 0, %s390
      %s394 = sphi 0, %s393
      %s410 = sphi 0, %s394
      %s416 = sphi 0, %s418
      %s419 = sphi 0, %s416
      %s420 = sphi 0, %s419
      %s436 = sphi 0, %s420
      %s442 = sphi 0, %s444
      %s445 = sphi 0, %s442
      %s446 = sphi 0, %s445
      %s462 = sphi 0, %s446
      %s468 = sphi 0, %s470
      %s471 = sphi 0, %s468
      %s472 = sphi 0, %s471
      %s488 = sphi 0, %s472
      %s494 = sphi 0, %s496
      %s497 = sphi 0, %s494
      %s498 = sphi 0, %s497
      %s514 = sphi 0, %s498
    $region4: #{tpu_custom_call.1} parent=1 // loop_header_branch
      %33 = sbr.rel (%p31) target = $region8
    $region5: #{tpu_custom_call.1} parent=1 // loop_body
      %s35 = ssub.s32 %s30, 1
      %s36 = ssub.s32 %s30, 2
      %s43 = sadd.s32 1, %s38
      %p44 = scmp.ge.s32.totalorder %s43, 2
      %s45 = scalar_select %p44, 0, %s43
      %s46 = sadd.s32 1, %s37
      %s47 = scalar_select %p44, %s46, %s37
      %p48 = scmp.ge.s32.totalorder %s47, 1
      %s49 = scalar_select %p48, 0, %s47
      %s50 = ssub.s32 %s37, %s49
      %p51 = scmp.eq.s32.totalorder %s50, 0
      %s53 = sadd.s32 %s52, 1
      %s54 = scalar_select %p51, %s52, %s53
      %p57 = pneg %p51
      %p58 = scmp.eq.s32.totalorder %s30, 1
      %p59 = por %p57, %p58
      %p60 = scmp.ne.s32.totalorder %s52, %s55
      %p61 = scmp.eq.s32.totalorder %s30, 0
      %p62 = por %p60, %p61
      %p63 = scmp.ne.s32.totalorder %s52, %s55
      %p64 = scmp.eq.s32.totalorder %s35, 1
      %p65 = por %p63, %p64
      %p66 = scmp.ne.s32.totalorder %s55, %s56
      %p67 = scmp.eq.s32.totalorder %s35, 0
      %p68 = por %p66, %p67
      %p69 = scmp.ne.s32.totalorder %s55, %s56
      %p70 = scmp.eq.s32.totalorder %s36, 1
      %p71 = por %p69, %p70
      %p73 = scmp.ne.s32.totalorder %s56, %s72
      %p74 = scmp.eq.s32.totalorder %s36, 0
      %p75 = por %p73, %p74
      %s76 = ssub.s32 %s38, %s45
      %p77 = scmp.eq.s32.totalorder %s76, 0
      %s79 = sadd.s32 %s78, 1
      %s80 = scalar_select %p77, %s78, %s79
      %p83 = pneg %p77
      %p84 = scmp.eq.s32.totalorder %s30, 1
      %p85 = por %p83, %p84
      %p86 = scmp.ne.s32.totalorder %s78, %s81
      %p87 = scmp.eq.s32.totalorder %s30, 0
      %p88 = por %p86, %p87
      %p89 = scmp.ne.s32.totalorder %s78, %s81
      %p90 = scmp.eq.s32.totalorder %s35, 1
      %p91 = por %p89, %p90
      %p92 = scmp.ne.s32.totalorder %s81, %s82
      %p93 = scmp.eq.s32.totalorder %s35, 0
      %p94 = por %p92, %p93
      %p95 = scmp.ne.s32.totalorder %s81, %s82
      %p96 = scmp.eq.s32.totalorder %s36, 1
      %p97 = por %p95, %p96
      %p99 = scmp.ne.s32.totalorder %s82, %s98
      %p100 = scmp.eq.s32.totalorder %s36, 0
      %p101 = por %p99, %p100
      %s102 = ssub.s32 %s38, %s45
      %p103 = scmp.eq.s32.totalorder %s102, 0
      %s105 = sadd.s32 %s104, 1
      %s106 = scalar_select %p103, %s104, %s105
      %p109 = pneg %p103
      %p110 = scmp.eq.s32.totalorder %s30, 1
      %p111 = por %p109, %p110
      %p112 = scmp.ne.s32.totalorder %s104, %s107
      %p113 = scmp.eq.s32.totalorder %s30, 0
      %p114 = por %p112, %p113
      %p115 = scmp.ne.s32.totalorder %s104, %s107
      %p116 = scmp.eq.s32.totalorder %s35, 1
      %p117 = por %p115, %p116
      %p118 = scmp.ne.s32.totalorder %s107, %s108
      %p119 = scmp.eq.s32.totalorder %s35, 0
      %p120 = por %p118, %p119
      %p121 = scmp.ne.s32.totalorder %s107, %s108
      %p122 = scmp.eq.s32.totalorder %s36, 1
      %p123 = por %p121, %p122
      %p125 = scmp.ne.s32.totalorder %s108, %s124
      %p126 = scmp.eq.s32.totalorder %s36, 0
      %p127 = por %p125, %p126
      %s128 = ssub.s32 %s38, %s45
      %p129 = scmp.eq.s32.totalorder %s128, 0
      %s131 = sadd.s32 %s130, 1
      %s132 = scalar_select %p129, %s130, %s131
      %p135 = pneg %p129
      %p136 = scmp.eq.s32.totalorder %s30, 1
      %p137 = por %p135, %p136
      %p138 = scmp.ne.s32.totalorder %s130, %s133
      %p139 = scmp.eq.s32.totalorder %s30, 0
      %p140 = por %p138, %p139
      %p141 = scmp.ne.s32.totalorder %s130, %s133
      %p142 = scmp.eq.s32.totalorder %s35, 1
      %p143 = por %p141, %p142
      %p144 = scmp.ne.s32.totalorder %s133, %s134
      %p145 = scmp.eq.s32.totalorder %s35, 0
      %p146 = por %p144, %p145
      %p147 = scmp.ne.s32.totalorder %s133, %s134
      %p148 = scmp.eq.s32.totalorder %s36, 1
      %p149 = por %p147, %p148
      %p151 = scmp.ne.s32.totalorder %s134, %s150
      %p152 = scmp.eq.s32.totalorder %s36, 0
      %p153 = por %p151, %p152
      %s154 = ssub.s32 %s38, %s45
      %p155 = scmp.eq.s32.totalorder %s154, 0
      %s157 = sadd.s32 %s156, 1
      %s158 = scalar_select %p155, %s156, %s157
      %p161 = pneg %p155
      %p162 = scmp.eq.s32.totalorder %s30, 1
      %p163 = por %p161, %p162
      %p164 = scmp.ne.s32.totalorder %s156, %s159
      %p165 = scmp.eq.s32.totalorder %s30, 0
      %p166 = por %p164, %p165
      %p167 = scmp.ne.s32.totalorder %s156, %s159
      %p168 = scmp.eq.s32.totalorder %s35, 1
      %p169 = por %p167, %p168
      %p170 = scmp.ne.s32.totalorder %s159, %s160
      %p171 = scmp.eq.s32.totalorder %s35, 0
      %p172 = por %p170, %p171
      %p173 = scmp.ne.s32.totalorder %s159, %s160
      %p174 = scmp.eq.s32.totalorder %s36, 1
      %p175 = por %p173, %p174
      %p177 = scmp.ne.s32.totalorder %s160, %s176
      %p178 = scmp.eq.s32.totalorder %s36, 0
      %p179 = por %p177, %p178
      %s180 = ssub.s32 %s38, %s45
      %p181 = scmp.eq.s32.totalorder %s180, 0
      %s183 = sadd.s32 %s182, 1
      %s184 = scalar_select %p181, %s182, %s183
      %p187 = pneg %p181
      %p188 = scmp.eq.s32.totalorder %s30, 1
      %p189 = por %p187, %p188
      %p190 = scmp.ne.s32.totalorder %s182, %s185
      %p191 = scmp.eq.s32.totalorder %s30, 0
      %p192 = por %p190, %p191
      %p193 = scmp.ne.s32.totalorder %s182, %s185
      %p194 = scmp.eq.s32.totalorder %s35, 1
      %p195 = por %p193, %p194
      %p196 = scmp.ne.s32.totalorder %s185, %s186
      %p197 = scmp.eq.s32.totalorder %s35, 0
      %p198 = por %p196, %p197
      %p199 = scmp.ne.s32.totalorder %s185, %s186
      %p200 = scmp.eq.s32.totalorder %s36, 1
      %p201 = por %p199, %p200
      %p203 = scmp.ne.s32.totalorder %s186, %s202
      %p204 = scmp.eq.s32.totalorder %s36, 0
      %p205 = por %p203, %p204
      %s206 = ssub.s32 %s38, %s45
      %p207 = scmp.eq.s32.totalorder %s206, 0
      %s209 = sadd.s32 %s208, 1
      %s210 = scalar_select %p207, %s208, %s209
      %p213 = pneg %p207
      %p214 = scmp.eq.s32.totalorder %s30, 1
      %p215 = por %p213, %p214
      %p216 = scmp.ne.s32.totalorder %s208, %s211
      %p217 = scmp.eq.s32.totalorder %s30, 0
      %p218 = por %p216, %p217
      %p219 = scmp.ne.s32.totalorder %s208, %s211
      %p220 = scmp.eq.s32.totalorder %s35, 1
      %p221 = por %p219, %p220
      %p222 = scmp.ne.s32.totalorder %s211, %s212
      %p223 = scmp.eq.s32.totalorder %s35, 0
      %p224 = por %p222, %p223
      %p225 = scmp.ne.s32.totalorder %s211, %s212
      %p226 = scmp.eq.s32.totalorder %s36, 1
      %p227 = por %p225, %p226
      %p229 = scmp.ne.s32.totalorder %s212, %s228
      %p230 = scmp.eq.s32.totalorder %s36, 0
      %p231 = por %p229, %p230
      %s232 = ssub.s32 %s38, %s45
      %p233 = scmp.eq.s32.totalorder %s232, 0
      %s235 = sadd.s32 %s234, 1
      %s236 = scalar_select %p233, %s234, %s235
      %p239 = pneg %p233
      %p240 = scmp.eq.s32.totalorder %s30, 1
      %p241 = por %p239, %p240
      %p242 = scmp.ne.s32.totalorder %s234, %s237
      %p243 = scmp.eq.s32.totalorder %s30, 0
      %p244 = por %p242, %p243
      %p245 = scmp.ne.s32.totalorder %s234, %s237
      %p246 = scmp.eq.s32.totalorder %s35, 1
      %p247 = por %p245, %p246
      %p248 = scmp.ne.s32.totalorder %s237, %s238
      %p249 = scmp.eq.s32.totalorder %s35, 0
      %p250 = por %p248, %p249
      %p251 = scmp.ne.s32.totalorder %s237, %s238
      %p252 = scmp.eq.s32.totalorder %s36, 1
      %p253 = por %p251, %p252
      %p255 = scmp.ne.s32.totalorder %s238, %s254
      %p256 = scmp.eq.s32.totalorder %s36, 0
      %p257 = por %p255, %p256
      %s258 = ssub.s32 %s38, %s45
      %p259 = scmp.eq.s32.totalorder %s258, 0
      %s261 = sadd.s32 %s260, 1
      %s262 = scalar_select %p259, %s260, %s261
      %p265 = pneg %p259
      %p266 = scmp.eq.s32.totalorder %s30, 1
      %p267 = por %p265, %p266
      %p268 = scmp.ne.s32.totalorder %s260, %s263
      %p269 = scmp.eq.s32.totalorder %s30, 0
      %p270 = por %p268, %p269
      %p271 = scmp.ne.s32.totalorder %s260, %s263
      %p272 = scmp.eq.s32.totalorder %s35, 1
      %p273 = por %p271, %p272
      %p274 = scmp.ne.s32.totalorder %s263, %s264
      %p275 = scmp.eq.s32.totalorder %s35, 0
      %p276 = por %p274, %p275
      %p277 = scmp.ne.s32.totalorder %s263, %s264
      %p278 = scmp.eq.s32.totalorder %s36, 1
      %p279 = por %p277, %p278
      %p281 = scmp.ne.s32.totalorder %s264, %s280
      %p282 = scmp.eq.s32.totalorder %s36, 0
      %p283 = por %p281, %p282
      %s284 = ssub.s32 %s38, %s45
      %p285 = scmp.eq.s32.totalorder %s284, 0
      %s287 = sadd.s32 %s286, 1
      %s288 = scalar_select %p285, %s286, %s287
      %p291 = pneg %p285
      %p292 = scmp.eq.s32.totalorder %s30, 1
      %p293 = por %p291, %p292
      %p294 = scmp.ne.s32.totalorder %s286, %s289
      %p295 = scmp.eq.s32.totalorder %s30, 0
      %p296 = por %p294, %p295
      %p297 = scmp.ne.s32.totalorder %s286, %s289
      %p298 = scmp.eq.s32.totalorder %s35, 1
      %p299 = por %p297, %p298
      %p300 = scmp.ne.s32.totalorder %s289, %s290
      %p301 = scmp.eq.s32.totalorder %s35, 0
      %p302 = por %p300, %p301
      %p303 = scmp.ne.s32.totalorder %s289, %s290
      %p304 = scmp.eq.s32.totalorder %s36, 1
      %p305 = por %p303, %p304
      %p307 = scmp.ne.s32.totalorder %s290, %s306
      %p308 = scmp.eq.s32.totalorder %s36, 0
      %p309 = por %p307, %p308
      %s310 = ssub.s32 %s38, %s45
      %p311 = scmp.eq.s32.totalorder %s310, 0
      %s313 = sadd.s32 %s312, 1
      %s314 = scalar_select %p311, %s312, %s313
      %p317 = pneg %p311
      %p318 = scmp.eq.s32.totalorder %s30, 1
      %p319 = por %p317, %p318
      %p320 = scmp.ne.s32.totalorder %s312, %s315
      %p321 = scmp.eq.s32.totalorder %s30, 0
      %p322 = por %p320, %p321
      %p323 = scmp.ne.s32.totalorder %s312, %s315
      %p324 = scmp.eq.s32.totalorder %s35, 1
      %p325 = por %p323, %p324
      %p326 = scmp.ne.s32.totalorder %s315, %s316
      %p327 = scmp.eq.s32.totalorder %s35, 0
      %p328 = por %p326, %p327
      %p329 = scmp.ne.s32.totalorder %s315, %s316
      %p330 = scmp.eq.s32.totalorder %s36, 1
      %p331 = por %p329, %p330
      %p333 = scmp.ne.s32.totalorder %s316, %s332
      %p334 = scmp.eq.s32.totalorder %s36, 0
      %p335 = por %p333, %p334
      %s336 = ssub.s32 %s38, %s45
      %p337 = scmp.eq.s32.totalorder %s336, 0
      %s339 = sadd.s32 %s338, 1
      %s340 = scalar_select %p337, %s338, %s339
      %p343 = pneg %p337
      %p344 = scmp.eq.s32.totalorder %s30, 1
      %p345 = por %p343, %p344
      %p346 = scmp.ne.s32.totalorder %s338, %s341
      %p347 = scmp.eq.s32.totalorder %s30, 0
      %p348 = por %p346, %p347
      %p349 = scmp.ne.s32.totalorder %s338, %s341
      %p350 = scmp.eq.s32.totalorder %s35, 1
      %p351 = por %p349, %p350
      %p352 = scmp.ne.s32.totalorder %s341, %s342
      %p353 = scmp.eq.s32.totalorder %s35, 0
      %p354 = por %p352, %p353
      %p355 = scmp.ne.s32.totalorder %s341, %s342
      %p356 = scmp.eq.s32.totalorder %s36, 1
      %p357 = por %p355, %p356
      %p359 = scmp.ne.s32.totalorder %s342, %s358
      %p360 = scmp.eq.s32.totalorder %s36, 0
      %p361 = por %p359, %p360
      %s362 = ssub.s32 %s38, %s45
      %p363 = scmp.eq.s32.totalorder %s362, 0
      %s365 = sadd.s32 %s364, 1
      %s366 = scalar_select %p363, %s364, %s365
      %p369 = pneg %p363
      %p370 = scmp.eq.s32.totalorder %s30, 1
      %p371 = por %p369, %p370
      %p372 = scmp.ne.s32.totalorder %s364, %s367
      %p373 = scmp.eq.s32.totalorder %s30, 0
      %p374 = por %p372, %p373
      %p375 = scmp.ne.s32.totalorder %s364, %s367
      %p376 = scmp.eq.s32.totalorder %s35, 1
      %p377 = por %p375, %p376
      %p378 = scmp.ne.s32.totalorder %s367, %s368
      %p379 = scmp.eq.s32.totalorder %s35, 0
      %p380 = por %p378, %p379
      %p381 = scmp.ne.s32.totalorder %s367, %s368
      %p382 = scmp.eq.s32.totalorder %s36, 1
      %p383 = por %p381, %p382
      %p385 = scmp.ne.s32.totalorder %s368, %s384
      %p386 = scmp.eq.s32.totalorder %s36, 0
      %p387 = por %p385, %p386
      %s388 = ssub.s32 %s38, %s45
      %p389 = scmp.eq.s32.totalorder %s388, 0
      %s391 = sadd.s32 %s390, 1
      %s392 = scalar_select %p389, %s390, %s391
      %p395 = pneg %p389
      %p396 = scmp.eq.s32.totalorder %s30, 1
      %p397 = por %p395, %p396
      %p398 = scmp.ne.s32.totalorder %s390, %s393
      %p399 = scmp.eq.s32.totalorder %s30, 0
      %p400 = por %p398, %p399
      %p401 = scmp.ne.s32.totalorder %s390, %s393
      %p402 = scmp.eq.s32.totalorder %s35, 1
      %p403 = por %p401, %p402
      %p404 = scmp.ne.s32.totalorder %s393, %s394
      %p405 = scmp.eq.s32.totalorder %s35, 0
      %p406 = por %p404, %p405
      %p407 = scmp.ne.s32.totalorder %s393, %s394
      %p408 = scmp.eq.s32.totalorder %s36, 1
      %p409 = por %p407, %p408
      %p411 = scmp.ne.s32.totalorder %s394, %s410
      %p412 = scmp.eq.s32.totalorder %s36, 0
      %p413 = por %p411, %p412
      %s414 = ssub.s32 %s38, %s45
      %p415 = scmp.eq.s32.totalorder %s414, 0
      %s417 = sadd.s32 %s416, 1
      %s418 = scalar_select %p415, %s416, %s417
      %p421 = pneg %p415
      %p422 = scmp.eq.s32.totalorder %s30, 1
      %p423 = por %p421, %p422
      %p424 = scmp.ne.s32.totalorder %s416, %s419
      %p425 = scmp.eq.s32.totalorder %s30, 0
      %p426 = por %p424, %p425
      %p427 = scmp.ne.s32.totalorder %s416, %s419
      %p428 = scmp.eq.s32.totalorder %s35, 1
      %p429 = por %p427, %p428
      %p430 = scmp.ne.s32.totalorder %s419, %s420
      %p431 = scmp.eq.s32.totalorder %s35, 0
      %p432 = por %p430, %p431
      %p433 = scmp.ne.s32.totalorder %s419, %s420
      %p434 = scmp.eq.s32.totalorder %s36, 1
      %p435 = por %p433, %p434
      %p437 = scmp.ne.s32.totalorder %s420, %s436
      %p438 = scmp.eq.s32.totalorder %s36, 0
      %p439 = por %p437, %p438
      %s440 = ssub.s32 %s38, %s45
      %p441 = scmp.eq.s32.totalorder %s440, 0
      %s443 = sadd.s32 %s442, 1
      %s444 = scalar_select %p441, %s442, %s443
      %p447 = pneg %p441
      %p448 = scmp.eq.s32.totalorder %s30, 1
      %p449 = por %p447, %p448
      %p450 = scmp.ne.s32.totalorder %s442, %s445
      %p451 = scmp.eq.s32.totalorder %s30, 0
      %p452 = por %p450, %p451
      %p453 = scmp.ne.s32.totalorder %s442, %s445
      %p454 = scmp.eq.s32.totalorder %s35, 1
      %p455 = por %p453, %p454
      %p456 = scmp.ne.s32.totalorder %s445, %s446
      %p457 = scmp.eq.s32.totalorder %s35, 0
      %p458 = por %p456, %p457
      %p459 = scmp.ne.s32.totalorder %s445, %s446
      %p460 = scmp.eq.s32.totalorder %s36, 1
      %p461 = por %p459, %p460
      %p463 = scmp.ne.s32.totalorder %s446, %s462
      %p464 = scmp.eq.s32.totalorder %s36, 0
      %p465 = por %p463, %p464
      %s466 = ssub.s32 %s38, %s45
      %p467 = scmp.eq.s32.totalorder %s466, 0
      %s469 = sadd.s32 %s468, 1
      %s470 = scalar_select %p467, %s468, %s469
      %p473 = pneg %p467
      %p474 = scmp.eq.s32.totalorder %s30, 1
      %p475 = por %p473, %p474
      %p476 = scmp.ne.s32.totalorder %s468, %s471
      %p477 = scmp.eq.s32.totalorder %s30, 0
      %p478 = por %p476, %p477
      %p479 = scmp.ne.s32.totalorder %s468, %s471
      %p480 = scmp.eq.s32.totalorder %s35, 1
      %p481 = por %p479, %p480
      %p482 = scmp.ne.s32.totalorder %s471, %s472
      %p483 = scmp.eq.s32.totalorder %s35, 0
      %p484 = por %p482, %p483
      %p485 = scmp.ne.s32.totalorder %s471, %s472
      %p486 = scmp.eq.s32.totalorder %s36, 1
      %p487 = por %p485, %p486
      %p489 = scmp.ne.s32.totalorder %s472, %s488
      %p490 = scmp.eq.s32.totalorder %s36, 0
      %p491 = por %p489, %p490
      %s492 = ssub.s32 %s37, %s49
      %p493 = scmp.eq.s32.totalorder %s492, 0
      %s495 = sadd.s32 %s494, 1
      %s496 = scalar_select %p493, %s494, %s495
      %p499 = pneg %p493
      %p500 = scmp.eq.s32.totalorder %s30, 1
      %p501 = por %p499, %p500
      %p502 = scmp.ne.s32.totalorder %s494, %s497
      %p503 = scmp.eq.s32.totalorder %s30, 0
      %p504 = por %p502, %p503
      %p505 = scmp.ne.s32.totalorder %s494, %s497
      %p506 = scmp.eq.s32.totalorder %s35, 1
      %p507 = por %p505, %p506
      %p508 = scmp.ne.s32.totalorder %s497, %s498
      %p509 = scmp.eq.s32.totalorder %s35, 0
      %p510 = por %p508, %p509
      %p511 = scmp.ne.s32.totalorder %s497, %s498
      %p512 = scmp.eq.s32.totalorder %s36, 1
      %p513 = por %p511, %p512
      %p515 = scmp.ne.s32.totalorder %s498, %s514
      %p516 = scmp.eq.s32.totalorder %s36, 0
      %p517 = por %p515, %p516
      %p518 = scmp.le.s32.totalorder 1, %s30
      %p519 = scmp.lt.s32.totalorder %s30, 3
      %p520 = pnand %p518, %p519
      %p521 = pneg %p520
      // Predicated region
      $region9: #{tpu_custom_call.1} parent=5 // pred_check
        _
      $region10: #{tpu_custom_call.1} parent=5 // pred_check_branch
        %523 = sbr.rel (%p520) target = $region12
      $region11: #{tpu_custom_call.1} parent=5 // pred_region
        %s524 = ssub.s32 %s30, 1
        // Predicated region
        $region13: #{tpu_custom_call.1} parent=11 // pred_check
          %p525 = pneg %p68
        $region14: #{tpu_custom_call.1} parent=11 // pred_check_branch
          %527 = sbr.rel (%p525) target = $region16
        $region15: #{tpu_custom_call.1} parent=11 // pred_region
          %s528 = smul.u32 4, %s39
          %p529 = scmp.lt.s32.totalorder %s528, 3
          %s530 = scalar_select %p529, %s528, 3
          %s531 = smul.addr %s530, 8
          %s532 = scalar_lea.vmem %s0, %s531
          %s533 = smul.u32 4, %s39
        $region16: #{tpu_custom_call.1} parent=11 // pred_fallthru
          _
      $region12: #{tpu_custom_call.1} parent=5 // pred_fallthru
        _
      %p534 = scmp.lt.s32.totalorder %s30, 2
      // Predicated region
      $region17: #{tpu_custom_call.1} parent=5 // pred_check
        %p535 = pneg %p534
      $region18: #{tpu_custom_call.1} parent=5 // pred_check_branch
        %537 = sbr.rel (%p535) target = $region20
      $region19: #{tpu_custom_call.1} parent=5 // pred_region
        // Predicated region
        $region21: #{tpu_custom_call.1} parent=19 // pred_check
          %p538 = pneg %p88
        $region22: #{tpu_custom_call.1} parent=19 // pred_check_branch
          %540 = sbr.rel (%p538) target = $region24
        $region23: #{tpu_custom_call.1} parent=19 // pred_region
          %s541 = sand.u32 %s78, 1
          %s542 = scalar_lea.sflag [#allocation4], %s541
          %s543 = sand.u32 %s78, 1
          %s544 = scalar_lea.vmem [#allocation3], %s543
          %s546 = ssub.s32 16, 16
          %547 = vsyncadd %s542, %s546
          %s548 = smul.addr %s38, 16
          %s549 = scalar_lea.hbm %s1, %s548
          %s551 = sshll.u32 %s544, 4
          %s552 = int_to_ptr.vmem [resolvable:$true] %s551
          %554 = dma.hbm_to_vmem [thread:$0]  %s549, 16, %s552, %s542
        $region24: #{tpu_custom_call.1} parent=19 // pred_fallthru
          _
        // Predicated region
        $region25: #{tpu_custom_call.1} parent=19 // pred_check
          %p555 = pneg %p114
        $region26: #{tpu_custom_call.1} parent=19 // pred_check_branch
          %557 = sbr.rel (%p555) target = $region28
        $region27: #{tpu_custom_call.1} parent=19 // pred_region
          %p558 = scmp.lt.s32.totalorder %s38, 1
          %s559 = scalar_select %p558, %s38, 1
          %s560 = scalar_lea.vmem %s2, %s559
        $region28: #{tpu_custom_call.1} parent=19 // pred_fallthru
          _
        // Predicated region
        $region29: #{tpu_custom_call.1} parent=19 // pred_check
          %p561 = pneg %p140
        $region30: #{tpu_custom_call.1} parent=19 // pred_check_branch
          %563 = sbr.rel (%p561) target = $region32
        $region31: #{tpu_custom_call.1} parent=19 // pred_region
          %p564 = scmp.lt.s32.totalorder %s38, 1
          %s565 = scalar_select %p564, %s38, 1
          %s566 = smul.addr %s565, 4
          %s567 = smul.addr %s566, 4
          %s568 = scalar_lea.vmem %s3, %s567
        $region32: #{tpu_custom_call.1} parent=19 // pred_fallthru
          _
        // Predicated region
        $region33: #{tpu_custom_call.1} parent=19 // pred_check
          %p569 = pneg %p166
        $region34: #{tpu_custom_call.1} parent=19 // pred_check_branch
          %571 = sbr.rel (%p569) target = $region36
        $region35: #{tpu_custom_call.1} parent=19 // pred_region
          %p572 = scmp.lt.s32.totalorder %s38, 1
          %s573 = scalar_select %p572, %s38, 1
          %s574 = scalar_lea.vmem %s4, %s573
        $region36: #{tpu_custom_call.1} parent=19 // pred_fallthru
          _
        // Predicated region
        $region37: #{tpu_custom_call.1} parent=19 // pred_check
          %p575 = pneg %p192
        $region38: #{tpu_custom_call.1} parent=19 // pred_check_branch
          %577 = sbr.rel (%p575) target = $region40
        $region39: #{tpu_custom_call.1} parent=19 // pred_region
          %p578 = scmp.lt.s32.totalorder %s38, 1
          %s579 = scalar_select %p578, %s38, 1
          %s580 = smul.addr %s579, 4
          %s581 = smul.addr %s580, 4
          %s582 = scalar_lea.vmem %s5, %s581
        $region40: #{tpu_custom_call.1} parent=19 // pred_fallthru
          _
        // Predicated region
        $region41: #{tpu_custom_call.1} parent=19 // pred_check
          %p583 = pneg %p218
        $region42: #{tpu_custom_call.1} parent=19 // pred_check_branch
          %585 = sbr.rel (%p583) target = $region44
        $region43: #{tpu_custom_call.1} parent=19 // pred_region
          %p586 = scmp.lt.s32.totalorder %s38, 1
          %s587 = scalar_select %p586, %s38, 1
          %s588 = scalar_lea.vmem %s6, %s587
        $region44: #{tpu_custom_call.1} parent=19 // pred_fallthru
          _
        // Predicated region
        $region45: #{tpu_custom_call.1} parent=19 // pred_check
          %p589 = pneg %p244
        $region46: #{tpu_custom_call.1} parent=19 // pred_check_branch
          %591 = sbr.rel (%p589) target = $region48
        $region47: #{tpu_custom_call.1} parent=19 // pred_region
          %p592 = scmp.lt.s32.totalorder %s38, 1
          %s593 = scalar_select %p592, %s38, 1
          %s594 = smul.addr %s593, 4
          %s595 = smul.addr %s594, 4
          %s596 = scalar_lea.vmem %s7, %s595
        $region48: #{tpu_custom_call.1} parent=19 // pred_fallthru
          _
        // Predicated region
        $region49: #{tpu_custom_call.1} parent=19 // pred_check
          %p597 = pneg %p270
        $region50: #{tpu_custom_call.1} parent=19 // pred_check_branch
          %599 = sbr.rel (%p597) target = $region52
        $region51: #{tpu_custom_call.1} parent=19 // pred_region
          %p600 = scmp.lt.s32.totalorder %s38, 1
          %s601 = scalar_select %p600, %s38, 1
          %s602 = scalar_lea.vmem %s8, %s601
        $region52: #{tpu_custom_call.1} parent=19 // pred_fallthru
          _
        // Predicated region
        $region53: #{tpu_custom_call.1} parent=19 // pred_check
          %p603 = pneg %p296
        $region54: #{tpu_custom_call.1} parent=19 // pred_check_branch
          %605 = sbr.rel (%p603) target = $region56
        $region55: #{tpu_custom_call.1} parent=19 // pred_region
          %p606 = scmp.lt.s32.totalorder %s38, 1
          %s607 = scalar_select %p606, %s38, 1
          %s608 = smul.addr %s607, 4
          %s609 = smul.addr %s608, 4
          %s610 = scalar_lea.vmem %s9, %s609
        $region56: #{tpu_custom_call.1} parent=19 // pred_fallthru
          _
        // Predicated region
        $region57: #{tpu_custom_call.1} parent=19 // pred_check
          %p611 = pneg %p322
        $region58: #{tpu_custom_call.1} parent=19 // pred_check_branch
          %613 = sbr.rel (%p611) target = $region60
        $region59: #{tpu_custom_call.1} parent=19 // pred_region
          %p614 = scmp.lt.s32.totalorder %s38, 1
          %s615 = scalar_select %p614, %s38, 1
          %s616 = scalar_lea.vmem %s10, %s615
        $region60: #{tpu_custom_call.1} parent=19 // pred_fallthru
          _
        // Predicated region
        $region61: #{tpu_custom_call.1} parent=19 // pred_check
          %p617 = pneg %p348
        $region62: #{tpu_custom_call.1} parent=19 // pred_check_branch
          %619 = sbr.rel (%p617) target = $region64
        $region63: #{tpu_custom_call.1} parent=19 // pred_region
          %p620 = scmp.lt.s32.totalorder %s38, 1
          %s621 = scalar_select %p620, %s38, 1
          %s622 = scalar_lea.vmem %s11, %s621
        $region64: #{tpu_custom_call.1} parent=19 // pred_fallthru
          _
        // Predicated region
        $region65: #{tpu_custom_call.1} parent=19 // pred_check
          %p623 = pneg %p374
        $region66: #{tpu_custom_call.1} parent=19 // pred_check_branch
          %625 = sbr.rel (%p623) target = $region68
        $region67: #{tpu_custom_call.1} parent=19 // pred_region
          %p626 = scmp.lt.s32.totalorder %s38, 1
          %s627 = scalar_select %p626, %s38, 1
          %s628 = scalar_lea.vmem %s12, %s627
        $region68: #{tpu_custom_call.1} parent=19 // pred_fallthru
          _
        // Predicated region
        $region69: #{tpu_custom_call.1} parent=19 // pred_check
          %p629 = pneg %p400
        $region70: #{tpu_custom_call.1} parent=19 // pred_check_branch
          %631 = sbr.rel (%p629) target = $region72
        $region71: #{tpu_custom_call.1} parent=19 // pred_region
          %s632 = sand.u32 %s390, 1
          %s633 = scalar_lea.sflag [#allocation7], %s632
          %s634 = sand.u32 %s390, 1
          %s635 = smul.addr %s634, 16
          %s636 = scalar_lea.vmem [#allocation6], %s635
          %s638 = ssub.s32 256, 256
          %639 = vsyncadd %s633, %s638
          %s640 = smul.addr %s38, 4
          %s641 = smul.addr %s640, 64
          %s642 = scalar_lea.hbm %s13, %s641
          %s643 = sshll.u32 %s636, 4
          %s644 = int_to_ptr.vmem [resolvable:$true] %s643
          %649 = dma.hbm_to_vmem [thread:$0]  %s642, 256, %s644, %s633, 64, 64, 4
        $region72: #{tpu_custom_call.1} parent=19 // pred_fallthru
          _
        // Predicated region
        $region73: #{tpu_custom_call.1} parent=19 // pred_check
          %p650 = pneg %p426
        $region74: #{tpu_custom_call.1} parent=19 // pred_check_branch
          %652 = sbr.rel (%p650) target = $region76
        $region75: #{tpu_custom_call.1} parent=19 // pred_region
          %p653 = scmp.lt.s32.totalorder %s38, 1
          %s654 = scalar_select %p653, %s38, 1
          %s655 = scalar_lea.vmem %s14, %s654
        $region76: #{tpu_custom_call.1} parent=19 // pred_fallthru
          _
        // Predicated region
        $region77: #{tpu_custom_call.1} parent=19 // pred_check
          %p656 = pneg %p452
        $region78: #{tpu_custom_call.1} parent=19 // pred_check_branch
          %658 = sbr.rel (%p656) target = $region80
        $region79: #{tpu_custom_call.1} parent=19 // pred_region
          %p659 = scmp.lt.s32.totalorder %s38, 1
          %s660 = scalar_select %p659, %s38, 1
          %s661 = smul.addr %s660, 16
          %s662 = smul.addr %s661, 4
          %s663 = scalar_lea.vmem %s15, %s662
        $region80: #{tpu_custom_call.1} parent=19 // pred_fallthru
          _
        // Predicated region
        $region81: #{tpu_custom_call.1} parent=19 // pred_check
          %p664 = pneg %p478
        $region82: #{tpu_custom_call.1} parent=19 // pred_check_branch
          %666 = sbr.rel (%p664) target = $region84
        $region83: #{tpu_custom_call.1} parent=19 // pred_region
          %p667 = scmp.lt.s32.totalorder %s38, 1
          %s668 = scalar_select %p667, %s38, 1
          %s669 = scalar_lea.vmem %s16, %s668
        $region84: #{tpu_custom_call.1} parent=19 // pred_fallthru
          _
      $region20: #{tpu_custom_call.1} parent=5 // pred_fallthru
        _
      %p670 = scmp.le.s32.totalorder 1, %s30
      %p671 = scmp.lt.s32.totalorder %s30, 3
      %p672 = pnand %p670, %p671
      %p673 = pneg %p672
      // Predicated region
      $region85: #{tpu_custom_call.1} parent=5 // pred_check
        _
      $region86: #{tpu_custom_call.1} parent=5 // pred_check_branch
        %675 = sbr.rel (%p672) target = $region88
      $region87: #{tpu_custom_call.1} parent=5 // pred_region
        %s676 = ssub.s32 %s30, 1
        %s677 = sand.u32 %s81, 1
        %s678 = scalar_lea.sflag [#allocation4], %s677
        %s679 = sand.u32 %s81, 1
        %s680 = scalar_lea.vmem [#allocation3], %s679
        // Predicated region
        $region89: #{tpu_custom_call.1} parent=87 // pred_check
          %p681 = pneg %p94
        $region90: #{tpu_custom_call.1} parent=87 // pred_check_branch
          %683 = sbr.rel (%p681) target = $region92
        $region91: #{tpu_custom_call.1} parent=87 // pred_region
          %684 = dma.done %s678, 16
        $region92: #{tpu_custom_call.1} parent=87 // pred_fallthru
          _
        %s685 = sand.u32 %s393, 1
        %s686 = scalar_lea.sflag [#allocation7], %s685
        %s687 = sand.u32 %s393, 1
        %s688 = smul.addr %s687, 16
        %s689 = scalar_lea.vmem [#allocation6], %s688
        // Predicated region
        $region93: #{tpu_custom_call.1} parent=87 // pred_check
          %p690 = pneg %p406
        $region94: #{tpu_custom_call.1} parent=87 // pred_check_branch
          %692 = sbr.rel (%p690) target = $region96
        $region95: #{tpu_custom_call.1} parent=87 // pred_region
          %693 = dma.done %s686, 256
        $region96: #{tpu_custom_call.1} parent=87 // pred_fallthru
          _
        %s694 = smul.u32 4, %s39
        %p695 = scmp.lt.s32.totalorder %s694, 3
        %s696 = scalar_select %p695, %s694, 3
        %s697 = smul.addr %s696, 8
        %s698 = scalar_lea.vmem %s0, %s697
        %p699 = pneg %p68
        %p700 = pneg %p65
        %s701 = sand.u32 %s81, 1
        %s702 = scalar_lea.sflag [#allocation4], %s701
        %s703 = sand.u32 %s81, 1
        %s704 = scalar_lea.vmem [#allocation3], %s703
        %p705 = pneg %p94
        %p706 = pneg %p91
        %p707 = scmp.lt.s32.totalorder %s40, 1
        %s708 = scalar_select %p707, %s40, 1
        %s709 = scalar_lea.vmem %s2, %s708
        %p710 = pneg %p120
        %p711 = pneg %p117
        %p712 = scmp.lt.s32.totalorder %s40, 1
        %s713 = scalar_select %p712, %s40, 1
        %s714 = smul.addr %s713, 4
        %s715 = smul.addr %s714, 4
        %s716 = scalar_lea.vmem %s3, %s715
        %p717 = pneg %p146
        %p718 = pneg %p143
        %p719 = scmp.lt.s32.totalorder %s40, 1
        %s720 = scalar_select %p719, %s40, 1
        %s721 = scalar_lea.vmem %s4, %s720
        %p722 = pneg %p172
        %p723 = pneg %p169
        %p724 = scmp.lt.s32.totalorder %s40, 1
        %s725 = scalar_select %p724, %s40, 1
        %s726 = smul.addr %s725, 4
        %s727 = smul.addr %s726, 4
        %s728 = scalar_lea.vmem %s5, %s727
        %p729 = pneg %p198
        %p730 = pneg %p195
        %p731 = scmp.lt.s32.totalorder %s40, 1
        %s732 = scalar_select %p731, %s40, 1
        %s733 = scalar_lea.vmem %s6, %s732
        %p734 = pneg %p224
        %p735 = pneg %p221
        %p736 = scmp.lt.s32.totalorder %s40, 1
        %s737 = scalar_select %p736, %s40, 1
        %s738 = smul.addr %s737, 4
        %s739 = smul.addr %s738, 4
        %s740 = scalar_lea.vmem %s7, %s739
        %p741 = pneg %p250
        %p742 = pneg %p247
        %p743 = scmp.lt.s32.totalorder %s40, 1
        %s744 = scalar_select %p743, %s40, 1
        %s745 = scalar_lea.vmem %s8, %s744
        %p746 = pneg %p276
        %p747 = pneg %p273
        %p748 = scmp.lt.s32.totalorder %s40, 1
        %s749 = scalar_select %p748, %s40, 1
        %s750 = smul.addr %s749, 4
        %s751 = smul.addr %s750, 4
        %s752 = scalar_lea.vmem %s9, %s751
        %p753 = pneg %p302
        %p754 = pneg %p299
        %p755 = scmp.lt.s32.totalorder %s40, 1
        %s756 = scalar_select %p755, %s40, 1
        %s757 = scalar_lea.vmem %s10, %s756
        %p758 = pneg %p328
        %p759 = pneg %p325
        %p760 = scmp.lt.s32.totalorder %s40, 1
        %s761 = scalar_select %p760, %s40, 1
        %s762 = scalar_lea.vmem %s11, %s761
        %p763 = pneg %p354
        %p764 = pneg %p351
        %p765 = scmp.lt.s32.totalorder %s40, 1
        %s766 = scalar_select %p765, %s40, 1
        %s767 = scalar_lea.vmem %s12, %s766
        %p768 = pneg %p380
        %p769 = pneg %p377
        %s770 = sand.u32 %s393, 1
        %s771 = scalar_lea.sflag [#allocation7], %s770
        %s772 = sand.u32 %s393, 1
        %s773 = smul.addr %s772, 16
        %s774 = scalar_lea.vmem [#allocation6], %s773
        %p775 = pneg %p406
        %p776 = pneg %p403
        %p777 = scmp.lt.s32.totalorder %s40, 1
        %s778 = scalar_select %p777, %s40, 1
        %s779 = scalar_lea.vmem %s14, %s778
        %p780 = pneg %p432
        %p781 = pneg %p429
        %p782 = scmp.lt.s32.totalorder %s40, 1
        %s783 = scalar_select %p782, %s40, 1
        %s784 = smul.addr %s783, 16
        %s785 = smul.addr %s784, 4
        %s786 = scalar_lea.vmem %s15, %s785
        %p787 = pneg %p458
        %p788 = pneg %p455
        %p789 = scmp.lt.s32.totalorder %s40, 1
        %s790 = scalar_select %p789, %s40, 1
        %s791 = scalar_lea.vmem %s16, %s790
        %p792 = pneg %p484
        %p793 = pneg %p481
        %p794 = pneg %p510
        %p795 = pneg %p507
        %s796 = smul.u32 4, %s39
        %p797 = scmp.lt.s32.totalorder %s796, 3
        %s798 = scalar_select %p797, %s796, 3
        %s799 = smul.addr %s798, 8
        %s800 = scalar_lea.vmem %s0, %s799
        %s801 = smul.u32 4, %s39
        %p802 = scmp.lt.s32.totalorder %s40, 1
        %s803 = scalar_select %p802, %s40, 1
        %s804 = scalar_lea.vmem %s2, %s803
        %p805 = scmp.lt.s32.totalorder %s40, 1
        %s806 = scalar_select %p805, %s40, 1
        %s807 = smul.addr %s806, 4
        %s808 = smul.addr %s807, 4
        %s809 = scalar_lea.vmem %s3, %s808
        %p810 = scmp.lt.s32.totalorder %s40, 1
        %s811 = scalar_select %p810, %s40, 1
        %s812 = scalar_lea.vmem %s4, %s811
        %p813 = scmp.lt.s32.totalorder %s40, 1
        %s814 = scalar_select %p813, %s40, 1
        %s815 = smul.addr %s814, 4
        %s816 = smul.addr %s815, 4
        %s817 = scalar_lea.vmem %s5, %s816
        %p818 = scmp.lt.s32.totalorder %s40, 1
        %s819 = scalar_select %p818, %s40, 1
        %s820 = scalar_lea.vmem %s6, %s819
        %p821 = scmp.lt.s32.totalorder %s40, 1
        %s822 = scalar_select %p821, %s40, 1
        %s823 = smul.addr %s822, 4
        %s824 = smul.addr %s823, 4
        %s825 = scalar_lea.vmem %s7, %s824
        %p826 = scmp.lt.s32.totalorder %s40, 1
        %s827 = scalar_select %p826, %s40, 1
        %s828 = scalar_lea.vmem %s8, %s827
        %p829 = scmp.lt.s32.totalorder %s40, 1
        %s830 = scalar_select %p829, %s40, 1
        %s831 = smul.addr %s830, 4
        %s832 = smul.addr %s831, 4
        %s833 = scalar_lea.vmem %s9, %s832
        %p834 = scmp.lt.s32.totalorder %s40, 1
        %s835 = scalar_select %p834, %s40, 1
        %s836 = scalar_lea.vmem %s10, %s835
        %p837 = scmp.lt.s32.totalorder %s40, 1
        %s838 = scalar_select %p837, %s40, 1
        %s839 = scalar_lea.vmem %s11, %s838
        %p840 = scmp.lt.s32.totalorder %s40, 1
        %s841 = scalar_select %p840, %s40, 1
        %s842 = scalar_lea.vmem %s12, %s841
        %p843 = scmp.lt.s32.totalorder %s40, 1
        %s844 = scalar_select %p843, %s40, 1
        %s845 = scalar_lea.vmem %s14, %s844
        %p846 = scmp.lt.s32.totalorder %s40, 1
        %s847 = scalar_select %p846, %s40, 1
        %s848 = smul.addr %s847, 16
        %s849 = smul.addr %s848, 4
        %s850 = scalar_lea.vmem %s15, %s849
        %p851 = scmp.lt.s32.totalorder %s40, 1
        %s852 = scalar_select %p851, %s40, 1
        %s853 = scalar_lea.vmem %s16, %s852
        %s854 = smul.u32 4, %s39
        %p856 = scmp.eq.s32.totalorder %s40, 0
        // Predicated region
        $region97: #{tpu_custom_call.1} parent=87 // pred_check
          %p857 = pneg %p856
        $region98: #{tpu_custom_call.1} parent=87 // pred_check_branch
          %859 = sbr.rel (%p857) target = $region100
        $region99: #{tpu_custom_call.1} parent=87 // pred_region
          %v860 = vld [vmem:[%s800] sm:$0xff]
          %v861 = vld [vmem:[%s800 + $0x8] sm:$0xff]
          %v862 = vld [vmem:[%s800 + $0x10] sm:$0xff]
          %v863 = vld [vmem:[%s800 + $0x18] sm:$0xff]
          %vm864 = vcmask 261120
          %865 = vst.msk [vmem:[#allocation8] sm:$0xff] %vm864, %v860
          %866 = vst.msk [vmem:[#allocation8 + $0x8] sm:$0xff] %vm864, %v861
          %867 = vst.msk [vmem:[#allocation8 + $0x10] sm:$0xff] %vm864, %v862
          %868 = vst.msk [vmem:[#allocation8 + $0x18] sm:$0xff] %vm864, %v863
        $region100: #{tpu_custom_call.1} parent=87 // pred_fallthru
          _
        %v869 = vld [vmem:[#allocation8] sm:$0xff]
        %v870 = vld [vmem:[#allocation8 + $0x8] sm:$0xff]
        %v871 = vld [vmem:[#allocation8 + $0x10] sm:$0xff]
        %v872 = vld [vmem:[#allocation8 + $0x18] sm:$0xff]
        %v873 = vld [vmem:[%s680] sm:$0x1]
        %v874 = vld [vmem:[%s804] sm:$0x1]
        %vm875 = vcmask 261120
        %v876 = vsel %vm875, %v869, 0.0
        %877 = vadd.xlane.f32.xlu0 %v876
        %v878 = vpop.xlane.xlu0 %877
        %v879 = vsel %vm875, %v870, 0.0
        %880 = vadd.xlane.f32.xlu0 %v879
        %v881 = vpop.xlane.xlu0 %880
        %v882 = vsel %vm875, %v871, 0.0
        %883 = vadd.xlane.f32.xlu0 %v882
        %v884 = vpop.xlane.xlu0 %883
        %v885 = vsel %vm875, %v872, 0.0
        %886 = vadd.xlane.f32.xlu0 %v885
        %v887 = vpop.xlane.xlu0 %886
        %v888 = vrcp.pop 32.0
        %v889 = vmul.f32 %v878, %v888
        %v890 = vmul.f32 %v881, %v888
        %v891 = vmul.f32 %v884, %v888
        %v892 = vmul.f32 %v887, %v888
        %v893 = vsub.f32 %v869, %v889
        %v894 = vsub.f32 %v870, %v890
        %v895 = vsub.f32 %v871, %v891
        %v896 = vsub.f32 %v872, %v892
        %v897 = vmul.f32 %v893, %v893
        %v898 = vmul.f32 %v894, %v894
        %v899 = vmul.f32 %v895, %v895
        %v900 = vmul.f32 %v896, %v896
        %v901 = vsel %vm875, %v897, 0.0
        %902 = vadd.xlane.f32.xlu0 %v901
        %v903 = vpop.xlane.xlu0 %902
        %v904 = vsel %vm875, %v898, 0.0
        %905 = vadd.xlane.f32.xlu0 %v904
        %v906 = vpop.xlane.xlu0 %905
        %v907 = vsel %vm875, %v899, 0.0
        %908 = vadd.xlane.f32.xlu0 %v907
        %v909 = vpop.xlane.xlu0 %908
        %v910 = vsel %vm875, %v900, 0.0
        %911 = vadd.xlane.f32.xlu0 %v910
        %v912 = vpop.xlane.xlu0 %911
        %v913 = vmul.f32 %v903, %v888
        %v914 = vmul.f32 %v906, %v888
        %v915 = vmul.f32 %v909, %v888
        %v916 = vmul.f32 %v912, %v888
        %v917 = vadd.f32 %v913, 1e-12
        %v918 = vadd.f32 %v914, 1e-12
        %v919 = vadd.f32 %v915, 1e-12
        %v920 = vadd.f32 %v916, 1e-12
        %v921 = vrsqrt.pop %v917
        %v922 = vrsqrt.pop %v918
        %v923 = vrsqrt.pop %v919
        %v924 = vrsqrt.pop %v920
        %v925 = vmul.f32 %v893, %v921
        %v926 = vmul.f32 %v894, %v922
        %v927 = vmul.f32 %v895, %v923
        %v928 = vmul.f32 %v896, %v924
        %v930 = vlaneseq
        %v931 = vshrl.u32 %v930, 7
        %v932 = vsub.s32 0, %v931
        %v933 = vrot.slane %v873, %v932
        %v935 = vmul.f32 %v933, %v925
        %v936 = vmul.f32 %v933, %v926
        %v937 = vmul.f32 %v933, %v927
        %v938 = vmul.f32 %v933, %v928
        %v940 = vlaneseq
        %v941 = vshrl.u32 %v940, 7
        %v942 = vsub.s32 0, %v941
        %v943 = vrot.slane %v874, %v942
        %v945 = vadd.f32 %v935, %v943
        %v946 = vadd.f32 %v936, %v943
        %v947 = vadd.f32 %v937, %v943
        %v948 = vadd.f32 %v938, %v943
        %v949 = vpack.c.bf16 %v946, %v945
        %v950 = vpack.c.bf16 %v948, %v947
        %v951 = vld [vmem:[%s809] sm:$0xf]
        %v952 = vld [vmem:[%s809 + $0x4] sm:$0xf]
        %v953 = vld [vmem:[%s809 + $0x8] sm:$0xf]
        %v954 = vld [vmem:[%s809 + $0xc] sm:$0xf]
        %v955 = vld [vmem:[%s812] sm:$0x1]
        %v957 = vlaneseq
        %v958 = vshrl.u32 %v957, 7
        %v959 = vsub.s32 0, %v958
        %v960 = vrot.slane %v955, %v959
        %v966 = vunpack.c.l.b16 %v951
        %v967 = vunpack.c.l.b16 %v952
        %v968 = vunpack.c.l.b16 %v953
        %v969 = vunpack.c.l.b16 %v954
        %v970 = vpack.c.b16 %v967, %v966
        %v971 = vpack.c.b16 %v969, %v968
        %v975 = vsel %vm875, %v949, 0
        %v978 = vsel %vm875, %v950, 0
        %980 = vmatprep.subr.bf16.mxu0 0
        %981 = vmatpush1.bf16.msra.mxu0 0
        %982 = vmatprep.subr.bf16.mxu0 0
        %983 = vmatpush1.bf16.msra.mxu0 0
        %984 = vmatprep.subr.bf16.mxu0 0
        %985 = vmatpush1.bf16.msra.mxu0 0
        %986 = vmatprep.subr.bf16.mxu0 0
        %987 = vmatpush1.bf16.msra.mxu0 0
        %988 = vmatprep.subr.bf16.mxu0 0
        %989 = vmatpush1.bf16.msra.mxu0 0
        %990 = vmatprep.subr.bf16.mxu0 0
        %991 = vmatpush1.bf16.msra.mxu0 0
        %992 = vmatprep.subr.bf16.mxu0 0
        %993 = vmatpush1.bf16.msra.mxu0 %v971
        %994 = vmatprep.subr.bf16.mxu0 0
        %995 = vmatpush1.bf16.msra.mxu0 %v970
        %996 = vmatprep.subr.bf16.mxu0 0
        %997 = vmatpush2.bf16.msra.mxu0 0
        %998 = vmatprep.subr.bf16.mxu0 0
        %999 = vmatpush2.bf16.msra.mxu0 0
        %1000 = vmatprep.subr.bf16.mxu0 0
        %1001 = vmatpush2.bf16.msra.mxu0 0
        %1002 = vmatprep.subr.bf16.mxu0 0
        %1003 = vmatpush2.bf16.msra.mxu0 0
        %1004 = vmatprep.subr.bf16.mxu0 0
        %1005 = vmatpush2.bf16.msra.mxu0 0
        %1006 = vmatprep.subr.bf16.mxu0 0
        %1007 = vmatpush2.bf16.msra.mxu0 0
        %1008 = vmatprep.subr.bf16.mxu0 0
        %1009 = vmatpush2.bf16.msra.mxu0 0
        %1010 = vmatprep.subr.bf16.mxu0 0
        %1011 = vmatpush2.bf16.msra.mxu0 0
        %1012 = vmatprep.mubr.bf16.mxu0 0
        %1013 = vmatmul.mubr.bf16.gmra.mxu0 %v975
        %v1014 = vpop.f32.mrf.mxu0
        %v1015 = vadd.f32 %v960, %v1014
        %v1016 = vpop.f32.mrf.mxu0
        %v1017 = vpop.f32.mrf.mxu0
        %v1018 = vadd.f32 %v960, %v1017
        %v1019 = vpop.f32.mrf.mxu0
        %1020 = vmatprep.mubr.bf16.mxu0 0
        %1021 = vmatmul.mubr.bf16.gmra.mxu0 %v978
        %v1022 = vpop.f32.mrf.mxu0
        %v1023 = vadd.f32 %v960, %v1022
        %v1024 = vpop.f32.mrf.mxu0
        %v1025 = vpop.f32.mrf.mxu0
        %v1026 = vadd.f32 %v960, %v1025
        %v1027 = vpop.f32.mrf.mxu0
        %1028 = vdwg.mxu0
        %v1029 = vpack.c.bf16 %v1018, %v1015
        %v1030 = vpack.c.bf16 %v1026, %v1023
        %v1031 = vld [vmem:[%s817] sm:$0xf]
        %v1032 = vld [vmem:[%s817 + $0x4] sm:$0xf]
        %v1033 = vld [vmem:[%s817 + $0x8] sm:$0xf]
        %v1034 = vld [vmem:[%s817 + $0xc] sm:$0xf]
        %v1035 = vld [vmem:[%s820] sm:$0x1]
        %v1037 = vlaneseq
        %v1038 = vshrl.u32 %v1037, 7
        %v1039 = vsub.s32 0, %v1038
        %v1040 = vrot.slane %v1035, %v1039
        %v1046 = vunpack.c.l.b16 %v1031
        %v1047 = vunpack.c.l.b16 %v1032
        %v1048 = vunpack.c.l.b16 %v1033
        %v1049 = vunpack.c.l.b16 %v1034
        %v1050 = vpack.c.b16 %v1047, %v1046
        %v1051 = vpack.c.b16 %v1049, %v1048
        %1054 = vmatprep.subr.bf16.mxu0 0
        %1055 = vmatpush1.bf16.msra.mxu0 0
        %1056 = vmatprep.subr.bf16.mxu0 0
        %1057 = vmatpush1.bf16.msra.mxu0 0
        %1058 = vmatprep.subr.bf16.mxu0 0
        %1059 = vmatpush1.bf16.msra.mxu0 0
        %1060 = vmatprep.subr.bf16.mxu0 0
        %1061 = vmatpush1.bf16.msra.mxu0 0
        %1062 = vmatprep.subr.bf16.mxu0 0
        %1063 = vmatpush1.bf16.msra.mxu0 0
        %1064 = vmatprep.subr.bf16.mxu0 0
        %1065 = vmatpush1.bf16.msra.mxu0 0
        %1066 = vmatprep.subr.bf16.mxu0 0
        %1067 = vmatpush1.bf16.msra.mxu0 %v1051
        %1068 = vmatprep.subr.bf16.mxu0 0
        %1069 = vmatpush1.bf16.msra.mxu0 %v1050
        %1070 = vmatprep.subr.bf16.mxu0 0
        %1071 = vmatpush2.bf16.msra.mxu0 0
        %1072 = vmatprep.subr.bf16.mxu0 0
        %1073 = vmatpush2.bf16.msra.mxu0 0
        %1074 = vmatprep.subr.bf16.mxu0 0
        %1075 = vmatpush2.bf16.msra.mxu0 0
        %1076 = vmatprep.subr.bf16.mxu0 0
        %1077 = vmatpush2.bf16.msra.mxu0 0
        %1078 = vmatprep.subr.bf16.mxu0 0
        %1079 = vmatpush2.bf16.msra.mxu0 0
        %1080 = vmatprep.subr.bf16.mxu0 0
        %1081 = vmatpush2.bf16.msra.mxu0 0
        %1082 = vmatprep.subr.bf16.mxu0 0
        %1083 = vmatpush2.bf16.msra.mxu0 0
        %1084 = vmatprep.subr.bf16.mxu0 0
        %1085 = vmatpush2.bf16.msra.mxu0 0
        %1086 = vmatprep.mubr.bf16.mxu0 0
        %1087 = vmatmul.mubr.bf16.gmra.mxu0 %v975
        %v1088 = vpop.f32.mrf.mxu0
        %v1089 = vadd.f32 %v1040, %v1088
        %v1090 = vpop.f32.mrf.mxu0
        %v1091 = vpop.f32.mrf.mxu0
        %v1092 = vadd.f32 %v1040, %v1091
        %v1093 = vpop.f32.mrf.mxu0
        %1094 = vmatprep.mubr.bf16.mxu0 0
        %1095 = vmatmul.mubr.bf16.gmra.mxu0 %v978
        %v1096 = vpop.f32.mrf.mxu0
        %v1097 = vadd.f32 %v1040, %v1096
        %v1098 = vpop.f32.mrf.mxu0
        %v1099 = vpop.f32.mrf.mxu0
        %v1100 = vadd.f32 %v1040, %v1099
        %v1101 = vpop.f32.mrf.mxu0
        %1102 = vdwg.mxu0
        %v1103 = vpack.c.bf16 %v1092, %v1089
        %v1104 = vpack.c.bf16 %v1100, %v1097
        %v1105 = vld [vmem:[%s825] sm:$0xf]
        %v1106 = vld [vmem:[%s825 + $0x4] sm:$0xf]
        %v1107 = vld [vmem:[%s825 + $0x8] sm:$0xf]
        %v1108 = vld [vmem:[%s825 + $0xc] sm:$0xf]
        %v1109 = vld [vmem:[%s828] sm:$0x1]
        %v1111 = vlaneseq
        %v1112 = vshrl.u32 %v1111, 7
        %v1113 = vsub.s32 0, %v1112
        %v1114 = vrot.slane %v1109, %v1113
        %v1120 = vunpack.c.l.b16 %v1105
        %v1121 = vunpack.c.l.b16 %v1106
        %v1122 = vunpack.c.l.b16 %v1107
        %v1123 = vunpack.c.l.b16 %v1108
        %v1124 = vpack.c.b16 %v1121, %v1120
        %v1125 = vpack.c.b16 %v1123, %v1122
        %1128 = vmatprep.subr.bf16.mxu0 0
        %1129 = vmatpush1.bf16.msra.mxu0 0
        %1130 = vmatprep.subr.bf16.mxu0 0
        %1131 = vmatpush1.bf16.msra.mxu0 0
        %1132 = vmatprep.subr.bf16.mxu0 0
        %1133 = vmatpush1.bf16.msra.mxu0 0
        %1134 = vmatprep.subr.bf16.mxu0 0
        %1135 = vmatpush1.bf16.msra.mxu0 0
        %1136 = vmatprep.subr.bf16.mxu0 0
        %1137 = vmatpush1.bf16.msra.mxu0 0
        %1138 = vmatprep.subr.bf16.mxu0 0
        %1139 = vmatpush1.bf16.msra.mxu0 0
        %1140 = vmatprep.subr.bf16.mxu0 0
        %1141 = vmatpush1.bf16.msra.mxu0 %v1125
        %1142 = vmatprep.subr.bf16.mxu0 0
        %1143 = vmatpush1.bf16.msra.mxu0 %v1124
        %1144 = vmatprep.subr.bf16.mxu0 0
        %1145 = vmatpush2.bf16.msra.mxu0 0
        %1146 = vmatprep.subr.bf16.mxu0 0
        %1147 = vmatpush2.bf16.msra.mxu0 0
        %1148 = vmatprep.subr.bf16.mxu0 0
        %1149 = vmatpush2.bf16.msra.mxu0 0
        %1150 = vmatprep.subr.bf16.mxu0 0
        %1151 = vmatpush2.bf16.msra.mxu0 0
        %1152 = vmatprep.subr.bf16.mxu0 0
        %1153 = vmatpush2.bf16.msra.mxu0 0
        %1154 = vmatprep.subr.bf16.mxu0 0
        %1155 = vmatpush2.bf16.msra.mxu0 0
        %1156 = vmatprep.subr.bf16.mxu0 0
        %1157 = vmatpush2.bf16.msra.mxu0 0
        %1158 = vmatprep.subr.bf16.mxu0 0
        %1159 = vmatpush2.bf16.msra.mxu0 0
        %1160 = vmatprep.mubr.bf16.mxu0 0
        %1161 = vmatmul.mubr.bf16.gmra.mxu0 %v975
        %v1162 = vpop.f32.mrf.mxu0
        %v1163 = vadd.f32 %v1114, %v1162
        %v1164 = vpop.f32.mrf.mxu0
        %v1165 = vpop.f32.mrf.mxu0
        %v1166 = vadd.f32 %v1114, %v1165
        %v1167 = vpop.f32.mrf.mxu0
        %1168 = vmatprep.mubr.bf16.mxu0 0
        %1169 = vmatmul.mubr.bf16.gmra.mxu0 %v978
        %v1170 = vpop.f32.mrf.mxu0
        %v1171 = vadd.f32 %v1114, %v1170
        %v1172 = vpop.f32.mrf.mxu0
        %v1173 = vpop.f32.mrf.mxu0
        %v1174 = vadd.f32 %v1114, %v1173
        %v1175 = vpop.f32.mrf.mxu0
        %1176 = vdwg.mxu0
        %v1177 = vpack.c.bf16 %v1166, %v1163
        %v1178 = vpack.c.bf16 %v1174, %v1171
        %v1181 = vunpack.c.l.b16 %v1029
        %v1182 = vunpack.c.h.b16 %v1029
        %v1183 = vunpack.c.l.b16 %v1030
        %v1184 = vunpack.c.h.b16 %v1030
        %v1185 = vpack.c.b16 %v1181, %v1181
        %v1186 = vpack.c.b16 %v1182, %v1182
        %v1187 = vpack.c.b16 %v1183, %v1183
        %v1188 = vpack.c.b16 %v1184, %v1184
        %v1191 = vunpack.c.l.b16 %v1103
        %v1192 = vunpack.c.h.b16 %v1103
        %v1193 = vunpack.c.l.b16 %v1104
        %v1194 = vunpack.c.h.b16 %v1104
        %v1195 = vpack.c.b16 %v1191, %v1191
        %v1196 = vpack.c.b16 %v1192, %v1192
        %v1197 = vpack.c.b16 %v1193, %v1193
        %v1198 = vpack.c.b16 %v1194, %v1194
        %v1201 = vunpack.c.l.b16 %v1177
        %v1202 = vunpack.c.h.b16 %v1177
        %v1203 = vunpack.c.l.b16 %v1178
        %v1204 = vunpack.c.h.b16 %v1178
        %v1205 = vpack.c.b16 %v1201, %v1201
        %v1206 = vpack.c.b16 %v1202, %v1202
        %v1207 = vpack.c.b16 %v1203, %v1203
        %v1208 = vpack.c.b16 %v1204, %v1204
        %vm1209 = vcmask 64512
        %v1211 = vsel %vm1209, %v1185, 0
        %v1214 = vsel %vm1209, %v1195, 0
        %1216 = vmatprep.subr.bf16.mxu0 0
        %1217 = vmatpush1.bf16.xpose.msra.mxu0 0
        %1218 = vmatprep.subr.bf16.mxu0 0
        %1219 = vmatpush1.bf16.xpose.msra.mxu0 0
        %1220 = vmatprep.subr.bf16.mxu0 0
        %1221 = vmatpush1.bf16.xpose.msra.mxu0 0
        %1222 = vmatprep.subr.bf16.mxu0 0
        %1223 = vmatpush1.bf16.xpose.msra.mxu0 0
        %1224 = vmatprep.subr.bf16.mxu0 0
        %1225 = vmatpush1.bf16.xpose.msra.mxu0 0
        %1226 = vmatprep.subr.bf16.mxu0 0
        %1227 = vmatpush1.bf16.xpose.msra.mxu0 0
        %1228 = vmatprep.subr.bf16.mxu0 0
        %1229 = vmatpush1.bf16.xpose.msra.mxu0 0
        %1230 = vmatprep.subr.bf16.mxu0 0
        %1231 = vmatpush1.bf16.xpose.msra.mxu0 %v1214
        %1232 = vmatprep.subr.bf16.mxu0 0
        %1233 = vmatpush2.bf16.xpose.msra.mxu0 0
        %1234 = vmatprep.subr.bf16.mxu0 0
        %1235 = vmatpush2.bf16.xpose.msra.mxu0 0
        %1236 = vmatprep.subr.bf16.mxu0 0
        %1237 = vmatpush2.bf16.xpose.msra.mxu0 0
        %1238 = vmatprep.subr.bf16.mxu0 0
        %1239 = vmatpush2.bf16.xpose.msra.mxu0 0
        %1240 = vmatprep.subr.bf16.mxu0 0
        %1241 = vmatpush2.bf16.xpose.msra.mxu0 0
        %1242 = vmatprep.subr.bf16.mxu0 0
        %1243 = vmatpush2.bf16.xpose.msra.mxu0 0
        %1244 = vmatprep.subr.bf16.mxu0 0
        %1245 = vmatpush2.bf16.xpose.msra.mxu0 0
        %1246 = vmatprep.subr.bf16.mxu0 0
        %1247 = vmatpush2.bf16.xpose.msra.mxu0 0
        %1248 = vmatprep.mubr.bf16.mxu0 0
        %1249 = vmatmul.mubr.bf16.gmra.mxu0 %v1211
        %v1250 = vpop.f32.mrf.mxu0
        %v1251 = vadd.f32 0.0, %v1250
        %v1252 = vpop.f32.mrf.mxu0
        %v1253 = vpop.f32.mrf.mxu0
        %v1254 = vpop.f32.mrf.mxu0
        %1255 = vdwg.mxu0
        %v1257 = vsel %vm1209, %v1186, 0
        %v1260 = vsel %vm1209, %v1196, 0
        %1262 = vmatprep.subr.bf16.mxu0 0
        %1263 = vmatpush1.bf16.xpose.msra.mxu0 0
        %1264 = vmatprep.subr.bf16.mxu0 0
        %1265 = vmatpush1.bf16.xpose.msra.mxu0 0
        %1266 = vmatprep.subr.bf16.mxu0 0
        %1267 = vmatpush1.bf16.xpose.msra.mxu0 0
        %1268 = vmatprep.subr.bf16.mxu0 0
        %1269 = vmatpush1.bf16.xpose.msra.mxu0 0
        %1270 = vmatprep.subr.bf16.mxu0 0
        %1271 = vmatpush1.bf16.xpose.msra.mxu0 0
        %1272 = vmatprep.subr.bf16.mxu0 0
        %1273 = vmatpush1.bf16.xpose.msra.mxu0 0
        %1274 = vmatprep.subr.bf16.mxu0 0
        %1275 = vmatpush1.bf16.xpose.msra.mxu0 0
        %1276 = vmatprep.subr.bf16.mxu0 0
        %1277 = vmatpush1.bf16.xpose.msra.mxu0 %v1260
        %1278 = vmatprep.subr.bf16.mxu0 0
        %1279 = vmatpush2.bf16.xpose.msra.mxu0 0
        %1280 = vmatprep.subr.bf16.mxu0 0
        %1281 = vmatpush2.bf16.xpose.msra.mxu0 0
        %1282 = vmatprep.subr.bf16.mxu0 0
        %1283 = vmatpush2.bf16.xpose.msra.mxu0 0
        %1284 = vmatprep.subr.bf16.mxu0 0
        %1285 = vmatpush2.bf16.xpose.msra.mxu0 0
        %1286 = vmatprep.subr.bf16.mxu0 0
        %1287 = vmatpush2.bf16.xpose.msra.mxu0 0
        %1288 = vmatprep.subr.bf16.mxu0 0
        %1289 = vmatpush2.bf16.xpose.msra.mxu0 0
        %1290 = vmatprep.subr.bf16.mxu0 0
        %1291 = vmatpush2.bf16.xpose.msra.mxu0 0
        %1292 = vmatprep.subr.bf16.mxu0 0
        %1293 = vmatpush2.bf16.xpose.msra.mxu0 0
        %1294 = vmatprep.mubr.bf16.mxu0 0
        %1295 = vmatmul.mubr.bf16.gmra.mxu0 %v1257
        %v1296 = vpop.f32.mrf.mxu0
        %v1297 = vadd.f32 0.0, %v1296
        %v1298 = vpop.f32.mrf.mxu0
        %v1299 = vpop.f32.mrf.mxu0
        %v1300 = vpop.f32.mrf.mxu0
        %1301 = vdwg.mxu0
        %v1303 = vsel %vm1209, %v1187, 0
        %v1306 = vsel %vm1209, %v1197, 0
        %1308 = vmatprep.subr.bf16.mxu0 0
        %1309 = vmatpush1.bf16.xpose.msra.mxu0 0
        %1310 = vmatprep.subr.bf16.mxu0 0
        %1311 = vmatpush1.bf16.xpose.msra.mxu0 0
        %1312 = vmatprep.subr.bf16.mxu0 0
        %1313 = vmatpush1.bf16.xpose.msra.mxu0 0
        %1314 = vmatprep.subr.bf16.mxu0 0
        %1315 = vmatpush1.bf16.xpose.msra.mxu0 0
        %1316 = vmatprep.subr.bf16.mxu0 0
        %1317 = vmatpush1.bf16.xpose.msra.mxu0 0
        %1318 = vmatprep.subr.bf16.mxu0 0
        %1319 = vmatpush1.bf16.xpose.msra.mxu0 0
        %1320 = vmatprep.subr.bf16.mxu0 0
        %1321 = vmatpush1.bf16.xpose.msra.mxu0 0
        %1322 = vmatprep.subr.bf16.mxu0 0
        %1323 = vmatpush1.bf16.xpose.msra.mxu0 %v1306
        %1324 = vmatprep.subr.bf16.mxu0 0
        %1325 = vmatpush2.bf16.xpose.msra.mxu0 0
        %1326 = vmatprep.subr.bf16.mxu0 0
        %1327 = vmatpush2.bf16.xpose.msra.mxu0 0
        %1328 = vmatprep.subr.bf16.mxu0 0
        %1329 = vmatpush2.bf16.xpose.msra.mxu0 0
        %1330 = vmatprep.subr.bf16.mxu0 0
        %1331 = vmatpush2.bf16.xpose.msra.mxu0 0
        %1332 = vmatprep.subr.bf16.mxu0 0
        %1333 = vmatpush2.bf16.xpose.msra.mxu0 0
        %1334 = vmatprep.subr.bf16.mxu0 0
        %1335 = vmatpush2.bf16.xpose.msra.mxu0 0
        %1336 = vmatprep.subr.bf16.mxu0 0
        %1337 = vmatpush2.bf16.xpose.msra.mxu0 0
        %1338 = vmatprep.subr.bf16.mxu0 0
        %1339 = vmatpush2.bf16.xpose.msra.mxu0 0
        %1340 = vmatprep.mubr.bf16.mxu0 0
        %1341 = vmatmul.mubr.bf16.gmra.mxu0 %v1303
        %v1342 = vpop.f32.mrf.mxu0
        %v1343 = vadd.f32 0.0, %v1342
        %v1344 = vpop.f32.mrf.mxu0
        %v1345 = vpop.f32.mrf.mxu0
        %v1346 = vpop.f32.mrf.mxu0
        %1347 = vdwg.mxu0
        %v1349 = vsel %vm1209, %v1188, 0
        %v1352 = vsel %vm1209, %v1198, 0
        %1354 = vmatprep.subr.bf16.mxu0 0
        %1355 = vmatpush1.bf16.xpose.msra.mxu0 0
        %1356 = vmatprep.subr.bf16.mxu0 0
        %1357 = vmatpush1.bf16.xpose.msra.mxu0 0
        %1358 = vmatprep.subr.bf16.mxu0 0
        %1359 = vmatpush1.bf16.xpose.msra.mxu0 0
        %1360 = vmatprep.subr.bf16.mxu0 0
        %1361 = vmatpush1.bf16.xpose.msra.mxu0 0
        %1362 = vmatprep.subr.bf16.mxu0 0
        %1363 = vmatpush1.bf16.xpose.msra.mxu0 0
        %1364 = vmatprep.subr.bf16.mxu0 0
        %1365 = vmatpush1.bf16.xpose.msra.mxu0 0
        %1366 = vmatprep.subr.bf16.mxu0 0
        %1367 = vmatpush1.bf16.xpose.msra.mxu0 0
        %1368 = vmatprep.subr.bf16.mxu0 0
        %1369 = vmatpush1.bf16.xpose.msra.mxu0 %v1352
        %1370 = vmatprep.subr.bf16.mxu0 0
        %1371 = vmatpush2.bf16.xpose.msra.mxu0 0
        %1372 = vmatprep.subr.bf16.mxu0 0
        %1373 = vmatpush2.bf16.xpose.msra.mxu0 0
        %1374 = vmatprep.subr.bf16.mxu0 0
        %1375 = vmatpush2.bf16.xpose.msra.mxu0 0
        %1376 = vmatprep.subr.bf16.mxu0 0
        %1377 = vmatpush2.bf16.xpose.msra.mxu0 0
        %1378 = vmatprep.subr.bf16.mxu0 0
        %1379 = vmatpush2.bf16.xpose.msra.mxu0 0
        %1380 = vmatprep.subr.bf16.mxu0 0
        %1381 = vmatpush2.bf16.xpose.msra.mxu0 0
        %1382 = vmatprep.subr.bf16.mxu0 0
        %1383 = vmatpush2.bf16.xpose.msra.mxu0 0
        %1384 = vmatprep.subr.bf16.mxu0 0
        %1385 = vmatpush2.bf16.xpose.msra.mxu0 0
        %1386 = vmatprep.mubr.bf16.mxu0 0
        %1387 = vmatmul.mubr.bf16.gmra.mxu0 %v1349
        %v1388 = vpop.f32.mrf.mxu0
        %v1389 = vadd.f32 0.0, %v1388
        %v1390 = vpop.f32.mrf.mxu0
        %v1391 = vpop.f32.mrf.mxu0
        %v1392 = vpop.f32.mrf.mxu0
        %1393 = vdwg.mxu0
        %v1394 = vsel %vm1209, %v1251, -inf
        %1395 = vmax.xlane.f32.xlu0 %v1394
        %v1396 = vpop.xlane.xlu0 %1395
        %v1397 = vsel %vm1209, %v1297, -inf
        %1398 = vmax.xlane.f32.xlu0 %v1397
        %v1399 = vpop.xlane.xlu0 %1398
        %v1400 = vsel %vm1209, %v1343, -inf
        %1401 = vmax.xlane.f32.xlu0 %v1400
        %v1402 = vpop.xlane.xlu0 %1401
        %v1403 = vsel %vm1209, %v1389, -inf
        %1404 = vmax.xlane.f32.xlu0 %v1403
        %v1405 = vpop.xlane.xlu0 %1404
        %v1406 = vsub.f32 %v1251, %v1396
        %v1407 = vsub.f32 %v1297, %v1399
        %v1408 = vsub.f32 %v1343, %v1402
        %v1409 = vsub.f32 %v1389, %v1405
        %v1410 = vmul.f32 %v1406, 1.442695
        %v1411 = vpow.pop %v1410
        %v1412 = vmul.f32 %v1407, 1.442695
        %v1413 = vpow.pop %v1412
        %v1414 = vmul.f32 %v1408, 1.442695
        %v1415 = vpow.pop %v1414
        %v1416 = vmul.f32 %v1409, 1.442695
        %v1417 = vpow.pop %v1416
        %v1418 = vsel %vm1209, %v1411, 0.0
        %1419 = vadd.xlane.f32.xlu0 %v1418
        %v1420 = vpop.xlane.xlu0 %1419
        %v1421 = vsel %vm1209, %v1413, 0.0
        %1422 = vadd.xlane.f32.xlu0 %v1421
        %v1423 = vpop.xlane.xlu0 %1422
        %v1424 = vsel %vm1209, %v1415, 0.0
        %1425 = vadd.xlane.f32.xlu0 %v1424
        %v1426 = vpop.xlane.xlu0 %1425
        %v1427 = vsel %vm1209, %v1417, 0.0
        %1428 = vadd.xlane.f32.xlu0 %v1427
        %v1429 = vpop.xlane.xlu0 %1428
        %v1430 = vrcp.pop %v1420
        %v1431 = vrcp.pop %v1423
        %v1432 = vrcp.pop %v1426
        %v1433 = vrcp.pop %v1429
        %v1434 = vmul.f32 %v1411, %v1430
        %v1435 = vmul.f32 %v1413, %v1431
        %v1436 = vmul.f32 %v1415, %v1432
        %v1437 = vmul.f32 %v1417, %v1433
        %v1438 = vpack.c.bf16 %v1434, %v1434
        %v1439 = vpack.c.bf16 %v1435, %v1435
        %v1440 = vpack.c.bf16 %v1436, %v1436
        %v1441 = vpack.c.bf16 %v1437, %v1437
        %v1443 = vsel %vm1209, %v1438, 0
        %vm1445 = vcmask 1043456
        %v1447 = vsel %vm1445, %v1205, 0
        %1449 = vmatprep.subr.bf16.mxu0 0
        %1450 = vmatpush1.bf16.msra.mxu0 0
        %1451 = vmatprep.subr.bf16.mxu0 0
        %1452 = vmatpush1.bf16.msra.mxu0 0
        %1453 = vmatprep.subr.bf16.mxu0 0
        %1454 = vmatpush1.bf16.msra.mxu0 0
        %1455 = vmatprep.subr.bf16.mxu0 0
        %1456 = vmatpush1.bf16.msra.mxu0 0
        %1457 = vmatprep.subr.bf16.mxu0 0
        %1458 = vmatpush1.bf16.msra.mxu0 0
        %1459 = vmatprep.subr.bf16.mxu0 0
        %1460 = vmatpush1.bf16.msra.mxu0 0
        %1461 = vmatprep.subr.bf16.mxu0 0
        %1462 = vmatpush1.bf16.msra.mxu0 0
        %1463 = vmatprep.subr.bf16.mxu0 0
        %1464 = vmatpush1.bf16.msra.mxu0 %v1447
        %1465 = vmatprep.subr.bf16.mxu0 0
        %1466 = vmatpush2.bf16.msra.mxu0 0
        %1467 = vmatprep.subr.bf16.mxu0 0
        %1468 = vmatpush2.bf16.msra.mxu0 0
        %1469 = vmatprep.subr.bf16.mxu0 0
        %1470 = vmatpush2.bf16.msra.mxu0 0
        %1471 = vmatprep.subr.bf16.mxu0 0
        %1472 = vmatpush2.bf16.msra.mxu0 0
        %1473 = vmatprep.subr.bf16.mxu0 0
        %1474 = vmatpush2.bf16.msra.mxu0 0
        %1475 = vmatprep.subr.bf16.mxu0 0
        %1476 = vmatpush2.bf16.msra.mxu0 0
        %1477 = vmatprep.subr.bf16.mxu0 0
        %1478 = vmatpush2.bf16.msra.mxu0 0
        %1479 = vmatprep.subr.bf16.mxu0 0
        %1480 = vmatpush2.bf16.msra.mxu0 0
        %1481 = vmatprep.mubr.bf16.mxu0 0
        %1482 = vmatmul.mubr.bf16.gmra.mxu0 %v1443
        %v1483 = vpop.f32.mrf.mxu0
        %v1484 = vadd.f32 0.0, %v1483
        %v1485 = vpop.f32.mrf.mxu0
        %v1486 = vpop.f32.mrf.mxu0
        %v1487 = vpop.f32.mrf.mxu0
        %1488 = vdwg.mxu0
        %v1490 = vsel %vm1209, %v1439, 0
        %v1493 = vsel %vm1445, %v1206, 0
        %1495 = vmatprep.subr.bf16.mxu0 0
        %1496 = vmatpush1.bf16.msra.mxu0 0
        %1497 = vmatprep.subr.bf16.mxu0 0
        %1498 = vmatpush1.bf16.msra.mxu0 0
        %1499 = vmatprep.subr.bf16.mxu0 0
        %1500 = vmatpush1.bf16.msra.mxu0 0
        %1501 = vmatprep.subr.bf16.mxu0 0
        %1502 = vmatpush1.bf16.msra.mxu0 0
        %1503 = vmatprep.subr.bf16.mxu0 0
        %1504 = vmatpush1.bf16.msra.mxu0 0
        %1505 = vmatprep.subr.bf16.mxu0 0
        %1506 = vmatpush1.bf16.msra.mxu0 0
        %1507 = vmatprep.subr.bf16.mxu0 0
        %1508 = vmatpush1.bf16.msra.mxu0 0
        %1509 = vmatprep.subr.bf16.mxu0 0
        %1510 = vmatpush1.bf16.msra.mxu0 %v1493
        %1511 = vmatprep.subr.bf16.mxu0 0
        %1512 = vmatpush2.bf16.msra.mxu0 0
        %1513 = vmatprep.subr.bf16.mxu0 0
        %1514 = vmatpush2.bf16.msra.mxu0 0
        %1515 = vmatprep.subr.bf16.mxu0 0
        %1516 = vmatpush2.bf16.msra.mxu0 0
        %1517 = vmatprep.subr.bf16.mxu0 0
        %1518 = vmatpush2.bf16.msra.mxu0 0
        %1519 = vmatprep.subr.bf16.mxu0 0
        %1520 = vmatpush2.bf16.msra.mxu0 0
        %1521 = vmatprep.subr.bf16.mxu0 0
        %1522 = vmatpush2.bf16.msra.mxu0 0
        %1523 = vmatprep.subr.bf16.mxu0 0
        %1524 = vmatpush2.bf16.msra.mxu0 0
        %1525 = vmatprep.subr.bf16.mxu0 0
        %1526 = vmatpush2.bf16.msra.mxu0 0
        %1527 = vmatprep.mubr.bf16.mxu0 0
        %1528 = vmatmul.mubr.bf16.gmra.mxu0 %v1490
        %v1529 = vpop.f32.mrf.mxu0
        %v1530 = vadd.f32 0.0, %v1529
        %v1531 = vpop.f32.mrf.mxu0
        %v1532 = vpop.f32.mrf.mxu0
        %v1533 = vpop.f32.mrf.mxu0
        %1534 = vdwg.mxu0
        %v1536 = vsel %vm1209, %v1440, 0
        %v1539 = vsel %vm1445, %v1207, 0
        %1541 = vmatprep.subr.bf16.mxu0 0
        %1542 = vmatpush1.bf16.msra.mxu0 0
        %1543 = vmatprep.subr.bf16.mxu0 0
        %1544 = vmatpush1.bf16.msra.mxu0 0
        %1545 = vmatprep.subr.bf16.mxu0 0
        %1546 = vmatpush1.bf16.msra.mxu0 0
        %1547 = vmatprep.subr.bf16.mxu0 0
        %1548 = vmatpush1.bf16.msra.mxu0 0
        %1549 = vmatprep.subr.bf16.mxu0 0
        %1550 = vmatpush1.bf16.msra.mxu0 0
        %1551 = vmatprep.subr.bf16.mxu0 0
        %1552 = vmatpush1.bf16.msra.mxu0 0
        %1553 = vmatprep.subr.bf16.mxu0 0
        %1554 = vmatpush1.bf16.msra.mxu0 0
        %1555 = vmatprep.subr.bf16.mxu0 0
        %1556 = vmatpush1.bf16.msra.mxu0 %v1539
        %1557 = vmatprep.subr.bf16.mxu0 0
        %1558 = vmatpush2.bf16.msra.mxu0 0
        %1559 = vmatprep.subr.bf16.mxu0 0
        %1560 = vmatpush2.bf16.msra.mxu0 0
        %1561 = vmatprep.subr.bf16.mxu0 0
        %1562 = vmatpush2.bf16.msra.mxu0 0
        %1563 = vmatprep.subr.bf16.mxu0 0
        %1564 = vmatpush2.bf16.msra.mxu0 0
        %1565 = vmatprep.subr.bf16.mxu0 0
        %1566 = vmatpush2.bf16.msra.mxu0 0
        %1567 = vmatprep.subr.bf16.mxu0 0
        %1568 = vmatpush2.bf16.msra.mxu0 0
        %1569 = vmatprep.subr.bf16.mxu0 0
        %1570 = vmatpush2.bf16.msra.mxu0 0
        %1571 = vmatprep.subr.bf16.mxu0 0
        %1572 = vmatpush2.bf16.msra.mxu0 0
        %1573 = vmatprep.mubr.bf16.mxu0 0
        %1574 = vmatmul.mubr.bf16.gmra.mxu0 %v1536
        %v1575 = vpop.f32.mrf.mxu0
        %v1576 = vadd.f32 0.0, %v1575
        %v1577 = vpop.f32.mrf.mxu0
        %v1578 = vpop.f32.mrf.mxu0
        %v1579 = vpop.f32.mrf.mxu0
        %1580 = vdwg.mxu0
        %v1582 = vsel %vm1209, %v1441, 0
        %v1585 = vsel %vm1445, %v1208, 0
        %1587 = vmatprep.subr.bf16.mxu0 0
        %1588 = vmatpush1.bf16.msra.mxu0 0
        %1589 = vmatprep.subr.bf16.mxu0 0
        %1590 = vmatpush1.bf16.msra.mxu0 0
        %1591 = vmatprep.subr.bf16.mxu0 0
        %1592 = vmatpush1.bf16.msra.mxu0 0
        %1593 = vmatprep.subr.bf16.mxu0 0
        %1594 = vmatpush1.bf16.msra.mxu0 0
        %1595 = vmatprep.subr.bf16.mxu0 0
        %1596 = vmatpush1.bf16.msra.mxu0 0
        %1597 = vmatprep.subr.bf16.mxu0 0
        %1598 = vmatpush1.bf16.msra.mxu0 0
        %1599 = vmatprep.subr.bf16.mxu0 0
        %1600 = vmatpush1.bf16.msra.mxu0 0
        %1601 = vmatprep.subr.bf16.mxu0 0
        %1602 = vmatpush1.bf16.msra.mxu0 %v1585
        %1603 = vmatprep.subr.bf16.mxu0 0
        %1604 = vmatpush2.bf16.msra.mxu0 0
        %1605 = vmatprep.subr.bf16.mxu0 0
        %1606 = vmatpush2.bf16.msra.mxu0 0
        %1607 = vmatprep.subr.bf16.mxu0 0
        %1608 = vmatpush2.bf16.msra.mxu0 0
        %1609 = vmatprep.subr.bf16.mxu0 0
        %1610 = vmatpush2.bf16.msra.mxu0 0
        %1611 = vmatprep.subr.bf16.mxu0 0
        %1612 = vmatpush2.bf16.msra.mxu0 0
        %1613 = vmatprep.subr.bf16.mxu0 0
        %1614 = vmatpush2.bf16.msra.mxu0 0
        %1615 = vmatprep.subr.bf16.mxu0 0
        %1616 = vmatpush2.bf16.msra.mxu0 0
        %1617 = vmatprep.subr.bf16.mxu0 0
        %1618 = vmatpush2.bf16.msra.mxu0 0
        %1619 = vmatprep.mubr.bf16.mxu0 0
        %1620 = vmatmul.mubr.bf16.gmra.mxu0 %v1582
        %v1621 = vpop.f32.mrf.mxu0
        %v1622 = vadd.f32 0.0, %v1621
        %v1623 = vpop.f32.mrf.mxu0
        %v1624 = vpop.f32.mrf.mxu0
        %v1625 = vpop.f32.mrf.mxu0
        %1626 = vdwg.mxu0
        %v1627 = vpack.c.bf16 %v1530, %v1484
        %v1628 = vpack.c.bf16 %v1622, %v1576
        %v1631 = vunpack.c.l.b16 %v1627
        %v1632 = vunpack.c.h.b16 %v1627
        %v1633 = vunpack.c.l.b16 %v1628
        %v1634 = vunpack.c.h.b16 %v1628
        %v1635 = vpack.c.b16 %v1631, %v1631
        %v1636 = vpack.c.b16 %v1632, %v1632
        %v1637 = vpack.c.b16 %v1633, %v1633
        %v1638 = vpack.c.b16 %v1634, %v1634
        %vm1643 = vcmask 60416
        %1644 = vst.msk [vmem:[#allocation2] sm:$0xf] %vm1643, %v1635
        %1645 = vst.msk [vmem:[#allocation2 + $0x4] sm:$0xf] %vm1643, %v1636
        %1646 = vst.msk [vmem:[#allocation2 + $0x8] sm:$0xf] %vm1643, %v1637
        %1647 = vst.msk [vmem:[#allocation2 + $0xc] sm:$0xf] %vm1643, %v1638
        %1648 = vrot.lane.b32.xlu0 %v1185, 120
        %v1649 = vpop.permute.xlu0 %1648
        %1650 = vrot.lane.b32.xlu0 %v1195, 120
        %v1651 = vpop.permute.xlu0 %1650
        %v1653 = vsel %vm1209, %v1649, 0
        %v1656 = vsel %vm1209, %v1651, 0
        %1658 = vmatprep.subr.bf16.mxu0 0
        %1659 = vmatpush1.bf16.xpose.msra.mxu0 0
        %1660 = vmatprep.subr.bf16.mxu0 0
        %1661 = vmatpush1.bf16.xpose.msra.mxu0 0
        %1662 = vmatprep.subr.bf16.mxu0 0
        %1663 = vmatpush1.bf16.xpose.msra.mxu0 0
        %1664 = vmatprep.subr.bf16.mxu0 0
        %1665 = vmatpush1.bf16.xpose.msra.mxu0 0
        %1666 = vmatprep.subr.bf16.mxu0 0
        %1667 = vmatpush1.bf16.xpose.msra.mxu0 0
        %1668 = vmatprep.subr.bf16.mxu0 0
        %1669 = vmatpush1.bf16.xpose.msra.mxu0 0
        %1670 = vmatprep.subr.bf16.mxu0 0
        %1671 = vmatpush1.bf16.xpose.msra.mxu0 0
        %1672 = vmatprep.subr.bf16.mxu0 0
        %1673 = vmatpush1.bf16.xpose.msra.mxu0 %v1656
        %1674 = vmatprep.subr.bf16.mxu0 0
        %1675 = vmatpush2.bf16.xpose.msra.mxu0 0
        %1676 = vmatprep.subr.bf16.mxu0 0
        %1677 = vmatpush2.bf16.xpose.msra.mxu0 0
        %1678 = vmatprep.subr.bf16.mxu0 0
        %1679 = vmatpush2.bf16.xpose.msra.mxu0 0
        %1680 = vmatprep.subr.bf16.mxu0 0
        %1681 = vmatpush2.bf16.xpose.msra.mxu0 0
        %1682 = vmatprep.subr.bf16.mxu0 0
        %1683 = vmatpush2.bf16.xpose.msra.mxu0 0
        %1684 = vmatprep.subr.bf16.mxu0 0
        %1685 = vmatpush2.bf16.xpose.msra.mxu0 0
        %1686 = vmatprep.subr.bf16.mxu0 0
        %1687 = vmatpush2.bf16.xpose.msra.mxu0 0
        %1688 = vmatprep.subr.bf16.mxu0 0
        %1689 = vmatpush2.bf16.xpose.msra.mxu0 0
        %1690 = vmatprep.mubr.bf16.mxu0 0
        %1691 = vmatmul.mubr.bf16.gmra.mxu0 %v1653
        %v1692 = vpop.f32.mrf.mxu0
        %v1693 = vadd.f32 0.0, %v1692
        %v1694 = vpop.f32.mrf.mxu0
        %v1695 = vpop.f32.mrf.mxu0
        %v1696 = vpop.f32.mrf.mxu0
        %1697 = vdwg.mxu0
        %1698 = vrot.lane.b32.xlu0 %v1186, 120
        %v1699 = vpop.permute.xlu0 %1698
        %1700 = vrot.lane.b32.xlu0 %v1196, 120
        %v1701 = vpop.permute.xlu0 %1700
        %v1703 = vsel %vm1209, %v1699, 0
        %v1706 = vsel %vm1209, %v1701, 0
        %1708 = vmatprep.subr.bf16.mxu0 0
        %1709 = vmatpush1.bf16.xpose.msra.mxu0 0
        %1710 = vmatprep.subr.bf16.mxu0 0
        %1711 = vmatpush1.bf16.xpose.msra.mxu0 0
        %1712 = vmatprep.subr.bf16.mxu0 0
        %1713 = vmatpush1.bf16.xpose.msra.mxu0 0
        %1714 = vmatprep.subr.bf16.mxu0 0
        %1715 = vmatpush1.bf16.xpose.msra.mxu0 0
        %1716 = vmatprep.subr.bf16.mxu0 0
        %1717 = vmatpush1.bf16.xpose.msra.mxu0 0
        %1718 = vmatprep.subr.bf16.mxu0 0
        %1719 = vmatpush1.bf16.xpose.msra.mxu0 0
        %1720 = vmatprep.subr.bf16.mxu0 0
        %1721 = vmatpush1.bf16.xpose.msra.mxu0 0
        %1722 = vmatprep.subr.bf16.mxu0 0
        %1723 = vmatpush1.bf16.xpose.msra.mxu0 %v1706
        %1724 = vmatprep.subr.bf16.mxu0 0
        %1725 = vmatpush2.bf16.xpose.msra.mxu0 0
        %1726 = vmatprep.subr.bf16.mxu0 0
        %1727 = vmatpush2.bf16.xpose.msra.mxu0 0
        %1728 = vmatprep.subr.bf16.mxu0 0
        %1729 = vmatpush2.bf16.xpose.msra.mxu0 0
        %1730 = vmatprep.subr.bf16.mxu0 0
        %1731 = vmatpush2.bf16.xpose.msra.mxu0 0
        %1732 = vmatprep.subr.bf16.mxu0 0
        %1733 = vmatpush2.bf16.xpose.msra.mxu0 0
        %1734 = vmatprep.subr.bf16.mxu0 0
        %1735 = vmatpush2.bf16.xpose.msra.mxu0 0
        %1736 = vmatprep.subr.bf16.mxu0 0
        %1737 = vmatpush2.bf16.xpose.msra.mxu0 0
        %1738 = vmatprep.subr.bf16.mxu0 0
        %1739 = vmatpush2.bf16.xpose.msra.mxu0 0
        %1740 = vmatprep.mubr.bf16.mxu0 0
        %1741 = vmatmul.mubr.bf16.gmra.mxu0 %v1703
        %v1742 = vpop.f32.mrf.mxu0
        %v1743 = vadd.f32 0.0, %v1742
        %v1744 = vpop.f32.mrf.mxu0
        %v1745 = vpop.f32.mrf.mxu0
        %v1746 = vpop.f32.mrf.mxu0
        %1747 = vdwg.mxu0
        %1748 = vrot.lane.b32.xlu0 %v1187, 120
        %v1749 = vpop.permute.xlu0 %1748
        %1750 = vrot.lane.b32.xlu0 %v1197, 120
        %v1751 = vpop.permute.xlu0 %1750
        %v1753 = vsel %vm1209, %v1749, 0
        %v1756 = vsel %vm1209, %v1751, 0
        %1758 = vmatprep.subr.bf16.mxu0 0
        %1759 = vmatpush1.bf16.xpose.msra.mxu0 0
        %1760 = vmatprep.subr.bf16.mxu0 0
        %1761 = vmatpush1.bf16.xpose.msra.mxu0 0
        %1762 = vmatprep.subr.bf16.mxu0 0
        %1763 = vmatpush1.bf16.xpose.msra.mxu0 0
        %1764 = vmatprep.subr.bf16.mxu0 0
        %1765 = vmatpush1.bf16.xpose.msra.mxu0 0
        %1766 = vmatprep.subr.bf16.mxu0 0
        %1767 = vmatpush1.bf16.xpose.msra.mxu0 0
        %1768 = vmatprep.subr.bf16.mxu0 0
        %1769 = vmatpush1.bf16.xpose.msra.mxu0 0
        %1770 = vmatprep.subr.bf16.mxu0 0
        %1771 = vmatpush1.bf16.xpose.msra.mxu0 0
        %1772 = vmatprep.subr.bf16.mxu0 0
        %1773 = vmatpush1.bf16.xpose.msra.mxu0 %v1756
        %1774 = vmatprep.subr.bf16.mxu0 0
        %1775 = vmatpush2.bf16.xpose.msra.mxu0 0
        %1776 = vmatprep.subr.bf16.mxu0 0
        %1777 = vmatpush2.bf16.xpose.msra.mxu0 0
        %1778 = vmatprep.subr.bf16.mxu0 0
        %1779 = vmatpush2.bf16.xpose.msra.mxu0 0
        %1780 = vmatprep.subr.bf16.mxu0 0
        %1781 = vmatpush2.bf16.xpose.msra.mxu0 0
        %1782 = vmatprep.subr.bf16.mxu0 0
        %1783 = vmatpush2.bf16.xpose.msra.mxu0 0
        %1784 = vmatprep.subr.bf16.mxu0 0
        %1785 = vmatpush2.bf16.xpose.msra.mxu0 0
        %1786 = vmatprep.subr.bf16.mxu0 0
        %1787 = vmatpush2.bf16.xpose.msra.mxu0 0
        %1788 = vmatprep.subr.bf16.mxu0 0
        %1789 = vmatpush2.bf16.xpose.msra.mxu0 0
        %1790 = vmatprep.mubr.bf16.mxu0 0
        %1791 = vmatmul.mubr.bf16.gmra.mxu0 %v1753
        %v1792 = vpop.f32.mrf.mxu0
        %v1793 = vadd.f32 0.0, %v1792
        %v1794 = vpop.f32.mrf.mxu0
        %v1795 = vpop.f32.mrf.mxu0
        %v1796 = vpop.f32.mrf.mxu0
        %1797 = vdwg.mxu0
        %1798 = vrot.lane.b32.xlu0 %v1188, 120
        %v1799 = vpop.permute.xlu0 %1798
        %1800 = vrot.lane.b32.xlu0 %v1198, 120
        %v1801 = vpop.permute.xlu0 %1800
        %v1803 = vsel %vm1209, %v1799, 0
        %v1806 = vsel %vm1209, %v1801, 0
        %1808 = vmatprep.subr.bf16.mxu0 0
        %1809 = vmatpush1.bf16.xpose.msra.mxu0 0
        %1810 = vmatprep.subr.bf16.mxu0 0
        %1811 = vmatpush1.bf16.xpose.msra.mxu0 0
        %1812 = vmatprep.subr.bf16.mxu0 0
        %1813 = vmatpush1.bf16.xpose.msra.mxu0 0
        %1814 = vmatprep.subr.bf16.mxu0 0
        %1815 = vmatpush1.bf16.xpose.msra.mxu0 0
        %1816 = vmatprep.subr.bf16.mxu0 0
        %1817 = vmatpush1.bf16.xpose.msra.mxu0 0
        %1818 = vmatprep.subr.bf16.mxu0 0
        %1819 = vmatpush1.bf16.xpose.msra.mxu0 0
        %1820 = vmatprep.subr.bf16.mxu0 0
        %1821 = vmatpush1.bf16.xpose.msra.mxu0 0
        %1822 = vmatprep.subr.bf16.mxu0 0
        %1823 = vmatpush1.bf16.xpose.msra.mxu0 %v1806
        %1824 = vmatprep.subr.bf16.mxu0 0
        %1825 = vmatpush2.bf16.xpose.msra.mxu0 0
        %1826 = vmatprep.subr.bf16.mxu0 0
        %1827 = vmatpush2.bf16.xpose.msra.mxu0 0
        %1828 = vmatprep.subr.bf16.mxu0 0
        %1829 = vmatpush2.bf16.xpose.msra.mxu0 0
        %1830 = vmatprep.subr.bf16.mxu0 0
        %1831 = vmatpush2.bf16.xpose.msra.mxu0 0
        %1832 = vmatprep.subr.bf16.mxu0 0
        %1833 = vmatpush2.bf16.xpose.msra.mxu0 0
        %1834 = vmatprep.subr.bf16.mxu0 0
        %1835 = vmatpush2.bf16.xpose.msra.mxu0 0
        %1836 = vmatprep.subr.bf16.mxu0 0
        %1837 = vmatpush2.bf16.xpose.msra.mxu0 0
        %1838 = vmatprep.subr.bf16.mxu0 0
        %1839 = vmatpush2.bf16.xpose.msra.mxu0 0
        %1840 = vmatprep.mubr.bf16.mxu0 0
        %1841 = vmatmul.mubr.bf16.gmra.mxu0 %v1803
        %v1842 = vpop.f32.mrf.mxu0
        %v1843 = vadd.f32 0.0, %v1842
        %v1844 = vpop.f32.mrf.mxu0
        %v1845 = vpop.f32.mrf.mxu0
        %v1846 = vpop.f32.mrf.mxu0
        %1847 = vdwg.mxu0
        %v1848 = vsel %vm1209, %v1693, -inf
        %1849 = vmax.xlane.f32.xlu0 %v1848
        %v1850 = vpop.xlane.xlu0 %1849
        %v1851 = vsel %vm1209, %v1743, -inf
        %1852 = vmax.xlane.f32.xlu0 %v1851
        %v1853 = vpop.xlane.xlu0 %1852
        %v1854 = vsel %vm1209, %v1793, -inf
        %1855 = vmax.xlane.f32.xlu0 %v1854
        %v1856 = vpop.xlane.xlu0 %1855
        %v1857 = vsel %vm1209, %v1843, -inf
        %1858 = vmax.xlane.f32.xlu0 %v1857
        %v1859 = vpop.xlane.xlu0 %1858
        %v1860 = vsub.f32 %v1693, %v1850
        %v1861 = vsub.f32 %v1743, %v1853
        %v1862 = vsub.f32 %v1793, %v1856
        %v1863 = vsub.f32 %v1843, %v1859
        %v1864 = vmul.f32 %v1860, 1.442695
        %v1865 = vpow.pop %v1864
        %v1866 = vmul.f32 %v1861, 1.442695
        %v1867 = vpow.pop %v1866
        %v1868 = vmul.f32 %v1862, 1.442695
        %v1869 = vpow.pop %v1868
        %v1870 = vmul.f32 %v1863, 1.442695
        %v1871 = vpow.pop %v1870
        %v1872 = vsel %vm1209, %v1865, 0.0
        %1873 = vadd.xlane.f32.xlu0 %v1872
        %v1874 = vpop.xlane.xlu0 %1873
        %v1875 = vsel %vm1209, %v1867, 0.0
        %1876 = vadd.xlane.f32.xlu0 %v1875
        %v1877 = vpop.xlane.xlu0 %1876
        %v1878 = vsel %vm1209, %v1869, 0.0
        %1879 = vadd.xlane.f32.xlu0 %v1878
        %v1880 = vpop.xlane.xlu0 %1879
        %v1881 = vsel %vm1209, %v1871, 0.0
        %1882 = vadd.xlane.f32.xlu0 %v1881
        %v1883 = vpop.xlane.xlu0 %1882
        %v1884 = vrcp.pop %v1874
        %v1885 = vrcp.pop %v1877
        %v1886 = vrcp.pop %v1880
        %v1887 = vrcp.pop %v1883
        %v1888 = vmul.f32 %v1865, %v1884
        %v1889 = vmul.f32 %v1867, %v1885
        %v1890 = vmul.f32 %v1869, %v1886
        %v1891 = vmul.f32 %v1871, %v1887
        %v1892 = vpack.c.bf16 %v1888, %v1888
        %v1893 = vpack.c.bf16 %v1889, %v1889
        %v1894 = vpack.c.bf16 %v1890, %v1890
        %v1895 = vpack.c.bf16 %v1891, %v1891
        %1896 = vrot.lane.b32.xlu0 %v1205, 120
        %v1897 = vpop.permute.xlu0 %1896
        %v1899 = vsel %vm1209, %v1892, 0
        %v1902 = vsel %vm1445, %v1897, 0
        %1904 = vmatprep.subr.bf16.mxu0 0
        %1905 = vmatpush1.bf16.msra.mxu0 0
        %1906 = vmatprep.subr.bf16.mxu0 0
        %1907 = vmatpush1.bf16.msra.mxu0 0
        %1908 = vmatprep.subr.bf16.mxu0 0
        %1909 = vmatpush1.bf16.msra.mxu0 0
        %1910 = vmatprep.subr.bf16.mxu0 0
        %1911 = vmatpush1.bf16.msra.mxu0 0
        %1912 = vmatprep.subr.bf16.mxu0 0
        %1913 = vmatpush1.bf16.msra.mxu0 0
        %1914 = vmatprep.subr.bf16.mxu0 0
        %1915 = vmatpush1.bf16.msra.mxu0 0
        %1916 = vmatprep.subr.bf16.mxu0 0
        %1917 = vmatpush1.bf16.msra.mxu0 0
        %1918 = vmatprep.subr.bf16.mxu0 0
        %1919 = vmatpush1.bf16.msra.mxu0 %v1902
        %1920 = vmatprep.subr.bf16.mxu0 0
        %1921 = vmatpush2.bf16.msra.mxu0 0
        %1922 = vmatprep.subr.bf16.mxu0 0
        %1923 = vmatpush2.bf16.msra.mxu0 0
        %1924 = vmatprep.subr.bf16.mxu0 0
        %1925 = vmatpush2.bf16.msra.mxu0 0
        %1926 = vmatprep.subr.bf16.mxu0 0
        %1927 = vmatpush2.bf16.msra.mxu0 0
        %1928 = vmatprep.subr.bf16.mxu0 0
        %1929 = vmatpush2.bf16.msra.mxu0 0
        %1930 = vmatprep.subr.bf16.mxu0 0
        %1931 = vmatpush2.bf16.msra.mxu0 0
        %1932 = vmatprep.subr.bf16.mxu0 0
        %1933 = vmatpush2.bf16.msra.mxu0 0
        %1934 = vmatprep.subr.bf16.mxu0 0
        %1935 = vmatpush2.bf16.msra.mxu0 0
        %1936 = vmatprep.mubr.bf16.mxu0 0
        %1937 = vmatmul.mubr.bf16.gmra.mxu0 %v1899
        %v1938 = vpop.f32.mrf.mxu0
        %v1939 = vadd.f32 0.0, %v1938
        %v1940 = vpop.f32.mrf.mxu0
        %v1941 = vpop.f32.mrf.mxu0
        %v1942 = vpop.f32.mrf.mxu0
        %1943 = vdwg.mxu0
        %1944 = vrot.lane.b32.xlu0 %v1206, 120
        %v1945 = vpop.permute.xlu0 %1944
        %v1947 = vsel %vm1209, %v1893, 0
        %v1950 = vsel %vm1445, %v1945, 0
        %1952 = vmatprep.subr.bf16.mxu0 0
        %1953 = vmatpush1.bf16.msra.mxu0 0
        %1954 = vmatprep.subr.bf16.mxu0 0
        %1955 = vmatpush1.bf16.msra.mxu0 0
        %1956 = vmatprep.subr.bf16.mxu0 0
        %1957 = vmatpush1.bf16.msra.mxu0 0
        %1958 = vmatprep.subr.bf16.mxu0 0
        %1959 = vmatpush1.bf16.msra.mxu0 0
        %1960 = vmatprep.subr.bf16.mxu0 0
        %1961 = vmatpush1.bf16.msra.mxu0 0
        %1962 = vmatprep.subr.bf16.mxu0 0
        %1963 = vmatpush1.bf16.msra.mxu0 0
        %1964 = vmatprep.subr.bf16.mxu0 0
        %1965 = vmatpush1.bf16.msra.mxu0 0
        %1966 = vmatprep.subr.bf16.mxu0 0
        %1967 = vmatpush1.bf16.msra.mxu0 %v1950
        %1968 = vmatprep.subr.bf16.mxu0 0
        %1969 = vmatpush2.bf16.msra.mxu0 0
        %1970 = vmatprep.subr.bf16.mxu0 0
        %1971 = vmatpush2.bf16.msra.mxu0 0
        %1972 = vmatprep.subr.bf16.mxu0 0
        %1973 = vmatpush2.bf16.msra.mxu0 0
        %1974 = vmatprep.subr.bf16.mxu0 0
        %1975 = vmatpush2.bf16.msra.mxu0 0
        %1976 = vmatprep.subr.bf16.mxu0 0
        %1977 = vmatpush2.bf16.msra.mxu0 0
        %1978 = vmatprep.subr.bf16.mxu0 0
        %1979 = vmatpush2.bf16.msra.mxu0 0
        %1980 = vmatprep.subr.bf16.mxu0 0
        %1981 = vmatpush2.bf16.msra.mxu0 0
        %1982 = vmatprep.subr.bf16.mxu0 0
        %1983 = vmatpush2.bf16.msra.mxu0 0
        %1984 = vmatprep.mubr.bf16.mxu0 0
        %1985 = vmatmul.mubr.bf16.gmra.mxu0 %v1947
        %v1986 = vpop.f32.mrf.mxu0
        %v1987 = vadd.f32 0.0, %v1986
        %v1988 = vpop.f32.mrf.mxu0
        %v1989 = vpop.f32.mrf.mxu0
        %v1990 = vpop.f32.mrf.mxu0
        %1991 = vdwg.mxu0
        %1992 = vrot.lane.b32.xlu0 %v1207, 120
        %v1993 = vpop.permute.xlu0 %1992
        %v1995 = vsel %vm1209, %v1894, 0
        %v1998 = vsel %vm1445, %v1993, 0
        %2000 = vmatprep.subr.bf16.mxu0 0
        %2001 = vmatpush1.bf16.msra.mxu0 0
        %2002 = vmatprep.subr.bf16.mxu0 0
        %2003 = vmatpush1.bf16.msra.mxu0 0
        %2004 = vmatprep.subr.bf16.mxu0 0
        %2005 = vmatpush1.bf16.msra.mxu0 0
        %2006 = vmatprep.subr.bf16.mxu0 0
        %2007 = vmatpush1.bf16.msra.mxu0 0
        %2008 = vmatprep.subr.bf16.mxu0 0
        %2009 = vmatpush1.bf16.msra.mxu0 0
        %2010 = vmatprep.subr.bf16.mxu0 0
        %2011 = vmatpush1.bf16.msra.mxu0 0
        %2012 = vmatprep.subr.bf16.mxu0 0
        %2013 = vmatpush1.bf16.msra.mxu0 0
        %2014 = vmatprep.subr.bf16.mxu0 0
        %2015 = vmatpush1.bf16.msra.mxu0 %v1998
        %2016 = vmatprep.subr.bf16.mxu0 0
        %2017 = vmatpush2.bf16.msra.mxu0 0
        %2018 = vmatprep.subr.bf16.mxu0 0
        %2019 = vmatpush2.bf16.msra.mxu0 0
        %2020 = vmatprep.subr.bf16.mxu0 0
        %2021 = vmatpush2.bf16.msra.mxu0 0
        %2022 = vmatprep.subr.bf16.mxu0 0
        %2023 = vmatpush2.bf16.msra.mxu0 0
        %2024 = vmatprep.subr.bf16.mxu0 0
        %2025 = vmatpush2.bf16.msra.mxu0 0
        %2026 = vmatprep.subr.bf16.mxu0 0
        %2027 = vmatpush2.bf16.msra.mxu0 0
        %2028 = vmatprep.subr.bf16.mxu0 0
        %2029 = vmatpush2.bf16.msra.mxu0 0
        %2030 = vmatprep.subr.bf16.mxu0 0
        %2031 = vmatpush2.bf16.msra.mxu0 0
        %2032 = vmatprep.mubr.bf16.mxu0 0
        %2033 = vmatmul.mubr.bf16.gmra.mxu0 %v1995
        %v2034 = vpop.f32.mrf.mxu0
        %v2035 = vadd.f32 0.0, %v2034
        %v2036 = vpop.f32.mrf.mxu0
        %v2037 = vpop.f32.mrf.mxu0
        %v2038 = vpop.f32.mrf.mxu0
        %2039 = vdwg.mxu0
        %2040 = vrot.lane.b32.xlu0 %v1208, 120
        %v2041 = vpop.permute.xlu0 %2040
        %v2043 = vsel %vm1209, %v1895, 0
        %v2046 = vsel %vm1445, %v2041, 0
        %2048 = vmatprep.subr.bf16.mxu0 0
        %2049 = vmatpush1.bf16.msra.mxu0 0
        %2050 = vmatprep.subr.bf16.mxu0 0
        %2051 = vmatpush1.bf16.msra.mxu0 0
        %2052 = vmatprep.subr.bf16.mxu0 0
        %2053 = vmatpush1.bf16.msra.mxu0 0
        %2054 = vmatprep.subr.bf16.mxu0 0
        %2055 = vmatpush1.bf16.msra.mxu0 0
        %2056 = vmatprep.subr.bf16.mxu0 0
        %2057 = vmatpush1.bf16.msra.mxu0 0
        %2058 = vmatprep.subr.bf16.mxu0 0
        %2059 = vmatpush1.bf16.msra.mxu0 0
        %2060 = vmatprep.subr.bf16.mxu0 0
        %2061 = vmatpush1.bf16.msra.mxu0 0
        %2062 = vmatprep.subr.bf16.mxu0 0
        %2063 = vmatpush1.bf16.msra.mxu0 %v2046
        %2064 = vmatprep.subr.bf16.mxu0 0
        %2065 = vmatpush2.bf16.msra.mxu0 0
        %2066 = vmatprep.subr.bf16.mxu0 0
        %2067 = vmatpush2.bf16.msra.mxu0 0
        %2068 = vmatprep.subr.bf16.mxu0 0
        %2069 = vmatpush2.bf16.msra.mxu0 0
        %2070 = vmatprep.subr.bf16.mxu0 0
        %2071 = vmatpush2.bf16.msra.mxu0 0
        %2072 = vmatprep.subr.bf16.mxu0 0
        %2073 = vmatpush2.bf16.msra.mxu0 0
        %2074 = vmatprep.subr.bf16.mxu0 0
        %2075 = vmatpush2.bf16.msra.mxu0 0
        %2076 = vmatprep.subr.bf16.mxu0 0
        %2077 = vmatpush2.bf16.msra.mxu0 0
        %2078 = vmatprep.subr.bf16.mxu0 0
        %2079 = vmatpush2.bf16.msra.mxu0 0
        %2080 = vmatprep.mubr.bf16.mxu0 0
        %2081 = vmatmul.mubr.bf16.gmra.mxu0 %v2043
        %v2082 = vpop.f32.mrf.mxu0
        %v2083 = vadd.f32 0.0, %v2082
        %v2084 = vpop.f32.mrf.mxu0
        %v2085 = vpop.f32.mrf.mxu0
        %v2086 = vpop.f32.mrf.mxu0
        %2087 = vdwg.mxu0
        %v2088 = vpack.c.bf16 %v1987, %v1939
        %v2089 = vpack.c.bf16 %v2083, %v2035
        %v2092 = vunpack.c.l.b16 %v2088
        %v2093 = vunpack.c.h.b16 %v2088
        %v2094 = vunpack.c.l.b16 %v2089
        %v2095 = vunpack.c.h.b16 %v2089
        %v2096 = vpack.c.b16 %v2092, %v2092
        %v2097 = vpack.c.b16 %v2093, %v2093
        %v2098 = vpack.c.b16 %v2094, %v2094
        %v2099 = vpack.c.b16 %v2095, %v2095
        %2100 = vrot.lane.b32.xlu0 %v2096, 8
        %v2101 = vpop.permute.xlu0 %2100
        %2102 = vrot.lane.b32.xlu0 %v2097, 8
        %v2103 = vpop.permute.xlu0 %2102
        %2104 = vrot.lane.b32.xlu0 %v2098, 8
        %v2105 = vpop.permute.xlu0 %2104
        %2106 = vrot.lane.b32.xlu0 %v2099, 8
        %v2107 = vpop.permute.xlu0 %2106
        %vm2112 = vcmask 126016
        %2113 = vst.msk [vmem:[#allocation2] sm:$0xf] %vm2112, %v2101
        %2114 = vst.msk [vmem:[#allocation2 + $0x4] sm:$0xf] %vm2112, %v2103
        %2115 = vst.msk [vmem:[#allocation2 + $0x8] sm:$0xf] %vm2112, %v2105
        %2116 = vst.msk [vmem:[#allocation2 + $0xc] sm:$0xf] %vm2112, %v2107
        %2117 = vrot.lane.b32.xlu0 %v1185, 112
        %v2118 = vpop.permute.xlu0 %2117
        %2119 = vrot.lane.b32.xlu0 %v1195, 112
        %v2120 = vpop.permute.xlu0 %2119
        %v2122 = vsel %vm1209, %v2118, 0
        %v2125 = vsel %vm1209, %v2120, 0
        %2127 = vmatprep.subr.bf16.mxu0 0
        %2128 = vmatpush1.bf16.xpose.msra.mxu0 0
        %2129 = vmatprep.subr.bf16.mxu0 0
        %2130 = vmatpush1.bf16.xpose.msra.mxu0 0
        %2131 = vmatprep.subr.bf16.mxu0 0
        %2132 = vmatpush1.bf16.xpose.msra.mxu0 0
        %2133 = vmatprep.subr.bf16.mxu0 0
        %2134 = vmatpush1.bf16.xpose.msra.mxu0 0
        %2135 = vmatprep.subr.bf16.mxu0 0
        %2136 = vmatpush1.bf16.xpose.msra.mxu0 0
        %2137 = vmatprep.subr.bf16.mxu0 0
        %2138 = vmatpush1.bf16.xpose.msra.mxu0 0
        %2139 = vmatprep.subr.bf16.mxu0 0
        %2140 = vmatpush1.bf16.xpose.msra.mxu0 0
        %2141 = vmatprep.subr.bf16.mxu0 0
        %2142 = vmatpush1.bf16.xpose.msra.mxu0 %v2125
        %2143 = vmatprep.subr.bf16.mxu0 0
        %2144 = vmatpush2.bf16.xpose.msra.mxu0 0
        %2145 = vmatprep.subr.bf16.mxu0 0
        %2146 = vmatpush2.bf16.xpose.msra.mxu0 0
        %2147 = vmatprep.subr.bf16.mxu0 0
        %2148 = vmatpush2.bf16.xpose.msra.mxu0 0
        %2149 = vmatprep.subr.bf16.mxu0 0
        %2150 = vmatpush2.bf16.xpose.msra.mxu0 0
        %2151 = vmatprep.subr.bf16.mxu0 0
        %2152 = vmatpush2.bf16.xpose.msra.mxu0 0
        %2153 = vmatprep.subr.bf16.mxu0 0
        %2154 = vmatpush2.bf16.xpose.msra.mxu0 0
        %2155 = vmatprep.subr.bf16.mxu0 0
        %2156 = vmatpush2.bf16.xpose.msra.mxu0 0
        %2157 = vmatprep.subr.bf16.mxu0 0
        %2158 = vmatpush2.bf16.xpose.msra.mxu0 0
        %2159 = vmatprep.mubr.bf16.mxu0 0
        %2160 = vmatmul.mubr.bf16.gmra.mxu0 %v2122
        %v2161 = vpop.f32.mrf.mxu0
        %v2162 = vadd.f32 0.0, %v2161
        %v2163 = vpop.f32.mrf.mxu0
        %v2164 = vpop.f32.mrf.mxu0
        %v2165 = vpop.f32.mrf.mxu0
        %2166 = vdwg.mxu0
        %2167 = vrot.lane.b32.xlu0 %v1186, 112
        %v2168 = vpop.permute.xlu0 %2167
        %2169 = vrot.lane.b32.xlu0 %v1196, 112
        %v2170 = vpop.permute.xlu0 %2169
        %v2172 = vsel %vm1209, %v2168, 0
        %v2175 = vsel %vm1209, %v2170, 0
        %2177 = vmatprep.subr.bf16.mxu0 0
        %2178 = vmatpush1.bf16.xpose.msra.mxu0 0
        %2179 = vmatprep.subr.bf16.mxu0 0
        %2180 = vmatpush1.bf16.xpose.msra.mxu0 0
        %2181 = vmatprep.subr.bf16.mxu0 0
        %2182 = vmatpush1.bf16.xpose.msra.mxu0 0
        %2183 = vmatprep.subr.bf16.mxu0 0
        %2184 = vmatpush1.bf16.xpose.msra.mxu0 0
        %2185 = vmatprep.subr.bf16.mxu0 0
        %2186 = vmatpush1.bf16.xpose.msra.mxu0 0
        %2187 = vmatprep.subr.bf16.mxu0 0
        %2188 = vmatpush1.bf16.xpose.msra.mxu0 0
        %2189 = vmatprep.subr.bf16.mxu0 0
        %2190 = vmatpush1.bf16.xpose.msra.mxu0 0
        %2191 = vmatprep.subr.bf16.mxu0 0
        %2192 = vmatpush1.bf16.xpose.msra.mxu0 %v2175
        %2193 = vmatprep.subr.bf16.mxu0 0
        %2194 = vmatpush2.bf16.xpose.msra.mxu0 0
        %2195 = vmatprep.subr.bf16.mxu0 0
        %2196 = vmatpush2.bf16.xpose.msra.mxu0 0
        %2197 = vmatprep.subr.bf16.mxu0 0
        %2198 = vmatpush2.bf16.xpose.msra.mxu0 0
        %2199 = vmatprep.subr.bf16.mxu0 0
        %2200 = vmatpush2.bf16.xpose.msra.mxu0 0
        %2201 = vmatprep.subr.bf16.mxu0 0
        %2202 = vmatpush2.bf16.xpose.msra.mxu0 0
        %2203 = vmatprep.subr.bf16.mxu0 0
        %2204 = vmatpush2.bf16.xpose.msra.mxu0 0
        %2205 = vmatprep.subr.bf16.mxu0 0
        %2206 = vmatpush2.bf16.xpose.msra.mxu0 0
        %2207 = vmatprep.subr.bf16.mxu0 0
        %2208 = vmatpush2.bf16.xpose.msra.mxu0 0
        %2209 = vmatprep.mubr.bf16.mxu0 0
        %2210 = vmatmul.mubr.bf16.gmra.mxu0 %v2172
        %v2211 = vpop.f32.mrf.mxu0
        %v2212 = vadd.f32 0.0, %v2211
        %v2213 = vpop.f32.mrf.mxu0
        %v2214 = vpop.f32.mrf.mxu0
        %v2215 = vpop.f32.mrf.mxu0
        %2216 = vdwg.mxu0
        %2217 = vrot.lane.b32.xlu0 %v1187, 112
        %v2218 = vpop.permute.xlu0 %2217
        %2219 = vrot.lane.b32.xlu0 %v1197, 112
        %v2220 = vpop.permute.xlu0 %2219
        %v2222 = vsel %vm1209, %v2218, 0
        %v2225 = vsel %vm1209, %v2220, 0
        %2227 = vmatprep.subr.bf16.mxu0 0
        %2228 = vmatpush1.bf16.xpose.msra.mxu0 0
        %2229 = vmatprep.subr.bf16.mxu0 0
        %2230 = vmatpush1.bf16.xpose.msra.mxu0 0
        %2231 = vmatprep.subr.bf16.mxu0 0
        %2232 = vmatpush1.bf16.xpose.msra.mxu0 0
        %2233 = vmatprep.subr.bf16.mxu0 0
        %2234 = vmatpush1.bf16.xpose.msra.mxu0 0
        %2235 = vmatprep.subr.bf16.mxu0 0
        %2236 = vmatpush1.bf16.xpose.msra.mxu0 0
        %2237 = vmatprep.subr.bf16.mxu0 0
        %2238 = vmatpush1.bf16.xpose.msra.mxu0 0
        %2239 = vmatprep.subr.bf16.mxu0 0
        %2240 = vmatpush1.bf16.xpose.msra.mxu0 0
        %2241 = vmatprep.subr.bf16.mxu0 0
        %2242 = vmatpush1.bf16.xpose.msra.mxu0 %v2225
        %2243 = vmatprep.subr.bf16.mxu0 0
        %2244 = vmatpush2.bf16.xpose.msra.mxu0 0
        %2245 = vmatprep.subr.bf16.mxu0 0
        %2246 = vmatpush2.bf16.xpose.msra.mxu0 0
        %2247 = vmatprep.subr.bf16.mxu0 0
        %2248 = vmatpush2.bf16.xpose.msra.mxu0 0
        %2249 = vmatprep.subr.bf16.mxu0 0
        %2250 = vmatpush2.bf16.xpose.msra.mxu0 0
        %2251 = vmatprep.subr.bf16.mxu0 0
        %2252 = vmatpush2.bf16.xpose.msra.mxu0 0
        %2253 = vmatprep.subr.bf16.mxu0 0
        %2254 = vmatpush2.bf16.xpose.msra.mxu0 0
        %2255 = vmatprep.subr.bf16.mxu0 0
        %2256 = vmatpush2.bf16.xpose.msra.mxu0 0
        %2257 = vmatprep.subr.bf16.mxu0 0
        %2258 = vmatpush2.bf16.xpose.msra.mxu0 0
        %2259 = vmatprep.mubr.bf16.mxu0 0
        %2260 = vmatmul.mubr.bf16.gmra.mxu0 %v2222
        %v2261 = vpop.f32.mrf.mxu0
        %v2262 = vadd.f32 0.0, %v2261
        %v2263 = vpop.f32.mrf.mxu0
        %v2264 = vpop.f32.mrf.mxu0
        %v2265 = vpop.f32.mrf.mxu0
        %2266 = vdwg.mxu0
        %2267 = vrot.lane.b32.xlu0 %v1188, 112
        %v2268 = vpop.permute.xlu0 %2267
        %2269 = vrot.lane.b32.xlu0 %v1198, 112
        %v2270 = vpop.permute.xlu0 %2269
        %v2272 = vsel %vm1209, %v2268, 0
        %v2275 = vsel %vm1209, %v2270, 0
        %2277 = vmatprep.subr.bf16.mxu0 0
        %2278 = vmatpush1.bf16.xpose.msra.mxu0 0
        %2279 = vmatprep.subr.bf16.mxu0 0
        %2280 = vmatpush1.bf16.xpose.msra.mxu0 0
        %2281 = vmatprep.subr.bf16.mxu0 0
        %2282 = vmatpush1.bf16.xpose.msra.mxu0 0
        %2283 = vmatprep.subr.bf16.mxu0 0
        %2284 = vmatpush1.bf16.xpose.msra.mxu0 0
        %2285 = vmatprep.subr.bf16.mxu0 0
        %2286 = vmatpush1.bf16.xpose.msra.mxu0 0
        %2287 = vmatprep.subr.bf16.mxu0 0
        %2288 = vmatpush1.bf16.xpose.msra.mxu0 0
        %2289 = vmatprep.subr.bf16.mxu0 0
        %2290 = vmatpush1.bf16.xpose.msra.mxu0 0
        %2291 = vmatprep.subr.bf16.mxu0 0
        %2292 = vmatpush1.bf16.xpose.msra.mxu0 %v2275
        %2293 = vmatprep.subr.bf16.mxu0 0
        %2294 = vmatpush2.bf16.xpose.msra.mxu0 0
        %2295 = vmatprep.subr.bf16.mxu0 0
        %2296 = vmatpush2.bf16.xpose.msra.mxu0 0
        %2297 = vmatprep.subr.bf16.mxu0 0
        %2298 = vmatpush2.bf16.xpose.msra.mxu0 0
        %2299 = vmatprep.subr.bf16.mxu0 0
        %2300 = vmatpush2.bf16.xpose.msra.mxu0 0
        %2301 = vmatprep.subr.bf16.mxu0 0
        %2302 = vmatpush2.bf16.xpose.msra.mxu0 0
        %2303 = vmatprep.subr.bf16.mxu0 0
        %2304 = vmatpush2.bf16.xpose.msra.mxu0 0
        %2305 = vmatprep.subr.bf16.mxu0 0
        %2306 = vmatpush2.bf16.xpose.msra.mxu0 0
        %2307 = vmatprep.subr.bf16.mxu0 0
        %2308 = vmatpush2.bf16.xpose.msra.mxu0 0
        %2309 = vmatprep.mubr.bf16.mxu0 0
        %2310 = vmatmul.mubr.bf16.gmra.mxu0 %v2272
        %v2311 = vpop.f32.mrf.mxu0
        %v2312 = vadd.f32 0.0, %v2311
        %v2313 = vpop.f32.mrf.mxu0
        %v2314 = vpop.f32.mrf.mxu0
        %v2315 = vpop.f32.mrf.mxu0
        %2316 = vdwg.mxu0
        %v2317 = vsel %vm1209, %v2162, -inf
        %2318 = vmax.xlane.f32.xlu0 %v2317
        %v2319 = vpop.xlane.xlu0 %2318
        %v2320 = vsel %vm1209, %v2212, -inf
        %2321 = vmax.xlane.f32.xlu0 %v2320
        %v2322 = vpop.xlane.xlu0 %2321
        %v2323 = vsel %vm1209, %v2262, -inf
        %2324 = vmax.xlane.f32.xlu0 %v2323
        %v2325 = vpop.xlane.xlu0 %2324
        %v2326 = vsel %vm1209, %v2312, -inf
        %2327 = vmax.xlane.f32.xlu0 %v2326
        %v2328 = vpop.xlane.xlu0 %2327
        %v2329 = vsub.f32 %v2162, %v2319
        %v2330 = vsub.f32 %v2212, %v2322
        %v2331 = vsub.f32 %v2262, %v2325
        %v2332 = vsub.f32 %v2312, %v2328
        %v2333 = vmul.f32 %v2329, 1.442695
        %v2334 = vpow.pop %v2333
        %v2335 = vmul.f32 %v2330, 1.442695
        %v2336 = vpow.pop %v2335
        %v2337 = vmul.f32 %v2331, 1.442695
        %v2338 = vpow.pop %v2337
        %v2339 = vmul.f32 %v2332, 1.442695
        %v2340 = vpow.pop %v2339
        %v2341 = vsel %vm1209, %v2334, 0.0
        %2342 = vadd.xlane.f32.xlu0 %v2341
        %v2343 = vpop.xlane.xlu0 %2342
        %v2344 = vsel %vm1209, %v2336, 0.0
        %2345 = vadd.xlane.f32.xlu0 %v2344
        %v2346 = vpop.xlane.xlu0 %2345
        %v2347 = vsel %vm1209, %v2338, 0.0
        %2348 = vadd.xlane.f32.xlu0 %v2347
        %v2349 = vpop.xlane.xlu0 %2348
        %v2350 = vsel %vm1209, %v2340, 0.0
        %2351 = vadd.xlane.f32.xlu0 %v2350
        %v2352 = vpop.xlane.xlu0 %2351
        %v2353 = vrcp.pop %v2343
        %v2354 = vrcp.pop %v2346
        %v2355 = vrcp.pop %v2349
        %v2356 = vrcp.pop %v2352
        %v2357 = vmul.f32 %v2334, %v2353
        %v2358 = vmul.f32 %v2336, %v2354
        %v2359 = vmul.f32 %v2338, %v2355
        %v2360 = vmul.f32 %v2340, %v2356
        %v2361 = vpack.c.bf16 %v2357, %v2357
        %v2362 = vpack.c.bf16 %v2358, %v2358
        %v2363 = vpack.c.bf16 %v2359, %v2359
        %v2364 = vpack.c.bf16 %v2360, %v2360
        %2365 = vrot.lane.b32.xlu0 %v1205, 112
        %v2366 = vpop.permute.xlu0 %2365
        %v2368 = vsel %vm1209, %v2361, 0
        %v2371 = vsel %vm1445, %v2366, 0
        %2373 = vmatprep.subr.bf16.mxu0 0
        %2374 = vmatpush1.bf16.msra.mxu0 0
        %2375 = vmatprep.subr.bf16.mxu0 0
        %2376 = vmatpush1.bf16.msra.mxu0 0
        %2377 = vmatprep.subr.bf16.mxu0 0
        %2378 = vmatpush1.bf16.msra.mxu0 0
        %2379 = vmatprep.subr.bf16.mxu0 0
        %2380 = vmatpush1.bf16.msra.mxu0 0
        %2381 = vmatprep.subr.bf16.mxu0 0
        %2382 = vmatpush1.bf16.msra.mxu0 0
        %2383 = vmatprep.subr.bf16.mxu0 0
        %2384 = vmatpush1.bf16.msra.mxu0 0
        %2385 = vmatprep.subr.bf16.mxu0 0
        %2386 = vmatpush1.bf16.msra.mxu0 0
        %2387 = vmatprep.subr.bf16.mxu0 0
        %2388 = vmatpush1.bf16.msra.mxu0 %v2371
        %2389 = vmatprep.subr.bf16.mxu0 0
        %2390 = vmatpush2.bf16.msra.mxu0 0
        %2391 = vmatprep.subr.bf16.mxu0 0
        %2392 = vmatpush2.bf16.msra.mxu0 0
        %2393 = vmatprep.subr.bf16.mxu0 0
        %2394 = vmatpush2.bf16.msra.mxu0 0
        %2395 = vmatprep.subr.bf16.mxu0 0
        %2396 = vmatpush2.bf16.msra.mxu0 0
        %2397 = vmatprep.subr.bf16.mxu0 0
        %2398 = vmatpush2.bf16.msra.mxu0 0
        %2399 = vmatprep.subr.bf16.mxu0 0
        %2400 = vmatpush2.bf16.msra.mxu0 0
        %2401 = vmatprep.subr.bf16.mxu0 0
        %2402 = vmatpush2.bf16.msra.mxu0 0
        %2403 = vmatprep.subr.bf16.mxu0 0
        %2404 = vmatpush2.bf16.msra.mxu0 0
        %2405 = vmatprep.mubr.bf16.mxu0 0
        %2406 = vmatmul.mubr.bf16.gmra.mxu0 %v2368
        %v2407 = vpop.f32.mrf.mxu0
        %v2408 = vadd.f32 0.0, %v2407
        %v2409 = vpop.f32.mrf.mxu0
        %v2410 = vpop.f32.mrf.mxu0
        %v2411 = vpop.f32.mrf.mxu0
        %2412 = vdwg.mxu0
        %2413 = vrot.lane.b32.xlu0 %v1206, 112
        %v2414 = vpop.permute.xlu0 %2413
        %v2416 = vsel %vm1209, %v2362, 0
        %v2419 = vsel %vm1445, %v2414, 0
        %2421 = vmatprep.subr.bf16.mxu0 0
        %2422 = vmatpush1.bf16.msra.mxu0 0
        %2423 = vmatprep.subr.bf16.mxu0 0
        %2424 = vmatpush1.bf16.msra.mxu0 0
        %2425 = vmatprep.subr.bf16.mxu0 0
        %2426 = vmatpush1.bf16.msra.mxu0 0
        %2427 = vmatprep.subr.bf16.mxu0 0
        %2428 = vmatpush1.bf16.msra.mxu0 0
        %2429 = vmatprep.subr.bf16.mxu0 0
        %2430 = vmatpush1.bf16.msra.mxu0 0
        %2431 = vmatprep.subr.bf16.mxu0 0
        %2432 = vmatpush1.bf16.msra.mxu0 0
        %2433 = vmatprep.subr.bf16.mxu0 0
        %2434 = vmatpush1.bf16.msra.mxu0 0
        %2435 = vmatprep.subr.bf16.mxu0 0
        %2436 = vmatpush1.bf16.msra.mxu0 %v2419
        %2437 = vmatprep.subr.bf16.mxu0 0
        %2438 = vmatpush2.bf16.msra.mxu0 0
        %2439 = vmatprep.subr.bf16.mxu0 0
        %2440 = vmatpush2.bf16.msra.mxu0 0
        %2441 = vmatprep.subr.bf16.mxu0 0
        %2442 = vmatpush2.bf16.msra.mxu0 0
        %2443 = vmatprep.subr.bf16.mxu0 0
        %2444 = vmatpush2.bf16.msra.mxu0 0
        %2445 = vmatprep.subr.bf16.mxu0 0
        %2446 = vmatpush2.bf16.msra.mxu0 0
        %2447 = vmatprep.subr.bf16.mxu0 0
        %2448 = vmatpush2.bf16.msra.mxu0 0
        %2449 = vmatprep.subr.bf16.mxu0 0
        %2450 = vmatpush2.bf16.msra.mxu0 0
        %2451 = vmatprep.subr.bf16.mxu0 0
        %2452 = vmatpush2.bf16.msra.mxu0 0
        %2453 = vmatprep.mubr.bf16.mxu0 0
        %2454 = vmatmul.mubr.bf16.gmra.mxu0 %v2416
        %v2455 = vpop.f32.mrf.mxu0
        %v2456 = vadd.f32 0.0, %v2455
        %v2457 = vpop.f32.mrf.mxu0
        %v2458 = vpop.f32.mrf.mxu0
        %v2459 = vpop.f32.mrf.mxu0
        %2460 = vdwg.mxu0
        %2461 = vrot.lane.b32.xlu0 %v1207, 112
        %v2462 = vpop.permute.xlu0 %2461
        %v2464 = vsel %vm1209, %v2363, 0
        %v2467 = vsel %vm1445, %v2462, 0
        %2469 = vmatprep.subr.bf16.mxu0 0
        %2470 = vmatpush1.bf16.msra.mxu0 0
        %2471 = vmatprep.subr.bf16.mxu0 0
        %2472 = vmatpush1.bf16.msra.mxu0 0
        %2473 = vmatprep.subr.bf16.mxu0 0
        %2474 = vmatpush1.bf16.msra.mxu0 0
        %2475 = vmatprep.subr.bf16.mxu0 0
        %2476 = vmatpush1.bf16.msra.mxu0 0
        %2477 = vmatprep.subr.bf16.mxu0 0
        %2478 = vmatpush1.bf16.msra.mxu0 0
        %2479 = vmatprep.subr.bf16.mxu0 0
        %2480 = vmatpush1.bf16.msra.mxu0 0
        %2481 = vmatprep.subr.bf16.mxu0 0
        %2482 = vmatpush1.bf16.msra.mxu0 0
        %2483 = vmatprep.subr.bf16.mxu0 0
        %2484 = vmatpush1.bf16.msra.mxu0 %v2467
        %2485 = vmatprep.subr.bf16.mxu0 0
        %2486 = vmatpush2.bf16.msra.mxu0 0
        %2487 = vmatprep.subr.bf16.mxu0 0
        %2488 = vmatpush2.bf16.msra.mxu0 0
        %2489 = vmatprep.subr.bf16.mxu0 0
        %2490 = vmatpush2.bf16.msra.mxu0 0
        %2491 = vmatprep.subr.bf16.mxu0 0
        %2492 = vmatpush2.bf16.msra.mxu0 0
        %2493 = vmatprep.subr.bf16.mxu0 0
        %2494 = vmatpush2.bf16.msra.mxu0 0
        %2495 = vmatprep.subr.bf16.mxu0 0
        %2496 = vmatpush2.bf16.msra.mxu0 0
        %2497 = vmatprep.subr.bf16.mxu0 0
        %2498 = vmatpush2.bf16.msra.mxu0 0
        %2499 = vmatprep.subr.bf16.mxu0 0
        %2500 = vmatpush2.bf16.msra.mxu0 0
        %2501 = vmatprep.mubr.bf16.mxu0 0
        %2502 = vmatmul.mubr.bf16.gmra.mxu0 %v2464
        %v2503 = vpop.f32.mrf.mxu0
        %v2504 = vadd.f32 0.0, %v2503
        %v2505 = vpop.f32.mrf.mxu0
        %v2506 = vpop.f32.mrf.mxu0
        %v2507 = vpop.f32.mrf.mxu0
        %2508 = vdwg.mxu0
        %2509 = vrot.lane.b32.xlu0 %v1208, 112
        %v2510 = vpop.permute.xlu0 %2509
        %v2512 = vsel %vm1209, %v2364, 0
        %v2515 = vsel %vm1445, %v2510, 0
        %2517 = vmatprep.subr.bf16.mxu0 0
        %2518 = vmatpush1.bf16.msra.mxu0 0
        %2519 = vmatprep.subr.bf16.mxu0 0
        %2520 = vmatpush1.bf16.msra.mxu0 0
        %2521 = vmatprep.subr.bf16.mxu0 0
        %2522 = vmatpush1.bf16.msra.mxu0 0
        %2523 = vmatprep.subr.bf16.mxu0 0
        %2524 = vmatpush1.bf16.msra.mxu0 0
        %2525 = vmatprep.subr.bf16.mxu0 0
        %2526 = vmatpush1.bf16.msra.mxu0 0
        %2527 = vmatprep.subr.bf16.mxu0 0
        %2528 = vmatpush1.bf16.msra.mxu0 0
        %2529 = vmatprep.subr.bf16.mxu0 0
        %2530 = vmatpush1.bf16.msra.mxu0 0
        %2531 = vmatprep.subr.bf16.mxu0 0
        %2532 = vmatpush1.bf16.msra.mxu0 %v2515
        %2533 = vmatprep.subr.bf16.mxu0 0
        %2534 = vmatpush2.bf16.msra.mxu0 0
        %2535 = vmatprep.subr.bf16.mxu0 0
        %2536 = vmatpush2.bf16.msra.mxu0 0
        %2537 = vmatprep.subr.bf16.mxu0 0
        %2538 = vmatpush2.bf16.msra.mxu0 0
        %2539 = vmatprep.subr.bf16.mxu0 0
        %2540 = vmatpush2.bf16.msra.mxu0 0
        %2541 = vmatprep.subr.bf16.mxu0 0
        %2542 = vmatpush2.bf16.msra.mxu0 0
        %2543 = vmatprep.subr.bf16.mxu0 0
        %2544 = vmatpush2.bf16.msra.mxu0 0
        %2545 = vmatprep.subr.bf16.mxu0 0
        %2546 = vmatpush2.bf16.msra.mxu0 0
        %2547 = vmatprep.subr.bf16.mxu0 0
        %2548 = vmatpush2.bf16.msra.mxu0 0
        %2549 = vmatprep.mubr.bf16.mxu0 0
        %2550 = vmatmul.mubr.bf16.gmra.mxu0 %v2512
        %v2551 = vpop.f32.mrf.mxu0
        %v2552 = vadd.f32 0.0, %v2551
        %v2553 = vpop.f32.mrf.mxu0
        %v2554 = vpop.f32.mrf.mxu0
        %v2555 = vpop.f32.mrf.mxu0
        %2556 = vdwg.mxu0
        %v2557 = vpack.c.bf16 %v2456, %v2408
        %v2558 = vpack.c.bf16 %v2552, %v2504
        %v2561 = vunpack.c.l.b16 %v2557
        %v2562 = vunpack.c.h.b16 %v2557
        %v2563 = vunpack.c.l.b16 %v2558
        %v2564 = vunpack.c.h.b16 %v2558
        %v2565 = vpack.c.b16 %v2561, %v2561
        %v2566 = vpack.c.b16 %v2562, %v2562
        %v2567 = vpack.c.b16 %v2563, %v2563
        %v2568 = vpack.c.b16 %v2564, %v2564
        %2569 = vrot.lane.b32.xlu0 %v2565, 16
        %v2570 = vpop.permute.xlu0 %2569
        %2571 = vrot.lane.b32.xlu0 %v2566, 16
        %v2572 = vpop.permute.xlu0 %2571
        %2573 = vrot.lane.b32.xlu0 %v2567, 16
        %v2574 = vpop.permute.xlu0 %2573
        %2575 = vrot.lane.b32.xlu0 %v2568, 16
        %v2576 = vpop.permute.xlu0 %2575
        %vm2581 = vcmask 191616
        %2582 = vst.msk [vmem:[#allocation2] sm:$0xf] %vm2581, %v2570
        %2583 = vst.msk [vmem:[#allocation2 + $0x4] sm:$0xf] %vm2581, %v2572
        %2584 = vst.msk [vmem:[#allocation2 + $0x8] sm:$0xf] %vm2581, %v2574
        %2585 = vst.msk [vmem:[#allocation2 + $0xc] sm:$0xf] %vm2581, %v2576
        %2586 = vrot.lane.b32.xlu0 %v1185, 104
        %v2587 = vpop.permute.xlu0 %2586
        %2588 = vrot.lane.b32.xlu0 %v1195, 104
        %v2589 = vpop.permute.xlu0 %2588
        %v2591 = vsel %vm1209, %v2587, 0
        %v2594 = vsel %vm1209, %v2589, 0
        %2596 = vmatprep.subr.bf16.mxu0 0
        %2597 = vmatpush1.bf16.xpose.msra.mxu0 0
        %2598 = vmatprep.subr.bf16.mxu0 0
        %2599 = vmatpush1.bf16.xpose.msra.mxu0 0
        %2600 = vmatprep.subr.bf16.mxu0 0
        %2601 = vmatpush1.bf16.xpose.msra.mxu0 0
        %2602 = vmatprep.subr.bf16.mxu0 0
        %2603 = vmatpush1.bf16.xpose.msra.mxu0 0
        %2604 = vmatprep.subr.bf16.mxu0 0
        %2605 = vmatpush1.bf16.xpose.msra.mxu0 0
        %2606 = vmatprep.subr.bf16.mxu0 0
        %2607 = vmatpush1.bf16.xpose.msra.mxu0 0
        %2608 = vmatprep.subr.bf16.mxu0 0
        %2609 = vmatpush1.bf16.xpose.msra.mxu0 0
        %2610 = vmatprep.subr.bf16.mxu0 0
        %2611 = vmatpush1.bf16.xpose.msra.mxu0 %v2594
        %2612 = vmatprep.subr.bf16.mxu0 0
        %2613 = vmatpush2.bf16.xpose.msra.mxu0 0
        %2614 = vmatprep.subr.bf16.mxu0 0
        %2615 = vmatpush2.bf16.xpose.msra.mxu0 0
        %2616 = vmatprep.subr.bf16.mxu0 0
        %2617 = vmatpush2.bf16.xpose.msra.mxu0 0
        %2618 = vmatprep.subr.bf16.mxu0 0
        %2619 = vmatpush2.bf16.xpose.msra.mxu0 0
        %2620 = vmatprep.subr.bf16.mxu0 0
        %2621 = vmatpush2.bf16.xpose.msra.mxu0 0
        %2622 = vmatprep.subr.bf16.mxu0 0
        %2623 = vmatpush2.bf16.xpose.msra.mxu0 0
        %2624 = vmatprep.subr.bf16.mxu0 0
        %2625 = vmatpush2.bf16.xpose.msra.mxu0 0
        %2626 = vmatprep.subr.bf16.mxu0 0
        %2627 = vmatpush2.bf16.xpose.msra.mxu0 0
        %2628 = vmatprep.mubr.bf16.mxu0 0
        %2629 = vmatmul.mubr.bf16.gmra.mxu0 %v2591
        %v2630 = vpop.f32.mrf.mxu0
        %v2631 = vadd.f32 0.0, %v2630
        %v2632 = vpop.f32.mrf.mxu0
        %v2633 = vpop.f32.mrf.mxu0
        %v2634 = vpop.f32.mrf.mxu0
        %2635 = vdwg.mxu0
        %2636 = vrot.lane.b32.xlu0 %v1186, 104
        %v2637 = vpop.permute.xlu0 %2636
        %2638 = vrot.lane.b32.xlu0 %v1196, 104
        %v2639 = vpop.permute.xlu0 %2638
        %v2641 = vsel %vm1209, %v2637, 0
        %v2644 = vsel %vm1209, %v2639, 0
        %2646 = vmatprep.subr.bf16.mxu0 0
        %2647 = vmatpush1.bf16.xpose.msra.mxu0 0
        %2648 = vmatprep.subr.bf16.mxu0 0
        %2649 = vmatpush1.bf16.xpose.msra.mxu0 0
        %2650 = vmatprep.subr.bf16.mxu0 0
        %2651 = vmatpush1.bf16.xpose.msra.mxu0 0
        %2652 = vmatprep.subr.bf16.mxu0 0
        %2653 = vmatpush1.bf16.xpose.msra.mxu0 0
        %2654 = vmatprep.subr.bf16.mxu0 0
        %2655 = vmatpush1.bf16.xpose.msra.mxu0 0
        %2656 = vmatprep.subr.bf16.mxu0 0
        %2657 = vmatpush1.bf16.xpose.msra.mxu0 0
        %2658 = vmatprep.subr.bf16.mxu0 0
        %2659 = vmatpush1.bf16.xpose.msra.mxu0 0
        %2660 = vmatprep.subr.bf16.mxu0 0
        %2661 = vmatpush1.bf16.xpose.msra.mxu0 %v2644
        %2662 = vmatprep.subr.bf16.mxu0 0
        %2663 = vmatpush2.bf16.xpose.msra.mxu0 0
        %2664 = vmatprep.subr.bf16.mxu0 0
        %2665 = vmatpush2.bf16.xpose.msra.mxu0 0
        %2666 = vmatprep.subr.bf16.mxu0 0
        %2667 = vmatpush2.bf16.xpose.msra.mxu0 0
        %2668 = vmatprep.subr.bf16.mxu0 0
        %2669 = vmatpush2.bf16.xpose.msra.mxu0 0
        %2670 = vmatprep.subr.bf16.mxu0 0
        %2671 = vmatpush2.bf16.xpose.msra.mxu0 0
        %2672 = vmatprep.subr.bf16.mxu0 0
        %2673 = vmatpush2.bf16.xpose.msra.mxu0 0
        %2674 = vmatprep.subr.bf16.mxu0 0
        %2675 = vmatpush2.bf16.xpose.msra.mxu0 0
        %2676 = vmatprep.subr.bf16.mxu0 0
        %2677 = vmatpush2.bf16.xpose.msra.mxu0 0
        %2678 = vmatprep.mubr.bf16.mxu0 0
        %2679 = vmatmul.mubr.bf16.gmra.mxu0 %v2641
        %v2680 = vpop.f32.mrf.mxu0
        %v2681 = vadd.f32 0.0, %v2680
        %v2682 = vpop.f32.mrf.mxu0
        %v2683 = vpop.f32.mrf.mxu0
        %v2684 = vpop.f32.mrf.mxu0
        %2685 = vdwg.mxu0
        %2686 = vrot.lane.b32.xlu0 %v1187, 104
        %v2687 = vpop.permute.xlu0 %2686
        %2688 = vrot.lane.b32.xlu0 %v1197, 104
        %v2689 = vpop.permute.xlu0 %2688
        %v2691 = vsel %vm1209, %v2687, 0
        %v2694 = vsel %vm1209, %v2689, 0
        %2696 = vmatprep.subr.bf16.mxu0 0
        %2697 = vmatpush1.bf16.xpose.msra.mxu0 0
        %2698 = vmatprep.subr.bf16.mxu0 0
        %2699 = vmatpush1.bf16.xpose.msra.mxu0 0
        %2700 = vmatprep.subr.bf16.mxu0 0
        %2701 = vmatpush1.bf16.xpose.msra.mxu0 0
        %2702 = vmatprep.subr.bf16.mxu0 0
        %2703 = vmatpush1.bf16.xpose.msra.mxu0 0
        %2704 = vmatprep.subr.bf16.mxu0 0
        %2705 = vmatpush1.bf16.xpose.msra.mxu0 0
        %2706 = vmatprep.subr.bf16.mxu0 0
        %2707 = vmatpush1.bf16.xpose.msra.mxu0 0
        %2708 = vmatprep.subr.bf16.mxu0 0
        %2709 = vmatpush1.bf16.xpose.msra.mxu0 0
        %2710 = vmatprep.subr.bf16.mxu0 0
        %2711 = vmatpush1.bf16.xpose.msra.mxu0 %v2694
        %2712 = vmatprep.subr.bf16.mxu0 0
        %2713 = vmatpush2.bf16.xpose.msra.mxu0 0
        %2714 = vmatprep.subr.bf16.mxu0 0
        %2715 = vmatpush2.bf16.xpose.msra.mxu0 0
        %2716 = vmatprep.subr.bf16.mxu0 0
        %2717 = vmatpush2.bf16.xpose.msra.mxu0 0
        %2718 = vmatprep.subr.bf16.mxu0 0
        %2719 = vmatpush2.bf16.xpose.msra.mxu0 0
        %2720 = vmatprep.subr.bf16.mxu0 0
        %2721 = vmatpush2.bf16.xpose.msra.mxu0 0
        %2722 = vmatprep.subr.bf16.mxu0 0
        %2723 = vmatpush2.bf16.xpose.msra.mxu0 0
        %2724 = vmatprep.subr.bf16.mxu0 0
        %2725 = vmatpush2.bf16.xpose.msra.mxu0 0
        %2726 = vmatprep.subr.bf16.mxu0 0
        %2727 = vmatpush2.bf16.xpose.msra.mxu0 0
        %2728 = vmatprep.mubr.bf16.mxu0 0
        %2729 = vmatmul.mubr.bf16.gmra.mxu0 %v2691
        %v2730 = vpop.f32.mrf.mxu0
        %v2731 = vadd.f32 0.0, %v2730
        %v2732 = vpop.f32.mrf.mxu0
        %v2733 = vpop.f32.mrf.mxu0
        %v2734 = vpop.f32.mrf.mxu0
        %2735 = vdwg.mxu0
        %2736 = vrot.lane.b32.xlu0 %v1188, 104
        %v2737 = vpop.permute.xlu0 %2736
        %2738 = vrot.lane.b32.xlu0 %v1198, 104
        %v2739 = vpop.permute.xlu0 %2738
        %v2741 = vsel %vm1209, %v2737, 0
        %v2744 = vsel %vm1209, %v2739, 0
        %2746 = vmatprep.subr.bf16.mxu0 0
        %2747 = vmatpush1.bf16.xpose.msra.mxu0 0
        %2748 = vmatprep.subr.bf16.mxu0 0
        %2749 = vmatpush1.bf16.xpose.msra.mxu0 0
        %2750 = vmatprep.subr.bf16.mxu0 0
        %2751 = vmatpush1.bf16.xpose.msra.mxu0 0
        %2752 = vmatprep.subr.bf16.mxu0 0
        %2753 = vmatpush1.bf16.xpose.msra.mxu0 0
        %2754 = vmatprep.subr.bf16.mxu0 0
        %2755 = vmatpush1.bf16.xpose.msra.mxu0 0
        %2756 = vmatprep.subr.bf16.mxu0 0
        %2757 = vmatpush1.bf16.xpose.msra.mxu0 0
        %2758 = vmatprep.subr.bf16.mxu0 0
        %2759 = vmatpush1.bf16.xpose.msra.mxu0 0
        %2760 = vmatprep.subr.bf16.mxu0 0
        %2761 = vmatpush1.bf16.xpose.msra.mxu0 %v2744
        %2762 = vmatprep.subr.bf16.mxu0 0
        %2763 = vmatpush2.bf16.xpose.msra.mxu0 0
        %2764 = vmatprep.subr.bf16.mxu0 0
        %2765 = vmatpush2.bf16.xpose.msra.mxu0 0
        %2766 = vmatprep.subr.bf16.mxu0 0
        %2767 = vmatpush2.bf16.xpose.msra.mxu0 0
        %2768 = vmatprep.subr.bf16.mxu0 0
        %2769 = vmatpush2.bf16.xpose.msra.mxu0 0
        %2770 = vmatprep.subr.bf16.mxu0 0
        %2771 = vmatpush2.bf16.xpose.msra.mxu0 0
        %2772 = vmatprep.subr.bf16.mxu0 0
        %2773 = vmatpush2.bf16.xpose.msra.mxu0 0
        %2774 = vmatprep.subr.bf16.mxu0 0
        %2775 = vmatpush2.bf16.xpose.msra.mxu0 0
        %2776 = vmatprep.subr.bf16.mxu0 0
        %2777 = vmatpush2.bf16.xpose.msra.mxu0 0
        %2778 = vmatprep.mubr.bf16.mxu0 0
        %2779 = vmatmul.mubr.bf16.gmra.mxu0 %v2741
        %v2780 = vpop.f32.mrf.mxu0
        %v2781 = vadd.f32 0.0, %v2780
        %v2782 = vpop.f32.mrf.mxu0
        %v2783 = vpop.f32.mrf.mxu0
        %v2784 = vpop.f32.mrf.mxu0
        %2785 = vdwg.mxu0
        %v2786 = vsel %vm1209, %v2631, -inf
        %2787 = vmax.xlane.f32.xlu0 %v2786
        %v2788 = vpop.xlane.xlu0 %2787
        %v2789 = vsel %vm1209, %v2681, -inf
        %2790 = vmax.xlane.f32.xlu0 %v2789
        %v2791 = vpop.xlane.xlu0 %2790
        %v2792 = vsel %vm1209, %v2731, -inf
        %2793 = vmax.xlane.f32.xlu0 %v2792
        %v2794 = vpop.xlane.xlu0 %2793
        %v2795 = vsel %vm1209, %v2781, -inf
        %2796 = vmax.xlane.f32.xlu0 %v2795
        %v2797 = vpop.xlane.xlu0 %2796
        %v2798 = vsub.f32 %v2631, %v2788
        %v2799 = vsub.f32 %v2681, %v2791
        %v2800 = vsub.f32 %v2731, %v2794
        %v2801 = vsub.f32 %v2781, %v2797
        %v2802 = vmul.f32 %v2798, 1.442695
        %v2803 = vpow.pop %v2802
        %v2804 = vmul.f32 %v2799, 1.442695
        %v2805 = vpow.pop %v2804
        %v2806 = vmul.f32 %v2800, 1.442695
        %v2807 = vpow.pop %v2806
        %v2808 = vmul.f32 %v2801, 1.442695
        %v2809 = vpow.pop %v2808
        %v2810 = vsel %vm1209, %v2803, 0.0
        %2811 = vadd.xlane.f32.xlu0 %v2810
        %v2812 = vpop.xlane.xlu0 %2811
        %v2813 = vsel %vm1209, %v2805, 0.0
        %2814 = vadd.xlane.f32.xlu0 %v2813
        %v2815 = vpop.xlane.xlu0 %2814
        %v2816 = vsel %vm1209, %v2807, 0.0
        %2817 = vadd.xlane.f32.xlu0 %v2816
        %v2818 = vpop.xlane.xlu0 %2817
        %v2819 = vsel %vm1209, %v2809, 0.0
        %2820 = vadd.xlane.f32.xlu0 %v2819
        %v2821 = vpop.xlane.xlu0 %2820
        %v2822 = vrcp.pop %v2812
        %v2823 = vrcp.pop %v2815
        %v2824 = vrcp.pop %v2818
        %v2825 = vrcp.pop %v2821
        %v2826 = vmul.f32 %v2803, %v2822
        %v2827 = vmul.f32 %v2805, %v2823
        %v2828 = vmul.f32 %v2807, %v2824
        %v2829 = vmul.f32 %v2809, %v2825
        %v2830 = vpack.c.bf16 %v2826, %v2826
        %v2831 = vpack.c.bf16 %v2827, %v2827
        %v2832 = vpack.c.bf16 %v2828, %v2828
        %v2833 = vpack.c.bf16 %v2829, %v2829
        %2834 = vrot.lane.b32.xlu0 %v1205, 104
        %v2835 = vpop.permute.xlu0 %2834
        %v2837 = vsel %vm1209, %v2830, 0
        %v2840 = vsel %vm1445, %v2835, 0
        %2842 = vmatprep.subr.bf16.mxu0 0
        %2843 = vmatpush1.bf16.msra.mxu0 0
        %2844 = vmatprep.subr.bf16.mxu0 0
        %2845 = vmatpush1.bf16.msra.mxu0 0
        %2846 = vmatprep.subr.bf16.mxu0 0
        %2847 = vmatpush1.bf16.msra.mxu0 0
        %2848 = vmatprep.subr.bf16.mxu0 0
        %2849 = vmatpush1.bf16.msra.mxu0 0
        %2850 = vmatprep.subr.bf16.mxu0 0
        %2851 = vmatpush1.bf16.msra.mxu0 0
        %2852 = vmatprep.subr.bf16.mxu0 0
        %2853 = vmatpush1.bf16.msra.mxu0 0
        %2854 = vmatprep.subr.bf16.mxu0 0
        %2855 = vmatpush1.bf16.msra.mxu0 0
        %2856 = vmatprep.subr.bf16.mxu0 0
        %2857 = vmatpush1.bf16.msra.mxu0 %v2840
        %2858 = vmatprep.subr.bf16.mxu0 0
        %2859 = vmatpush2.bf16.msra.mxu0 0
        %2860 = vmatprep.subr.bf16.mxu0 0
        %2861 = vmatpush2.bf16.msra.mxu0 0
        %2862 = vmatprep.subr.bf16.mxu0 0
        %2863 = vmatpush2.bf16.msra.mxu0 0
        %2864 = vmatprep.subr.bf16.mxu0 0
        %2865 = vmatpush2.bf16.msra.mxu0 0
        %2866 = vmatprep.subr.bf16.mxu0 0
        %2867 = vmatpush2.bf16.msra.mxu0 0
        %2868 = vmatprep.subr.bf16.mxu0 0
        %2869 = vmatpush2.bf16.msra.mxu0 0
        %2870 = vmatprep.subr.bf16.mxu0 0
        %2871 = vmatpush2.bf16.msra.mxu0 0
        %2872 = vmatprep.subr.bf16.mxu0 0
        %2873 = vmatpush2.bf16.msra.mxu0 0
        %2874 = vmatprep.mubr.bf16.mxu0 0
        %2875 = vmatmul.mubr.bf16.gmra.mxu0 %v2837
        %v2876 = vpop.f32.mrf.mxu0
        %v2877 = vadd.f32 0.0, %v2876
        %v2878 = vpop.f32.mrf.mxu0
        %v2879 = vpop.f32.mrf.mxu0
        %v2880 = vpop.f32.mrf.mxu0
        %2881 = vdwg.mxu0
        %2882 = vrot.lane.b32.xlu0 %v1206, 104
        %v2883 = vpop.permute.xlu0 %2882
        %v2885 = vsel %vm1209, %v2831, 0
        %v2888 = vsel %vm1445, %v2883, 0
        %2890 = vmatprep.subr.bf16.mxu0 0
        %2891 = vmatpush1.bf16.msra.mxu0 0
        %2892 = vmatprep.subr.bf16.mxu0 0
        %2893 = vmatpush1.bf16.msra.mxu0 0
        %2894 = vmatprep.subr.bf16.mxu0 0
        %2895 = vmatpush1.bf16.msra.mxu0 0
        %2896 = vmatprep.subr.bf16.mxu0 0
        %2897 = vmatpush1.bf16.msra.mxu0 0
        %2898 = vmatprep.subr.bf16.mxu0 0
        %2899 = vmatpush1.bf16.msra.mxu0 0
        %2900 = vmatprep.subr.bf16.mxu0 0
        %2901 = vmatpush1.bf16.msra.mxu0 0
        %2902 = vmatprep.subr.bf16.mxu0 0
        %2903 = vmatpush1.bf16.msra.mxu0 0
        %2904 = vmatprep.subr.bf16.mxu0 0
        %2905 = vmatpush1.bf16.msra.mxu0 %v2888
        %2906 = vmatprep.subr.bf16.mxu0 0
        %2907 = vmatpush2.bf16.msra.mxu0 0
        %2908 = vmatprep.subr.bf16.mxu0 0
        %2909 = vmatpush2.bf16.msra.mxu0 0
        %2910 = vmatprep.subr.bf16.mxu0 0
        %2911 = vmatpush2.bf16.msra.mxu0 0
        %2912 = vmatprep.subr.bf16.mxu0 0
        %2913 = vmatpush2.bf16.msra.mxu0 0
        %2914 = vmatprep.subr.bf16.mxu0 0
        %2915 = vmatpush2.bf16.msra.mxu0 0
        %2916 = vmatprep.subr.bf16.mxu0 0
        %2917 = vmatpush2.bf16.msra.mxu0 0
        %2918 = vmatprep.subr.bf16.mxu0 0
        %2919 = vmatpush2.bf16.msra.mxu0 0
        %2920 = vmatprep.subr.bf16.mxu0 0
        %2921 = vmatpush2.bf16.msra.mxu0 0
        %2922 = vmatprep.mubr.bf16.mxu0 0
        %2923 = vmatmul.mubr.bf16.gmra.mxu0 %v2885
        %v2924 = vpop.f32.mrf.mxu0
        %v2925 = vadd.f32 0.0, %v2924
        %v2926 = vpop.f32.mrf.mxu0
        %v2927 = vpop.f32.mrf.mxu0
        %v2928 = vpop.f32.mrf.mxu0
        %2929 = vdwg.mxu0
        %2930 = vrot.lane.b32.xlu0 %v1207, 104
        %v2931 = vpop.permute.xlu0 %2930
        %v2933 = vsel %vm1209, %v2832, 0
        %v2936 = vsel %vm1445, %v2931, 0
        %2938 = vmatprep.subr.bf16.mxu0 0
        %2939 = vmatpush1.bf16.msra.mxu0 0
        %2940 = vmatprep.subr.bf16.mxu0 0
        %2941 = vmatpush1.bf16.msra.mxu0 0
        %2942 = vmatprep.subr.bf16.mxu0 0
        %2943 = vmatpush1.bf16.msra.mxu0 0
        %2944 = vmatprep.subr.bf16.mxu0 0
        %2945 = vmatpush1.bf16.msra.mxu0 0
        %2946 = vmatprep.subr.bf16.mxu0 0
        %2947 = vmatpush1.bf16.msra.mxu0 0
        %2948 = vmatprep.subr.bf16.mxu0 0
        %2949 = vmatpush1.bf16.msra.mxu0 0
        %2950 = vmatprep.subr.bf16.mxu0 0
        %2951 = vmatpush1.bf16.msra.mxu0 0
        %2952 = vmatprep.subr.bf16.mxu0 0
        %2953 = vmatpush1.bf16.msra.mxu0 %v2936
        %2954 = vmatprep.subr.bf16.mxu0 0
        %2955 = vmatpush2.bf16.msra.mxu0 0
        %2956 = vmatprep.subr.bf16.mxu0 0
        %2957 = vmatpush2.bf16.msra.mxu0 0
        %2958 = vmatprep.subr.bf16.mxu0 0
        %2959 = vmatpush2.bf16.msra.mxu0 0
        %2960 = vmatprep.subr.bf16.mxu0 0
        %2961 = vmatpush2.bf16.msra.mxu0 0
        %2962 = vmatprep.subr.bf16.mxu0 0
        %2963 = vmatpush2.bf16.msra.mxu0 0
        %2964 = vmatprep.subr.bf16.mxu0 0
        %2965 = vmatpush2.bf16.msra.mxu0 0
        %2966 = vmatprep.subr.bf16.mxu0 0
        %2967 = vmatpush2.bf16.msra.mxu0 0
        %2968 = vmatprep.subr.bf16.mxu0 0
        %2969 = vmatpush2.bf16.msra.mxu0 0
        %2970 = vmatprep.mubr.bf16.mxu0 0
        %2971 = vmatmul.mubr.bf16.gmra.mxu0 %v2933
        %v2972 = vpop.f32.mrf.mxu0
        %v2973 = vadd.f32 0.0, %v2972
        %v2974 = vpop.f32.mrf.mxu0
        %v2975 = vpop.f32.mrf.mxu0
        %v2976 = vpop.f32.mrf.mxu0
        %2977 = vdwg.mxu0
        %2978 = vrot.lane.b32.xlu0 %v1208, 104
        %v2979 = vpop.permute.xlu0 %2978
        %v2981 = vsel %vm1209, %v2833, 0
        %v2984 = vsel %vm1445, %v2979, 0
        %2986 = vmatprep.subr.bf16.mxu0 0
        %2987 = vmatpush1.bf16.msra.mxu0 0
        %2988 = vmatprep.subr.bf16.mxu0 0
        %2989 = vmatpush1.bf16.msra.mxu0 0
        %2990 = vmatprep.subr.bf16.mxu0 0
        %2991 = vmatpush1.bf16.msra.mxu0 0
        %2992 = vmatprep.subr.bf16.mxu0 0
        %2993 = vmatpush1.bf16.msra.mxu0 0
        %2994 = vmatprep.subr.bf16.mxu0 0
        %2995 = vmatpush1.bf16.msra.mxu0 0
        %2996 = vmatprep.subr.bf16.mxu0 0
        %2997 = vmatpush1.bf16.msra.mxu0 0
        %2998 = vmatprep.subr.bf16.mxu0 0
        %2999 = vmatpush1.bf16.msra.mxu0 0
        %3000 = vmatprep.subr.bf16.mxu0 0
        %3001 = vmatpush1.bf16.msra.mxu0 %v2984
        %3002 = vmatprep.subr.bf16.mxu0 0
        %3003 = vmatpush2.bf16.msra.mxu0 0
        %3004 = vmatprep.subr.bf16.mxu0 0
        %3005 = vmatpush2.bf16.msra.mxu0 0
        %3006 = vmatprep.subr.bf16.mxu0 0
        %3007 = vmatpush2.bf16.msra.mxu0 0
        %3008 = vmatprep.subr.bf16.mxu0 0
        %3009 = vmatpush2.bf16.msra.mxu0 0
        %3010 = vmatprep.subr.bf16.mxu0 0
        %3011 = vmatpush2.bf16.msra.mxu0 0
        %3012 = vmatprep.subr.bf16.mxu0 0
        %3013 = vmatpush2.bf16.msra.mxu0 0
        %3014 = vmatprep.subr.bf16.mxu0 0
        %3015 = vmatpush2.bf16.msra.mxu0 0
        %3016 = vmatprep.subr.bf16.mxu0 0
        %3017 = vmatpush2.bf16.msra.mxu0 0
        %3018 = vmatprep.mubr.bf16.mxu0 0
        %3019 = vmatmul.mubr.bf16.gmra.mxu0 %v2981
        %v3020 = vpop.f32.mrf.mxu0
        %v3021 = vadd.f32 0.0, %v3020
        %v3022 = vpop.f32.mrf.mxu0
        %v3023 = vpop.f32.mrf.mxu0
        %v3024 = vpop.f32.mrf.mxu0
        %3025 = vdwg.mxu0
        %v3026 = vpack.c.bf16 %v2925, %v2877
        %v3027 = vpack.c.bf16 %v3021, %v2973
        %v3030 = vunpack.c.l.b16 %v3026
        %v3031 = vunpack.c.h.b16 %v3026
        %v3032 = vunpack.c.l.b16 %v3027
        %v3033 = vunpack.c.h.b16 %v3027
        %v3034 = vpack.c.b16 %v3030, %v3030
        %v3035 = vpack.c.b16 %v3031, %v3031
        %v3036 = vpack.c.b16 %v3032, %v3032
        %v3037 = vpack.c.b16 %v3033, %v3033
        %3038 = vrot.lane.b32.xlu0 %v3034, 24
        %v3039 = vpop.permute.xlu0 %3038
        %3040 = vrot.lane.b32.xlu0 %v3035, 24
        %v3041 = vpop.permute.xlu0 %3040
        %3042 = vrot.lane.b32.xlu0 %v3036, 24
        %v3043 = vpop.permute.xlu0 %3042
        %3044 = vrot.lane.b32.xlu0 %v3037, 24
        %v3045 = vpop.permute.xlu0 %3044
        %vm3050 = vcmask 257216
        %3051 = vst.msk [vmem:[#allocation2] sm:$0xf] %vm3050, %v3039
        %3052 = vst.msk [vmem:[#allocation2 + $0x4] sm:$0xf] %vm3050, %v3041
        %3053 = vst.msk [vmem:[#allocation2 + $0x8] sm:$0xf] %vm3050, %v3043
        %3054 = vst.msk [vmem:[#allocation2 + $0xc] sm:$0xf] %vm3050, %v3045
        %v3055 = vld [vmem:[#allocation2] sm:$0xf]
        %v3056 = vld [vmem:[#allocation2 + $0x4] sm:$0xf]
        %v3057 = vld [vmem:[#allocation2 + $0x8] sm:$0xf]
        %v3058 = vld [vmem:[#allocation2 + $0xc] sm:$0xf]
        %v3059 = vld [vmem:[%s833] sm:$0xf]
        %v3060 = vld [vmem:[%s833 + $0x4] sm:$0xf]
        %v3061 = vld [vmem:[%s833 + $0x8] sm:$0xf]
        %v3062 = vld [vmem:[%s833 + $0xc] sm:$0xf]
        %v3063 = vld [vmem:[%s836] sm:$0x1]
        %v3065 = vlaneseq
        %v3066 = vshrl.u32 %v3065, 7
        %v3067 = vsub.s32 0, %v3066
        %v3068 = vrot.slane %v3063, %v3067
        %v3074 = vunpack.c.l.b16 %v3055
        %v3075 = vunpack.c.l.b16 %v3056
        %v3076 = vunpack.c.l.b16 %v3057
        %v3077 = vunpack.c.l.b16 %v3058
        %v3078 = vpack.c.b16 %v3075, %v3074
        %v3079 = vpack.c.b16 %v3077, %v3076
        %v3084 = vunpack.c.l.b16 %v3059
        %v3085 = vunpack.c.l.b16 %v3060
        %v3086 = vunpack.c.l.b16 %v3061
        %v3087 = vunpack.c.l.b16 %v3062
        %v3088 = vpack.c.b16 %v3085, %v3084
        %v3089 = vpack.c.b16 %v3087, %v3086
        %v3093 = vsel %vm875, %v3078, 0
        %v3096 = vsel %vm875, %v3079, 0
        %3098 = vmatprep.subr.bf16.mxu0 0
        %3099 = vmatpush1.bf16.msra.mxu0 0
        %3100 = vmatprep.subr.bf16.mxu0 0
        %3101 = vmatpush1.bf16.msra.mxu0 0
        %3102 = vmatprep.subr.bf16.mxu0 0
        %3103 = vmatpush1.bf16.msra.mxu0 0
        %3104 = vmatprep.subr.bf16.mxu0 0
        %3105 = vmatpush1.bf16.msra.mxu0 0
        %3106 = vmatprep.subr.bf16.mxu0 0
        %3107 = vmatpush1.bf16.msra.mxu0 0
        %3108 = vmatprep.subr.bf16.mxu0 0
        %3109 = vmatpush1.bf16.msra.mxu0 0
        %3110 = vmatprep.subr.bf16.mxu0 0
        %3111 = vmatpush1.bf16.msra.mxu0 %v3089
        %3112 = vmatprep.subr.bf16.mxu0 0
        %3113 = vmatpush1.bf16.msra.mxu0 %v3088
        %3114 = vmatprep.subr.bf16.mxu0 0
        %3115 = vmatpush2.bf16.msra.mxu0 0
        %3116 = vmatprep.subr.bf16.mxu0 0
        %3117 = vmatpush2.bf16.msra.mxu0 0
        %3118 = vmatprep.subr.bf16.mxu0 0
        %3119 = vmatpush2.bf16.msra.mxu0 0
        %3120 = vmatprep.subr.bf16.mxu0 0
        %3121 = vmatpush2.bf16.msra.mxu0 0
        %3122 = vmatprep.subr.bf16.mxu0 0
        %3123 = vmatpush2.bf16.msra.mxu0 0
        %3124 = vmatprep.subr.bf16.mxu0 0
        %3125 = vmatpush2.bf16.msra.mxu0 0
        %3126 = vmatprep.subr.bf16.mxu0 0
        %3127 = vmatpush2.bf16.msra.mxu0 0
        %3128 = vmatprep.subr.bf16.mxu0 0
        %3129 = vmatpush2.bf16.msra.mxu0 0
        %3130 = vmatprep.mubr.bf16.mxu0 0
        %3131 = vmatmul.mubr.bf16.gmra.mxu0 %v3093
        %v3132 = vpop.f32.mrf.mxu0
        %v3133 = vadd.f32 %v3068, %v3132
        %v3134 = vpop.f32.mrf.mxu0
        %v3135 = vpop.f32.mrf.mxu0
        %v3136 = vadd.f32 %v3068, %v3135
        %v3137 = vpop.f32.mrf.mxu0
        %3138 = vmatprep.mubr.bf16.mxu0 0
        %3139 = vmatmul.mubr.bf16.gmra.mxu0 %v3096
        %v3140 = vpop.f32.mrf.mxu0
        %v3141 = vadd.f32 %v3068, %v3140
        %v3142 = vpop.f32.mrf.mxu0
        %v3143 = vpop.f32.mrf.mxu0
        %v3144 = vadd.f32 %v3068, %v3143
        %v3145 = vpop.f32.mrf.mxu0
        %3146 = vdwg.mxu0
        %v3147 = vadd.f32 %v869, %v3133
        %v3148 = vadd.f32 %v870, %v3136
        %v3149 = vadd.f32 %v871, %v3141
        %v3150 = vadd.f32 %v872, %v3144
        %v3151 = vld [vmem:[%s839] sm:$0x1]
        %v3152 = vld [vmem:[%s842] sm:$0x1]
        %v3153 = vsel %vm875, %v3147, 0.0
        %3154 = vadd.xlane.f32.xlu0 %v3153
        %v3155 = vpop.xlane.xlu0 %3154
        %v3156 = vsel %vm875, %v3148, 0.0
        %3157 = vadd.xlane.f32.xlu0 %v3156
        %v3158 = vpop.xlane.xlu0 %3157
        %v3159 = vsel %vm875, %v3149, 0.0
        %3160 = vadd.xlane.f32.xlu0 %v3159
        %v3161 = vpop.xlane.xlu0 %3160
        %v3162 = vsel %vm875, %v3150, 0.0
        %3163 = vadd.xlane.f32.xlu0 %v3162
        %v3164 = vpop.xlane.xlu0 %3163
        %v3165 = vmul.f32 %v3155, %v888
        %v3166 = vmul.f32 %v3158, %v888
        %v3167 = vmul.f32 %v3161, %v888
        %v3168 = vmul.f32 %v3164, %v888
        %v3169 = vsub.f32 %v3147, %v3165
        %v3170 = vsub.f32 %v3148, %v3166
        %v3171 = vsub.f32 %v3149, %v3167
        %v3172 = vsub.f32 %v3150, %v3168
        %v3173 = vmul.f32 %v3169, %v3169
        %v3174 = vmul.f32 %v3170, %v3170
        %v3175 = vmul.f32 %v3171, %v3171
        %v3176 = vmul.f32 %v3172, %v3172
        %v3177 = vsel %vm875, %v3173, 0.0
        %3178 = vadd.xlane.f32.xlu0 %v3177
        %v3179 = vpop.xlane.xlu0 %3178
        %v3180 = vsel %vm875, %v3174, 0.0
        %3181 = vadd.xlane.f32.xlu0 %v3180
        %v3182 = vpop.xlane.xlu0 %3181
        %v3183 = vsel %vm875, %v3175, 0.0
        %3184 = vadd.xlane.f32.xlu0 %v3183
        %v3185 = vpop.xlane.xlu0 %3184
        %v3186 = vsel %vm875, %v3176, 0.0
        %3187 = vadd.xlane.f32.xlu0 %v3186
        %v3188 = vpop.xlane.xlu0 %3187
        %v3189 = vmul.f32 %v3179, %v888
        %v3190 = vmul.f32 %v3182, %v888
        %v3191 = vmul.f32 %v3185, %v888
        %v3192 = vmul.f32 %v3188, %v888
        %v3193 = vadd.f32 %v3189, 1e-12
        %v3194 = vadd.f32 %v3190, 1e-12
        %v3195 = vadd.f32 %v3191, 1e-12
        %v3196 = vadd.f32 %v3192, 1e-12
        %v3197 = vrsqrt.pop %v3193
        %v3198 = vrsqrt.pop %v3194
        %v3199 = vrsqrt.pop %v3195
        %v3200 = vrsqrt.pop %v3196
        %v3201 = vmul.f32 %v3169, %v3197
        %v3202 = vmul.f32 %v3170, %v3198
        %v3203 = vmul.f32 %v3171, %v3199
        %v3204 = vmul.f32 %v3172, %v3200
        %v3206 = vlaneseq
        %v3207 = vshrl.u32 %v3206, 7
        %v3208 = vsub.s32 0, %v3207
        %v3209 = vrot.slane %v3151, %v3208
        %v3211 = vmul.f32 %v3209, %v3201
        %v3212 = vmul.f32 %v3209, %v3202
        %v3213 = vmul.f32 %v3209, %v3203
        %v3214 = vmul.f32 %v3209, %v3204
        %v3216 = vlaneseq
        %v3217 = vshrl.u32 %v3216, 7
        %v3218 = vsub.s32 0, %v3217
        %v3219 = vrot.slane %v3152, %v3218
        %v3221 = vadd.f32 %v3211, %v3219
        %v3222 = vadd.f32 %v3212, %v3219
        %v3223 = vadd.f32 %v3213, %v3219
        %v3224 = vadd.f32 %v3214, %v3219
        %v3225 = vpack.c.bf16 %v3222, %v3221
        %v3226 = vpack.c.bf16 %v3224, %v3223
        %v3227 = vld [vmem:[%s689] sm:$0xf]
        %v3228 = vld [vmem:[%s689 + $0x4] sm:$0xf]
        %v3229 = vld [vmem:[%s689 + $0x8] sm:$0xf]
        %v3230 = vld [vmem:[%s689 + $0xc] sm:$0xf]
        %v3231 = vld [vmem:[%s845] sm:$0x1]
        %v3233 = vlaneseq
        %v3234 = vshrl.u32 %v3233, 7
        %v3235 = vsub.s32 0, %v3234
        %v3236 = vrot.slane %v3231, %v3235
        %v3242 = vunpack.c.l.b16 %v3227
        %v3243 = vunpack.c.l.b16 %v3228
        %v3244 = vunpack.c.l.b16 %v3229
        %v3245 = vunpack.c.l.b16 %v3230
        %v3246 = vpack.c.b16 %v3243, %v3242
        %v3247 = vpack.c.b16 %v3245, %v3244
        %v3251 = vsel %vm875, %v3225, 0
        %v3254 = vsel %vm875, %v3226, 0
        %3256 = vmatprep.subr.bf16.mxu0 0
        %3257 = vmatpush1.bf16.msra.mxu0 0
        %3258 = vmatprep.subr.bf16.mxu0 0
        %3259 = vmatpush1.bf16.msra.mxu0 0
        %3260 = vmatprep.subr.bf16.mxu0 0
        %3261 = vmatpush1.bf16.msra.mxu0 0
        %3262 = vmatprep.subr.bf16.mxu0 0
        %3263 = vmatpush1.bf16.msra.mxu0 0
        %3264 = vmatprep.subr.bf16.mxu0 0
        %3265 = vmatpush1.bf16.msra.mxu0 0
        %3266 = vmatprep.subr.bf16.mxu0 0
        %3267 = vmatpush1.bf16.msra.mxu0 0
        %3268 = vmatprep.subr.bf16.mxu0 0
        %3269 = vmatpush1.bf16.msra.mxu0 %v3247
        %3270 = vmatprep.subr.bf16.mxu0 0
        %3271 = vmatpush1.bf16.msra.mxu0 %v3246
        %3272 = vmatprep.subr.bf16.mxu0 0
        %3273 = vmatpush2.bf16.msra.mxu0 0
        %3274 = vmatprep.subr.bf16.mxu0 0
        %3275 = vmatpush2.bf16.msra.mxu0 0
        %3276 = vmatprep.subr.bf16.mxu0 0
        %3277 = vmatpush2.bf16.msra.mxu0 0
        %3278 = vmatprep.subr.bf16.mxu0 0
        %3279 = vmatpush2.bf16.msra.mxu0 0
        %3280 = vmatprep.subr.bf16.mxu0 0
        %3281 = vmatpush2.bf16.msra.mxu0 0
        %3282 = vmatprep.subr.bf16.mxu0 0
        %3283 = vmatpush2.bf16.msra.mxu0 0
        %3284 = vmatprep.subr.bf16.mxu0 0
        %3285 = vmatpush2.bf16.msra.mxu0 0
        %3286 = vmatprep.subr.bf16.mxu0 0
        %3287 = vmatpush2.bf16.msra.mxu0 0
        %3288 = vmatprep.mubr.bf16.mxu0 0
        %3289 = vmatmul.mubr.bf16.gmra.mxu0 %v3251
        %v3290 = vpop.f32.mrf.mxu0
        %v3291 = vadd.f32 %v3236, %v3290
        %v3292 = vpop.f32.mrf.mxu0
        %v3293 = vpop.f32.mrf.mxu0
        %v3294 = vadd.f32 %v3236, %v3293
        %v3295 = vpop.f32.mrf.mxu0
        %3296 = vmatprep.mubr.bf16.mxu0 0
        %3297 = vmatmul.mubr.bf16.gmra.mxu0 %v3254
        %v3298 = vpop.f32.mrf.mxu0
        %v3299 = vadd.f32 %v3236, %v3298
        %v3300 = vpop.f32.mrf.mxu0
        %v3301 = vpop.f32.mrf.mxu0
        %v3302 = vadd.f32 %v3236, %v3301
        %v3303 = vpop.f32.mrf.mxu0
        %3304 = vdwg.mxu0
        %v3305 = vmul.f32 %v3291, 1.702
        %v3306 = vmul.f32 %v3294, 1.702
        %v3307 = vmul.f32 %v3299, 1.702
        %v3308 = vmul.f32 %v3302, 1.702
        %v3309 = vxor.u32 %v3305, 2147483648
        %v3310 = vxor.u32 %v3306, 2147483648
        %v3311 = vxor.u32 %v3307, 2147483648
        %v3312 = vxor.u32 %v3308, 2147483648
        %v3313 = vmul.f32 %v3309, 1.442695
        %v3314 = vpow.pop %v3313
        %v3315 = vmul.f32 %v3310, 1.442695
        %v3316 = vpow.pop %v3315
        %v3317 = vmul.f32 %v3311, 1.442695
        %v3318 = vpow.pop %v3317
        %v3319 = vmul.f32 %v3312, 1.442695
        %v3320 = vpow.pop %v3319
        %v3321 = vadd.f32 %v3314, 1.0
        %v3322 = vadd.f32 %v3316, 1.0
        %v3323 = vadd.f32 %v3318, 1.0
        %v3324 = vadd.f32 %v3320, 1.0
        %v3325 = vrcp.pop %v3321
        %v3326 = vmul.f32 1.0, %v3325
        %v3327 = vrcp.pop %v3322
        %v3328 = vmul.f32 1.0, %v3327
        %v3329 = vrcp.pop %v3323
        %v3330 = vmul.f32 1.0, %v3329
        %v3331 = vrcp.pop %v3324
        %v3332 = vmul.f32 1.0, %v3331
        %v3333 = vmul.f32 %v3291, %v3326
        %v3334 = vmul.f32 %v3294, %v3328
        %v3335 = vmul.f32 %v3299, %v3330
        %v3336 = vmul.f32 %v3302, %v3332
        %v3337 = vpack.c.bf16 %v3334, %v3333
        %v3338 = vpack.c.bf16 %v3336, %v3335
        %v3339 = vld [vmem:[%s850] sm:$0xf]
        %v3340 = vld [vmem:[%s850 + $0x4] sm:$0xf]
        %v3341 = vld [vmem:[%s850 + $0x8] sm:$0xf]
        %v3342 = vld [vmem:[%s850 + $0xc] sm:$0xf]
        %v3343 = vld [vmem:[%s850 + $0x10] sm:$0xf]
        %v3344 = vld [vmem:[%s850 + $0x14] sm:$0xf]
        %v3345 = vld [vmem:[%s850 + $0x18] sm:$0xf]
        %v3346 = vld [vmem:[%s850 + $0x1c] sm:$0xf]
        %v3347 = vld [vmem:[%s850 + $0x20] sm:$0xf]
        %v3348 = vld [vmem:[%s850 + $0x24] sm:$0xf]
        %v3349 = vld [vmem:[%s850 + $0x28] sm:$0xf]
        %v3350 = vld [vmem:[%s850 + $0x2c] sm:$0xf]
        %v3351 = vld [vmem:[%s850 + $0x30] sm:$0xf]
        %v3352 = vld [vmem:[%s850 + $0x34] sm:$0xf]
        %v3353 = vld [vmem:[%s850 + $0x38] sm:$0xf]
        %v3354 = vld [vmem:[%s850 + $0x3c] sm:$0xf]
        %v3355 = vld [vmem:[%s853] sm:$0x1]
        %v3357 = vlaneseq
        %v3358 = vshrl.u32 %v3357, 7
        %v3359 = vsub.s32 0, %v3358
        %v3360 = vrot.slane %v3355, %v3359
        %v3378 = vunpack.c.l.b16 %v3339
        %v3379 = vunpack.c.l.b16 %v3340
        %v3380 = vunpack.c.l.b16 %v3341
        %v3381 = vunpack.c.l.b16 %v3342
        %v3382 = vunpack.c.l.b16 %v3343
        %v3383 = vunpack.c.l.b16 %v3344
        %v3384 = vunpack.c.l.b16 %v3345
        %v3385 = vunpack.c.l.b16 %v3346
        %v3386 = vunpack.c.l.b16 %v3347
        %v3387 = vunpack.c.l.b16 %v3348
        %v3388 = vunpack.c.l.b16 %v3349
        %v3389 = vunpack.c.l.b16 %v3350
        %v3390 = vunpack.c.l.b16 %v3351
        %v3391 = vunpack.c.l.b16 %v3352
        %v3392 = vunpack.c.l.b16 %v3353
        %v3393 = vunpack.c.l.b16 %v3354
        %v3394 = vpack.c.b16 %v3379, %v3378
        %v3395 = vpack.c.b16 %v3381, %v3380
        %v3396 = vpack.c.b16 %v3383, %v3382
        %v3397 = vpack.c.b16 %v3385, %v3384
        %v3398 = vpack.c.b16 %v3387, %v3386
        %v3399 = vpack.c.b16 %v3389, %v3388
        %v3400 = vpack.c.b16 %v3391, %v3390
        %v3401 = vpack.c.b16 %v3393, %v3392
        %3410 = vmatprep.subr.bf16.mxu0 0
        %3411 = vmatpush1.bf16.msra.mxu0 %v3401
        %3412 = vmatprep.subr.bf16.mxu0 0
        %3413 = vmatpush1.bf16.msra.mxu0 %v3400
        %3414 = vmatprep.subr.bf16.mxu0 0
        %3415 = vmatpush1.bf16.msra.mxu0 %v3399
        %3416 = vmatprep.subr.bf16.mxu0 0
        %3417 = vmatpush1.bf16.msra.mxu0 %v3398
        %3418 = vmatprep.subr.bf16.mxu0 0
        %3419 = vmatpush1.bf16.msra.mxu0 %v3397
        %3420 = vmatprep.subr.bf16.mxu0 0
        %3421 = vmatpush1.bf16.msra.mxu0 %v3396
        %3422 = vmatprep.subr.bf16.mxu0 0
        %3423 = vmatpush1.bf16.msra.mxu0 %v3395
        %3424 = vmatprep.subr.bf16.mxu0 0
        %3425 = vmatpush1.bf16.msra.mxu0 %v3394
        %3426 = vmatprep.subr.bf16.mxu0 0
        %3427 = vmatpush2.bf16.msra.mxu0 0
        %3428 = vmatprep.subr.bf16.mxu0 0
        %3429 = vmatpush2.bf16.msra.mxu0 0
        %3430 = vmatprep.subr.bf16.mxu0 0
        %3431 = vmatpush2.bf16.msra.mxu0 0
        %3432 = vmatprep.subr.bf16.mxu0 0
        %3433 = vmatpush2.bf16.msra.mxu0 0
        %3434 = vmatprep.subr.bf16.mxu0 0
        %3435 = vmatpush2.bf16.msra.mxu0 0
        %3436 = vmatprep.subr.bf16.mxu0 0
        %3437 = vmatpush2.bf16.msra.mxu0 0
        %3438 = vmatprep.subr.bf16.mxu0 0
        %3439 = vmatpush2.bf16.msra.mxu0 0
        %3440 = vmatprep.subr.bf16.mxu0 0
        %3441 = vmatpush2.bf16.msra.mxu0 0
        %3442 = vmatprep.mubr.bf16.mxu0 0
        %3443 = vmatmul.mubr.bf16.gmra.mxu0 %v3337
        %v3444 = vpop.f32.mrf.mxu0
        %v3445 = vadd.f32 %v3360, %v3444
        %v3446 = vpop.f32.mrf.mxu0
        %v3447 = vpop.f32.mrf.mxu0
        %v3448 = vadd.f32 %v3360, %v3447
        %v3449 = vpop.f32.mrf.mxu0
        %3450 = vmatprep.mubr.bf16.mxu0 0
        %3451 = vmatmul.mubr.bf16.gmra.mxu0 %v3338
        %v3452 = vpop.f32.mrf.mxu0
        %v3453 = vadd.f32 %v3360, %v3452
        %v3454 = vpop.f32.mrf.mxu0
        %v3455 = vpop.f32.mrf.mxu0
        %v3456 = vadd.f32 %v3360, %v3455
        %v3457 = vpop.f32.mrf.mxu0
        %3458 = vdwg.mxu0
        %v3459 = vadd.f32 %v3147, %v3445
        %v3460 = vadd.f32 %v3148, %v3448
        %v3461 = vadd.f32 %v3149, %v3453
        %v3462 = vadd.f32 %v3150, %v3456
        %3463 = vst.msk [vmem:[#allocation8] sm:$0xff] %vm875, %v3459
        %3464 = vst.msk [vmem:[#allocation8 + $0x8] sm:$0xff] %vm875, %v3460
        %3465 = vst.msk [vmem:[#allocation8 + $0x10] sm:$0xff] %vm875, %v3461
        %3466 = vst.msk [vmem:[#allocation8 + $0x18] sm:$0xff] %vm875, %v3462
        // Predicated region
        $region101: #{tpu_custom_call.1} parent=87 // pred_check
          %p3467 = pneg %p507
        $region102: #{tpu_custom_call.1} parent=87 // pred_check_branch
          %3469 = sbr.rel (%p3467) target = $region104
        $region103: #{tpu_custom_call.1} parent=87 // pred_region
          %s3470 = smul.u32 4, %s39
          %s3472 = ssub.s32 512, 512
          %3473 = vsyncadd [#allocation5], %s3472
          %s3474 = smul.addr %s3470, 128
          %s3475 = scalar_lea.hbm %s17, %s3474
          %s3476 = sshll.u32 [#allocation8], 4
          %s3477 = int_to_ptr.vmem [resolvable:$true] %s3476
          %3482 = dma.vmem_to_hbm [thread:$0]  %s3477, 512, %s3475, [#allocation5], 128, 128, 8
        $region104: #{tpu_custom_call.1} parent=87 // pred_fallthru
          _
        // Predicated region
        $region105: #{tpu_custom_call.1} parent=87 // pred_check
          %p3483 = pneg %p507
        $region106: #{tpu_custom_call.1} parent=87 // pred_check_branch
          %3485 = sbr.rel (%p3483) target = $region108
        $region107: #{tpu_custom_call.1} parent=87 // pred_region
          %3486 = dma.done [#allocation5], 512
        $region108: #{tpu_custom_call.1} parent=87 // pred_fallthru
          _
      $region88: #{tpu_custom_call.1} parent=5 // pred_fallthru
        _
      %p3487 = scmp.le.s32.totalorder 2, %s30
      // Predicated region
      $region109: #{tpu_custom_call.1} parent=5 // pred_check
        %p3488 = pneg %p3487
      $region110: #{tpu_custom_call.1} parent=5 // pred_check_branch
        %3490 = sbr.rel (%p3488) target = $region112
      $region111: #{tpu_custom_call.1} parent=5 // pred_region
        %s3491 = ssub.s32 %s30, 2
      $region112: #{tpu_custom_call.1} parent=5 // pred_fallthru
        _
    $region6: #{tpu_custom_call.1} parent=1 // loop_footer
      %s34 = sadd.s32 1, %s30
    $region7: #{tpu_custom_call.1} parent=1 // loop_footer_branch
      %29 = sbr.rel target = $region3
    $region8: #{tpu_custom_call.1} parent=1 // loop_exit
      _
    %3492 = vsyncpa [#allocation4], 1
    %s3493 = scalar_lea.sflag [#allocation4], 1
    %3494 = vsyncpa %s3493, 1
    %3495 = vsyncpa [#allocation7], 1
    %s3496 = scalar_lea.sflag [#allocation7], 1
    %3497 = vsyncpa %s3496, 1
    %3498 = vsyncpa [#allocation5], 1
    %s3499 = scalar_lea.sflag [#allocation5], 1
    %3500 = vsyncpa %s3499, 1

</llo_original>
